<compile_context>
chip_gen: v5e
topology: v5e:2x2
jax: 0.10.0
libtpu: 0.0.40
codegen_flags: <defaults>
</compile_context>

<pallas_src>
import math

import jax
import jax.numpy as jnp
from jax import lax
from jax.experimental import pallas as pl
from jax.experimental.pallas import tpu as pltpu

# ---- scaled-down hyperparameters (reference: d_model=512, seq=1024, ...) ----
D_MODEL = 128
N_HEADS = 8
D_HEAD = D_MODEL // N_HEADS          # 16
N_GROUPS = 4
N_KV = N_HEADS // N_GROUPS           # 2 KV heads
D_FF = 256
N_LAYERS = 2
VOCAB = 512
SEQ = 16
BATCH = 2
EPS = 1e-6

Q_OUT = N_HEADS * D_HEAD             # 128 (lane-aligned full vreg)
KV_OUT = N_KV * D_HEAD               # 32
QKV_OUT = Q_OUT + 2 * KV_OUT         # 192
HALF = D_MODEL // 2
_SCALE = 1.0 / math.sqrt(D_HEAD)


# ----------------------------- in-kernel helpers -----------------------------
def _rmsnorm(x, scale):
    ms = jnp.mean(x * x, axis=-1, keepdims=True)
    return x * lax.rsqrt(ms + EPS) * scale


def _mm(x, w):
    # x @ w with weights already in (K, N) layout -> no in-kernel transpose.
    return lax.dot_general(x, w, (((1,), (0,)), ((), ())),
                           preferred_element_type=jnp.float32)


def _attention(q, k, v):
    """GQA attention for one batch element.

    q: (SEQ, Q_OUT) bf16, k/v: (SEQ, KV_OUT) bf16  ->  (SEQ, Q_OUT) f32.
    Heads are stacked on the sublane axis (group-major) so each KV group is a
    single (N_GROUPS*SEQ, D_HEAD) matmul + one slab softmax, instead of the
    previous 8 per-head 16x16x16 matmuls + 8 tiny softmaxes.
    """
    q_slab = jnp.concatenate(
        [q[:, h * D_HEAD:(h + 1) * D_HEAD] for h in range(N_HEADS)], axis=0)
    group_out = []
    for g in range(N_KV):
        # Rows of the slab belonging to this group's heads: free sublane slice.
        qg = q_slab[g * N_GROUPS * SEQ:(g + 1) * N_GROUPS * SEQ, :]  # (64, Dh)
        kg = k[:, g * D_HEAD:(g + 1) * D_HEAD]                       # (SEQ, Dh)
        vg = v[:, g * D_HEAD:(g + 1) * D_HEAD]                       # (SEQ, Dh)
        s = lax.dot_general(qg, kg, (((1,), (1,)), ((), ())),
                            preferred_element_type=jnp.float32) * _SCALE  # (64, SEQ)
        m = jnp.max(s, axis=-1, keepdims=True)
        p = jnp.exp(s - m)
        denom = jnp.sum(p, axis=-1, keepdims=True)
        p = p * pl.reciprocal(denom, approx=True)
        group_out.append(
            lax.dot_general(p.astype(jnp.bfloat16), vg, (((1,), (0,)), ((), ())),
                            preferred_element_type=jnp.float32))          # (64, Dh)
    o_slab = jnp.concatenate(group_out, axis=0)                            # (H*SEQ, Dh)
    # Back to lane-dense (SEQ, H*Dh) for the output projection.
    return jnp.concatenate(
        [o_slab[h * SEQ:(h + 1) * SEQ, :] for h in range(N_HEADS)], axis=1)


def _make_kernel(b_blk):
    """Kernel processing b_blk batch elements (rows = b_blk*SEQ) per grid step."""

    def kernel(x_ref,
               rms1_ref, wqkv_ref, bqkv_ref, wo_ref, bo_ref,
               w1_ref, b1_ref, w2_ref, b2_ref,
               rmsf_ref, wh_ref, bh_ref,
               out_ref):
        x = x_ref[...]                                   # (rows, D_MODEL) f32

        for l in range(N_LAYERS):                        # unrolled (N_LAYERS == 2)
            x_norm = _rmsnorm(x, rms1_ref[l])            # f32
            xn_bf = x_norm.astype(jnp.bfloat16)

            # Fused QKV projection; Q slice is a lane-aligned full vreg.
            qkv = _mm(xn_bf, wqkv_ref[l]) + bqkv_ref[l]  # (rows, 192) f32
            q = qkv[:, :Q_OUT].astype(jnp.bfloat16)
            k = qkv[:, Q_OUT:Q_OUT + KV_OUT].astype(jnp.bfloat16)
            v = qkv[:, Q_OUT + KV_OUT:].astype(jnp.bfloat16)

            per_batch = []
            for b in range(b_blk):                       # static sublane slices
                r0 = b * SEQ
                per_batch.append(_attention(q[r0:r0 + SEQ],
                                            k[r0:r0 + SEQ],
                                            v[r0:r0 + SEQ]))
            attn_out = (per_batch[0] if b_blk == 1
                        else jnp.concatenate(per_batch, axis=0))  # (rows, 128)

            x = x + _mm(attn_out.astype(jnp.bfloat16), wo_ref[l]) + bo_ref[l]

            # FFN consumes rms_norm1 output (faithful reference bug).
            h1 = _mm(xn_bf, w1_ref[l]) + b1_ref[l]       # (rows, D_FF) f32
            g1 = h1 * jax.nn.silu(h1)
            x = x + _mm(g1.astype(jnp.bfloat16), w2_ref[l]) + b2_ref[l]

        # Final RMSNorm + vocab head: lane-dense (rows, VOCAB) store.
        xf = _rmsnorm(x, rmsf_ref[...])
        out_ref[...] = _mm(xf.astype(jnp.bfloat16), wh_ref[...]) + bh_ref[...]

    return kernel


# ------------------------------- plain-JAX glue ------------------------------
def _default_batch_block():
    # v7x has 2 TensorCores/chip: keep one batch element per "parallel" grid
    # step so both cores work.  v5e / v6e are single-core, so a batch grid is
    # just a serial loop (~0.35us/step): fold batch into the row dimension.
    try:
        kind = jax.devices()[0].device_kind.lower()
    except Exception:
        kind = ""
    if "v7" in kind or "7x" in kind:
        return 1
    return BATCH


def _rope(x, sin, cos):
    # Embedding columns are pre-permuted (even dims first, then odd) at init,
    # so these are contiguous 64-lane slices, not strided ::2 gathers.
    x_even = x[..., :HALF]
    x_odd = x[..., HALF:]
    sin = sin[None]
    cos = cos[None]
    return jnp.concatenate([x_even * cos - x_odd * sin,
                            x_even * sin + x_odd * cos], axis=-1)


def _cost_estimate():
    tokens = BATCH * SEQ
    matmul_macs = tokens * (
        N_LAYERS * (D_MODEL * QKV_OUT + Q_OUT * D_MODEL + 2 * D_MODEL * D_FF)
        + D_MODEL * VOCAB)
    attn_macs = BATCH * N_LAYERS * N_HEADS * 2 * SEQ * SEQ * D_HEAD
    flops = 2 * (matmul_macs + attn_macs)
    transcendentals = BATCH * N_LAYERS * (N_HEADS * SEQ * SEQ + SEQ * D_FF)
    weight_bytes = 2 * (N_LAYERS * (D_MODEL * QKV_OUT + D_MODEL * D_MODEL
                                    + 2 * D_MODEL * D_FF) + D_MODEL * VOCAB)
    bias_bytes = 4 * (N_LAYERS * (2 * D_MODEL + QKV_OUT + D_MODEL + D_FF)
                      + D_MODEL + VOCAB)
    io_bytes = 4 * tokens * (D_MODEL + VOCAB)
    return pl.CostEstimate(flops=flops, transcendentals=transcendentals,
                           bytes_accessed=weight_bytes + bias_bytes + io_bytes)


def llama_forward(tokens, params, batch_block=None):
    # TODO(synk): decode-time KV-cache path (step is not None) not implemented;
    # this is the prefill (step=None) path of the reference forward.
    if batch_block is None:
        batch_block = _default_batch_block()
    assert BATCH % batch_block == 0
    rows = batch_block * SEQ
    grid = (BATCH // batch_block,)

    x = jnp.take(params["embedding"], tokens, axis=0)    # (B, S, D) — XLA gather
    x = _rope(x, params["rope_sin"], params["rope_cos"])
    x = x.reshape(BATCH * SEQ, D_MODEL)                  # fold batch into rows

    def wfull(shape):
        return pl.BlockSpec(shape, lambda b: (0,) * len(shape))

    out = pl.pallas_call(
        _make_kernel(batch_block),
        out_shape=jax.ShapeDtypeStruct((BATCH * SEQ, VOCAB), jnp.float32),
        grid=grid,
        in_specs=[
            pl.BlockSpec((rows, D_MODEL), lambda b: (b, 0)),   # activations
            wfull((N_LAYERS, 1, D_MODEL)),          # rms1 scales           f32
            wfull((N_LAYERS, D_MODEL, QKV_OUT)),    # fused QKV weight (K,N) bf16
            wfull((N_LAYERS, 1, QKV_OUT)),          # fused QKV bias         f32
            wfull((N_LAYERS, D_MODEL, D_MODEL)),    # out_proj weight (K,N)  bf16
            wfull((N_LAYERS, 1, D_MODEL)),          # out_proj bias          f32
            wfull((N_LAYERS, D_MODEL, D_FF)),       # ffn w1 (K,N)           bf16
            wfull((N_LAYERS, 1, D_FF)),             # ffn b1                 f32
            wfull((N_LAYERS, D_FF, D_MODEL)),       # ffn w2 (K,N)           bf16
            wfull((N_LAYERS, 1, D_MODEL)),          # ffn b2                 f32
            wfull((1, D_MODEL)),                    # final RMSNorm scale    f32
            wfull((D_MODEL, VOCAB)),                # head weight (K,N)      bf16
            wfull((1, VOCAB)),                      # head bias              f32
        ],
        out_specs=pl.BlockSpec((rows, VOCAB), lambda b: (b, 0)),
        compiler_params=pltpu.CompilerParams(dimension_semantics=("parallel",)),
        cost_estimate=_cost_estimate(),
    )(
        x,
        params["rms1"], params["wqkv"], params["bqkv"],
        params["wo"], params["bo"],
        params["w1"], params["b1"], params["w2"], params["b2"],
        params["rms_final"], params["w_head"], params["b_head"],
    )
    return out.reshape(BATCH, SEQ, VOCAB)


# ----------------------------- deterministic init ----------------------------
def _dense_init(key, out_dim, in_dim):
    kw, kb = jax.random.split(key)
    bound = 1.0 / math.sqrt(in_dim)
    w = jax.random.uniform(kw, (out_dim, in_dim), jnp.float32, -bound, bound)
    b = jax.random.uniform(kb, (out_dim,), jnp.float32, -bound, bound)
    return w, b


def init_params(key):
    keys = jax.random.split(key, 2 + N_LAYERS)
    embedding = jax.random.normal(keys[0], (VOCAB, D_MODEL), jnp.float32)
    # Pre-permute embedding columns (even dims first, then odd) so RoPE uses
    # two contiguous slices.  Free at init; equivalent to the reference with
    # relabeled (randomly initialized) embedding columns.
    embedding = jnp.concatenate([embedding[:, 0::2], embedding[:, 1::2]], axis=1)

    theta = 1.0 / (10000.0 ** (jnp.arange(0, D_MODEL, 2, dtype=jnp.float32) / D_MODEL))
    pos = jnp.arange(SEQ, dtype=jnp.float32)[:, None]
    rope_sin = jnp.sin(pos * theta)       # (SEQ, D_MODEL/2)
    rope_cos = jnp.cos(pos * theta)

    wh, bh = _dense_init(keys[1], VOCAB, D_MODEL)

    rms1, wqkv, bqkv, wo, bo, w1, b1, w2, b2 = ([] for _ in range(9))
    for l in range(N_LAYERS):
        lk = jax.random.split(keys[2 + l], 6)
        wq, bq_ = _dense_init(lk[0], N_HEADS * D_HEAD, D_MODEL)
        wk, bk_ = _dense_init(lk[1], N_KV * D_HEAD, D_MODEL)
        wv, bv_ = _dense_init(lk[2], N_KV * D_HEAD, D_MODEL)
        wo_, bo_ = _dense_init(lk[3], D_MODEL, N_HEADS * D_HEAD)
        w1_, b1_ = _dense_init(lk[4], D_FF, D_MODEL)
        w2_, b2_ = _dense_init(lk[5], D_MODEL, D_FF)

        rms1.append(jnp.ones((1, D_MODEL), jnp.float32))
        # Fuse Q/K/V, pre-transpose every weight to (in, out) layout, and store
        # matmul weights in bf16 (native MXU rate, half the VMEM/DMA bytes).
        wqkv.append(jnp.concatenate([wq, wk, wv], axis=0).T.astype(jnp.bfloat16))
        bqkv.append(jnp.concatenate([bq_, bk_, bv_])[None, :])
        wo.append(wo_.T.astype(jnp.bfloat16)); bo.append(bo_[None, :])
        w1.append(w1_.T.astype(jnp.bfloat16)); b1.append(b1_[None, :])
        w2.append(w2_.T.astype(jnp.bfloat16)); b2.append(b2_[None, :])
        # rms_norm2 exists in the reference but its output is never used (bug),
        # so it is not materialized here.

    stack = lambda xs: jnp.stack(xs, axis=0)
    return {
        "embedding": embedding,
        "rope_sin": rope_sin, "rope_cos": rope_cos,
        "rms1": stack(rms1),
        "wqkv": stack(wqkv), "bqkv": stack(bqkv),
        "wo": stack(wo), "bo": stack(bo),
        "w1": stack(w1), "b1": stack(b1),
        "w2": stack(w2), "b2": stack(b2),
        "rms_final": jnp.ones((1, D_MODEL), jnp.float32),
        "w_head": wh.T.astype(jnp.bfloat16),     # (D_MODEL, VOCAB)
        "b_head": bh[None, :],                   # (1, VOCAB)
    }


if __name__ == "__main__":
    key = jax.random.PRNGKey(0)
    pkey, tkey = jax.random.split(key)
    params = init_params(pkey)
    tokens = jax.random.randint(tkey, (BATCH, SEQ), 0, VOCAB, dtype=jnp.int32)

    logits = jax.jit(llama_forward)(tokens, params)
    logits = jax.block_until_ready(logits)

    assert logits.shape == (BATCH, SEQ, VOCAB), logits.shape
    assert bool(jnp.all(jnp.isfinite(logits)))
    print("KERNEL_OK")
</pallas_src>

<mosaic_0001>
module attributes {stable_mosaic.version = 11 : i64} {
  func.func @kernel(%arg0: i32, %arg1: memref<32x128xf32, #tpu.memory_space<vmem>>, %arg2: memref<2x1x128xf32, #tpu.memory_space<vmem>>, %arg3: memref<2x128x192xbf16, #tpu.memory_space<vmem>>, %arg4: memref<2x1x192xf32, #tpu.memory_space<vmem>>, %arg5: memref<2x128x128xbf16, #tpu.memory_space<vmem>>, %arg6: memref<2x1x128xf32, #tpu.memory_space<vmem>>, %arg7: memref<2x128x256xbf16, #tpu.memory_space<vmem>>, %arg8: memref<2x1x256xf32, #tpu.memory_space<vmem>>, %arg9: memref<2x256x128xbf16, #tpu.memory_space<vmem>>, %arg10: memref<2x1x128xf32, #tpu.memory_space<vmem>>, %arg11: memref<1x128xf32, #tpu.memory_space<vmem>>, %arg12: memref<128x512xbf16, #tpu.memory_space<vmem>>, %arg13: memref<1x512xf32, #tpu.memory_space<vmem>>, %arg14: memref<32x512xf32, #tpu.memory_space<vmem>>) attributes {dimension_semantics = [#tpu.dimension_semantics<parallel>], iteration_bounds = array<i64: 1>, scalar_prefetch = 0 : i64, scratch_operands = 0 : i64, tpu.core_type = #tpu.core_type<tc>, window_params = [{transform_indices = @transform_0, window_bounds = array<i64: 32, 128>}, {pipeline_mode = #tpu.pipeline_mode<synchronous>, transform_indices = @transform_1, window_bounds = array<i64: 2, 1, 128>}, {pipeline_mode = #tpu.pipeline_mode<synchronous>, transform_indices = @transform_2, window_bounds = array<i64: 2, 128, 192>}, {pipeline_mode = #tpu.pipeline_mode<synchronous>, transform_indices = @transform_3, window_bounds = array<i64: 2, 1, 192>}, {pipeline_mode = #tpu.pipeline_mode<synchronous>, transform_indices = @transform_4, window_bounds = array<i64: 2, 128, 128>}, {pipeline_mode = #tpu.pipeline_mode<synchronous>, transform_indices = @transform_5, window_bounds = array<i64: 2, 1, 128>}, {pipeline_mode = #tpu.pipeline_mode<synchronous>, transform_indices = @transform_6, window_bounds = array<i64: 2, 128, 256>}, {pipeline_mode = #tpu.pipeline_mode<synchronous>, transform_indices = @transform_7, window_bounds = array<i64: 2, 1, 256>}, {pipeline_mode = #tpu.pipeline_mode<synchronous>, transform_indices = @transform_8, window_bounds = array<i64: 2, 256, 128>}, {pipeline_mode = #tpu.pipeline_mode<synchronous>, transform_indices = @transform_9, window_bounds = array<i64: 2, 1, 128>}, {pipeline_mode = #tpu.pipeline_mode<synchronous>, transform_indices = @transform_10, window_bounds = array<i64: 1, 128>}, {pipeline_mode = #tpu.pipeline_mode<synchronous>, transform_indices = @transform_11, window_bounds = array<i64: 128, 512>}, {pipeline_mode = #tpu.pipeline_mode<synchronous>, transform_indices = @transform_12, window_bounds = array<i64: 1, 512>}, {transform_indices = @transform_13, window_bounds = array<i64: 32, 512>}]} {
    %c0 = arith.constant 0 : index
    %c0_0 = arith.constant 0 : index
    %0 = vector.load %arg1[%c0, %c0_0] : memref<32x128xf32, #tpu.memory_space<vmem>>, vector<32x128xf32>
    %c0_1 = arith.constant 0 : index
    %c0_2 = arith.constant 0 : index
    %c0_3 = arith.constant 0 : index
    %1 = vector.load %arg2[%c0_1, %c0_2, %c0_3] : memref<2x1x128xf32, #tpu.memory_space<vmem>>, vector<1x1x128xf32>
    %2 = vector.shape_cast %1 : vector<1x1x128xf32> to vector<1x128xf32>
    %3 = arith.mulf %0, %0 : vector<32x128xf32>
    %cst = arith.constant dense<0.000000e+00> : vector<32xf32>
    %4 = vector.multi_reduction <add>, %3, %cst [1] : vector<32x128xf32> to vector<32xf32>
    %5 = vector.shape_cast %4 : vector<32xf32> to vector<32x1xf32>
    %cst_4 = arith.constant 1.280000e+02 : f32
    %6 = vector.broadcast %cst_4 : f32 to vector<32x1xf32>
    %7 = arith.divf %5, %6 : vector<32x1xf32>
    %cst_5 = arith.constant 9.99999997E-7 : f32
    %8 = vector.broadcast %cst_5 : f32 to vector<32x1xf32>
    %9 = arith.addf %7, %8 : vector<32x1xf32>
    %10 = math.rsqrt %9 : vector<32x1xf32>
    %11 = vector.broadcast %10 : vector<32x1xf32> to vector<32x128xf32>
    %12 = arith.mulf %0, %11 : vector<32x128xf32>
    %13 = vector.broadcast %2 : vector<1x128xf32> to vector<32x128xf32>
    %14 = arith.mulf %12, %13 : vector<32x128xf32>
    %15 = arith.truncf %14 : vector<32x128xf32> to vector<32x128xbf16>
    %c0_6 = arith.constant 0 : index
    %c0_7 = arith.constant 0 : index
    %c0_8 = arith.constant 0 : index
    %16 = vector.load %arg3[%c0_6, %c0_7, %c0_8] : memref<2x128x192xbf16, #tpu.memory_space<vmem>>, vector<1x128x192xbf16>
    %17 = vector.shape_cast %16 : vector<1x128x192xbf16> to vector<128x192xbf16>
    %cst_9 = arith.constant dense<0.000000e+00> : vector<32x192xf32>
    %18 = tpu.matmul %15, %17, %cst_9 {dimension_numbers = #tpu.dot_dimension_numbers<[1], [0], [0], [1], [0, 0, 1, 1], [], []>} : vector<32x128xbf16>, vector<128x192xbf16>, vector<32x192xf32> -> vector<32x192xf32>
    %c0_10 = arith.constant 0 : index
    %c0_11 = arith.constant 0 : index
    %c0_12 = arith.constant 0 : index
    %19 = vector.load %arg4[%c0_10, %c0_11, %c0_12] : memref<2x1x192xf32, #tpu.memory_space<vmem>>, vector<1x1x192xf32>
    %20 = vector.shape_cast %19 : vector<1x1x192xf32> to vector<1x192xf32>
    %21 = vector.broadcast %20 : vector<1x192xf32> to vector<32x192xf32>
    %22 = arith.addf %18, %21 : vector<32x192xf32>
    %23 = vector.extract_strided_slice %22 {offsets = [0, 0], sizes = [32, 128], strides = [1, 1]} : vector<32x192xf32> to vector<32x128xf32>
    %24 = arith.truncf %23 : vector<32x128xf32> to vector<32x128xbf16>
    %25 = vector.extract_strided_slice %22 {offsets = [0, 128], sizes = [32, 32], strides = [1, 1]} : vector<32x192xf32> to vector<32x32xf32>
    %26 = arith.truncf %25 : vector<32x32xf32> to vector<32x32xbf16>
    %27 = vector.extract_strided_slice %22 {offsets = [0, 160], sizes = [32, 32], strides = [1, 1]} : vector<32x192xf32> to vector<32x32xf32>
    %28 = arith.truncf %27 : vector<32x32xf32> to vector<32x32xbf16>
    %29 = vector.extract_strided_slice %24 {offsets = [0, 0], sizes = [16, 128], strides = [1, 1]} : vector<32x128xbf16> to vector<16x128xbf16>
    %30 = vector.extract_strided_slice %26 {offsets = [0, 0], sizes = [16, 32], strides = [1, 1]} : vector<32x32xbf16> to vector<16x32xbf16>
    %31 = vector.extract_strided_slice %28 {offsets = [0, 0], sizes = [16, 32], strides = [1, 1]} : vector<32x32xbf16> to vector<16x32xbf16>
    %32 = vector.extract_strided_slice %29 {offsets = [0, 0], sizes = [16, 16], strides = [1, 1]} : vector<16x128xbf16> to vector<16x16xbf16>
    %33 = vector.extract_strided_slice %29 {offsets = [0, 16], sizes = [16, 16], strides = [1, 1]} : vector<16x128xbf16> to vector<16x16xbf16>
    %34 = vector.extract_strided_slice %29 {offsets = [0, 32], sizes = [16, 16], strides = [1, 1]} : vector<16x128xbf16> to vector<16x16xbf16>
    %35 = vector.extract_strided_slice %29 {offsets = [0, 48], sizes = [16, 16], strides = [1, 1]} : vector<16x128xbf16> to vector<16x16xbf16>
    %36 = vector.extract_strided_slice %29 {offsets = [0, 64], sizes = [16, 16], strides = [1, 1]} : vector<16x128xbf16> to vector<16x16xbf16>
    %37 = vector.extract_strided_slice %29 {offsets = [0, 80], sizes = [16, 16], strides = [1, 1]} : vector<16x128xbf16> to vector<16x16xbf16>
    %38 = vector.extract_strided_slice %29 {offsets = [0, 96], sizes = [16, 16], strides = [1, 1]} : vector<16x128xbf16> to vector<16x16xbf16>
    %39 = vector.extract_strided_slice %29 {offsets = [0, 112], sizes = [16, 16], strides = [1, 1]} : vector<16x128xbf16> to vector<16x16xbf16>
    %40 = tpu.concatenate %32, %33, %34, %35, %36, %37, %38, %39 in 0 : vector<16x16xbf16>, vector<16x16xbf16>, vector<16x16xbf16>, vector<16x16xbf16>, vector<16x16xbf16>, vector<16x16xbf16>, vector<16x16xbf16>, vector<16x16xbf16> -> vector<128x16xbf16>
    %41 = vector.extract_strided_slice %40 {offsets = [0, 0], sizes = [64, 16], strides = [1, 1]} : vector<128x16xbf16> to vector<64x16xbf16>
    %42 = vector.extract_strided_slice %30 {offsets = [0, 0], sizes = [16, 16], strides = [1, 1]} : vector<16x32xbf16> to vector<16x16xbf16>
    %43 = vector.extract_strided_slice %31 {offsets = [0, 0], sizes = [16, 16], strides = [1, 1]} : vector<16x32xbf16> to vector<16x16xbf16>
    %cst_13 = arith.constant dense<0.000000e+00> : vector<64x16xf32>
    %44 = tpu.matmul %41, %42, %cst_13 {dimension_numbers = #tpu.dot_dimension_numbers<[1], [1], [0], [0], [0, 0, 1, 0], [], []>} : vector<64x16xbf16>, vector<16x16xbf16>, vector<64x16xf32> -> vector<64x16xf32>
    %cst_14 = arith.constant 2.500000e-01 : f32
    %45 = vector.broadcast %cst_14 : f32 to vector<64x16xf32>
    %46 = arith.mulf %44, %45 : vector<64x16xf32>
    %cst_15 = arith.constant dense<0xFF800000> : vector<64xf32>
    %47 = vector.multi_reduction <maximumf>, %46, %cst_15 [1] : vector<64x16xf32> to vector<64xf32>
    %48 = vector.shape_cast %47 : vector<64xf32> to vector<64x1xf32>
    %49 = vector.broadcast %48 : vector<64x1xf32> to vector<64x16xf32>
    %50 = arith.subf %46, %49 : vector<64x16xf32>
    %51 = math.exp %50 : vector<64x16xf32>
    %cst_16 = arith.constant dense<0.000000e+00> : vector<64xf32>
    %52 = vector.multi_reduction <add>, %51, %cst_16 [1] : vector<64x16xf32> to vector<64xf32>
    %53 = vector.shape_cast %52 : vector<64xf32> to vector<64x1xf32>
    %54 = tpu.reciprocal %53 {approx = true} : vector<64x1xf32> -> vector<64x1xf32>
    %55 = vector.broadcast %54 : vector<64x1xf32> to vector<64x16xf32>
    %56 = arith.mulf %51, %55 : vector<64x16xf32>
    %57 = arith.truncf %56 : vector<64x16xf32> to vector<64x16xbf16>
    %cst_17 = arith.constant dense<0.000000e+00> : vector<64x16xf32>
    %58 = tpu.matmul %57, %43, %cst_17 {dimension_numbers = #tpu.dot_dimension_numbers<[1], [0], [0], [1], [0, 0, 1, 1], [], []>} : vector<64x16xbf16>, vector<16x16xbf16>, vector<64x16xf32> -> vector<64x16xf32>
    %59 = vector.extract_strided_slice %40 {offsets = [64, 0], sizes = [64, 16], strides = [1, 1]} : vector<128x16xbf16> to vector<64x16xbf16>
    %60 = vector.extract_strided_slice %30 {offsets = [0, 16], sizes = [16, 16], strides = [1, 1]} : vector<16x32xbf16> to vector<16x16xbf16>
    %61 = vector.extract_strided_slice %31 {offsets = [0, 16], sizes = [16, 16], strides = [1, 1]} : vector<16x32xbf16> to vector<16x16xbf16>
    %cst_18 = arith.constant dense<0.000000e+00> : vector<64x16xf32>
    %62 = tpu.matmul %59, %60, %cst_18 {dimension_numbers = #tpu.dot_dimension_numbers<[1], [1], [0], [0], [0, 0, 1, 0], [], []>} : vector<64x16xbf16>, vector<16x16xbf16>, vector<64x16xf32> -> vector<64x16xf32>
    %cst_19 = arith.constant 2.500000e-01 : f32
    %63 = vector.broadcast %cst_19 : f32 to vector<64x16xf32>
    %64 = arith.mulf %62, %63 : vector<64x16xf32>
    %cst_20 = arith.constant dense<0xFF800000> : vector<64xf32>
    %65 = vector.multi_reduction <maximumf>, %64, %cst_20 [1] : vector<64x16xf32> to vector<64xf32>
    %66 = vector.shape_cast %65 : vector<64xf32> to vector<64x1xf32>
    %67 = vector.broadcast %66 : vector<64x1xf32> to vector<64x16xf32>
    %68 = arith.subf %64, %67 : vector<64x16xf32>
    %69 = math.exp %68 : vector<64x16xf32>
    %cst_21 = arith.constant dense<0.000000e+00> : vector<64xf32>
    %70 = vector.multi_reduction <add>, %69, %cst_21 [1] : vector<64x16xf32> to vector<64xf32>
    %71 = vector.shape_cast %70 : vector<64xf32> to vector<64x1xf32>
    %72 = tpu.reciprocal %71 {approx = true} : vector<64x1xf32> -> vector<64x1xf32>
    %73 = vector.broadcast %72 : vector<64x1xf32> to vector<64x16xf32>
    %74 = arith.mulf %69, %73 : vector<64x16xf32>
    %75 = arith.truncf %74 : vector<64x16xf32> to vector<64x16xbf16>
    %cst_22 = arith.constant dense<0.000000e+00> : vector<64x16xf32>
    %76 = tpu.matmul %75, %61, %cst_22 {dimension_numbers = #tpu.dot_dimension_numbers<[1], [0], [0], [1], [0, 0, 1, 1], [], []>} : vector<64x16xbf16>, vector<16x16xbf16>, vector<64x16xf32> -> vector<64x16xf32>
    %77 = tpu.concatenate %58, %76 in 0 : vector<64x16xf32>, vector<64x16xf32> -> vector<128x16xf32>
    %78 = vector.extract_strided_slice %77 {offsets = [0, 0], sizes = [16, 16], strides = [1, 1]} : vector<128x16xf32> to vector<16x16xf32>
    %79 = vector.extract_strided_slice %77 {offsets = [16, 0], sizes = [16, 16], strides = [1, 1]} : vector<128x16xf32> to vector<16x16xf32>
    %80 = vector.extract_strided_slice %77 {offsets = [32, 0], sizes = [16, 16], strides = [1, 1]} : vector<128x16xf32> to vector<16x16xf32>
    %81 = vector.extract_strided_slice %77 {offsets = [48, 0], sizes = [16, 16], strides = [1, 1]} : vector<128x16xf32> to vector<16x16xf32>
    %82 = vector.extract_strided_slice %77 {offsets = [64, 0], sizes = [16, 16], strides = [1, 1]} : vector<128x16xf32> to vector<16x16xf32>
    %83 = vector.extract_strided_slice %77 {offsets = [80, 0], sizes = [16, 16], strides = [1, 1]} : vector<128x16xf32> to vector<16x16xf32>
    %84 = vector.extract_strided_slice %77 {offsets = [96, 0], sizes = [16, 16], strides = [1, 1]} : vector<128x16xf32> to vector<16x16xf32>
    %85 = vector.extract_strided_slice %77 {offsets = [112, 0], sizes = [16, 16], strides = [1, 1]} : vector<128x16xf32> to vector<16x16xf32>
    %86 = tpu.concatenate %78, %79, %80, %81, %82, %83, %84, %85 in 1 : vector<16x16xf32>, vector<16x16xf32>, vector<16x16xf32>, vector<16x16xf32>, vector<16x16xf32>, vector<16x16xf32>, vector<16x16xf32>, vector<16x16xf32> -> vector<16x128xf32>
    %87 = vector.extract_strided_slice %24 {offsets = [16, 0], sizes = [16, 128], strides = [1, 1]} : vector<32x128xbf16> to vector<16x128xbf16>
    %88 = vector.extract_strided_slice %26 {offsets = [16, 0], sizes = [16, 32], strides = [1, 1]} : vector<32x32xbf16> to vector<16x32xbf16>
    %89 = vector.extract_strided_slice %28 {offsets = [16, 0], sizes = [16, 32], strides = [1, 1]} : vector<32x32xbf16> to vector<16x32xbf16>
    %90 = vector.extract_strided_slice %87 {offsets = [0, 0], sizes = [16, 16], strides = [1, 1]} : vector<16x128xbf16> to vector<16x16xbf16>
    %91 = vector.extract_strided_slice %87 {offsets = [0, 16], sizes = [16, 16], strides = [1, 1]} : vector<16x128xbf16> to vector<16x16xbf16>
    %92 = vector.extract_strided_slice %87 {offsets = [0, 32], sizes = [16, 16], strides = [1, 1]} : vector<16x128xbf16> to vector<16x16xbf16>
    %93 = vector.extract_strided_slice %87 {offsets = [0, 48], sizes = [16, 16], strides = [1, 1]} : vector<16x128xbf16> to vector<16x16xbf16>
    %94 = vector.extract_strided_slice %87 {offsets = [0, 64], sizes = [16, 16], strides = [1, 1]} : vector<16x128xbf16> to vector<16x16xbf16>
    %95 = vector.extract_strided_slice %87 {offsets = [0, 80], sizes = [16, 16], strides = [1, 1]} : vector<16x128xbf16> to vector<16x16xbf16>
    %96 = vector.extract_strided_slice %87 {offsets = [0, 96], sizes = [16, 16], strides = [1, 1]} : vector<16x128xbf16> to vector<16x16xbf16>
    %97 = vector.extract_strided_slice %87 {offsets = [0, 112], sizes = [16, 16], strides = [1, 1]} : vector<16x128xbf16> to vector<16x16xbf16>
    %98 = tpu.concatenate %90, %91, %92, %93, %94, %95, %96, %97 in 0 : vector<16x16xbf16>, vector<16x16xbf16>, vector<16x16xbf16>, vector<16x16xbf16>, vector<16x16xbf16>, vector<16x16xbf16>, vector<16x16xbf16>, vector<16x16xbf16> -> vector<128x16xbf16>
    %99 = vector.extract_strided_slice %98 {offsets = [0, 0], sizes = [64, 16], strides = [1, 1]} : vector<128x16xbf16> to vector<64x16xbf16>
    %100 = vector.extract_strided_slice %88 {offsets = [0, 0], sizes = [16, 16], strides = [1, 1]} : vector<16x32xbf16> to vector<16x16xbf16>
    %101 = vector.extract_strided_slice %89 {offsets = [0, 0], sizes = [16, 16], strides = [1, 1]} : vector<16x32xbf16> to vector<16x16xbf16>
    %cst_23 = arith.constant dense<0.000000e+00> : vector<64x16xf32>
    %102 = tpu.matmul %99, %100, %cst_23 {dimension_numbers = #tpu.dot_dimension_numbers<[1], [1], [0], [0], [0, 0, 1, 0], [], []>} : vector<64x16xbf16>, vector<16x16xbf16>, vector<64x16xf32> -> vector<64x16xf32>
    %cst_24 = arith.constant 2.500000e-01 : f32
    %103 = vector.broadcast %cst_24 : f32 to vector<64x16xf32>
    %104 = arith.mulf %102, %103 : vector<64x16xf32>
    %cst_25 = arith.constant dense<0xFF800000> : vector<64xf32>
    %105 = vector.multi_reduction <maximumf>, %104, %cst_25 [1] : vector<64x16xf32> to vector<64xf32>
    %106 = vector.shape_cast %105 : vector<64xf32> to vector<64x1xf32>
    %107 = vector.broadcast %106 : vector<64x1xf32> to vector<64x16xf32>
    %108 = arith.subf %104, %107 : vector<64x16xf32>
    %109 = math.exp %108 : vector<64x16xf32>
    %cst_26 = arith.constant dense<0.000000e+00> : vector<64xf32>
    %110 = vector.multi_reduction <add>, %109, %cst_26 [1] : vector<64x16xf32> to vector<64xf32>
    %111 = vector.shape_cast %110 : vector<64xf32> to vector<64x1xf32>
    %112 = tpu.reciprocal %111 {approx = true} : vector<64x1xf32> -> vector<64x1xf32>
    %113 = vector.broadcast %112 : vector<64x1xf32> to vector<64x16xf32>
    %114 = arith.mulf %109, %113 : vector<64x16xf32>
    %115 = arith.truncf %114 : vector<64x16xf32> to vector<64x16xbf16>
    %cst_27 = arith.constant dense<0.000000e+00> : vector<64x16xf32>
    %116 = tpu.matmul %115, %101, %cst_27 {dimension_numbers = #tpu.dot_dimension_numbers<[1], [0], [0], [1], [0, 0, 1, 1], [], []>} : vector<64x16xbf16>, vector<16x16xbf16>, vector<64x16xf32> -> vector<64x16xf32>
    %117 = vector.extract_strided_slice %98 {offsets = [64, 0], sizes = [64, 16], strides = [1, 1]} : vector<128x16xbf16> to vector<64x16xbf16>
    %118 = vector.extract_strided_slice %88 {offsets = [0, 16], sizes = [16, 16], strides = [1, 1]} : vector<16x32xbf16> to vector<16x16xbf16>
    %119 = vector.extract_strided_slice %89 {offsets = [0, 16], sizes = [16, 16], strides = [1, 1]} : vector<16x32xbf16> to vector<16x16xbf16>
    %cst_28 = arith.constant dense<0.000000e+00> : vector<64x16xf32>
    %120 = tpu.matmul %117, %118, %cst_28 {dimension_numbers = #tpu.dot_dimension_numbers<[1], [1], [0], [0], [0, 0, 1, 0], [], []>} : vector<64x16xbf16>, vector<16x16xbf16>, vector<64x16xf32> -> vector<64x16xf32>
    %cst_29 = arith.constant 2.500000e-01 : f32
    %121 = vector.broadcast %cst_29 : f32 to vector<64x16xf32>
    %122 = arith.mulf %120, %121 : vector<64x16xf32>
    %cst_30 = arith.constant dense<0xFF800000> : vector<64xf32>
    %123 = vector.multi_reduction <maximumf>, %122, %cst_30 [1] : vector<64x16xf32> to vector<64xf32>
    %124 = vector.shape_cast %123 : vector<64xf32> to vector<64x1xf32>
    %125 = vector.broadcast %124 : vector<64x1xf32> to vector<64x16xf32>
    %126 = arith.subf %122, %125 : vector<64x16xf32>
    %127 = math.exp %126 : vector<64x16xf32>
    %cst_31 = arith.constant dense<0.000000e+00> : vector<64xf32>
    %128 = vector.multi_reduction <add>, %127, %cst_31 [1] : vector<64x16xf32> to vector<64xf32>
    %129 = vector.shape_cast %128 : vector<64xf32> to vector<64x1xf32>
    %130 = tpu.reciprocal %129 {approx = true} : vector<64x1xf32> -> vector<64x1xf32>
    %131 = vector.broadcast %130 : vector<64x1xf32> to vector<64x16xf32>
    %132 = arith.mulf %127, %131 : vector<64x16xf32>
    %133 = arith.truncf %132 : vector<64x16xf32> to vector<64x16xbf16>
    %cst_32 = arith.constant dense<0.000000e+00> : vector<64x16xf32>
    %134 = tpu.matmul %133, %119, %cst_32 {dimension_numbers = #tpu.dot_dimension_numbers<[1], [0], [0], [1], [0, 0, 1, 1], [], []>} : vector<64x16xbf16>, vector<16x16xbf16>, vector<64x16xf32> -> vector<64x16xf32>
    %135 = tpu.concatenate %116, %134 in 0 : vector<64x16xf32>, vector<64x16xf32> -> vector<128x16xf32>
    %136 = vector.extract_strided_slice %135 {offsets = [0, 0], sizes = [16, 16], strides = [1, 1]} : vector<128x16xf32> to vector<16x16xf32>
    %137 = vector.extract_strided_slice %135 {offsets = [16, 0], sizes = [16, 16], strides = [1, 1]} : vector<128x16xf32> to vector<16x16xf32>
    %138 = vector.extract_strided_slice %135 {offsets = [32, 0], sizes = [16, 16], strides = [1, 1]} : vector<128x16xf32> to vector<16x16xf32>
    %139 = vector.extract_strided_slice %135 {offsets = [48, 0], sizes = [16, 16], strides = [1, 1]} : vector<128x16xf32> to vector<16x16xf32>
    %140 = vector.extract_strided_slice %135 {offsets = [64, 0], sizes = [16, 16], strides = [1, 1]} : vector<128x16xf32> to vector<16x16xf32>
    %141 = vector.extract_strided_slice %135 {offsets = [80, 0], sizes = [16, 16], strides = [1, 1]} : vector<128x16xf32> to vector<16x16xf32>
    %142 = vector.extract_strided_slice %135 {offsets = [96, 0], sizes = [16, 16], strides = [1, 1]} : vector<128x16xf32> to vector<16x16xf32>
    %143 = vector.extract_strided_slice %135 {offsets = [112, 0], sizes = [16, 16], strides = [1, 1]} : vector<128x16xf32> to vector<16x16xf32>
    %144 = tpu.concatenate %136, %137, %138, %139, %140, %141, %142, %143 in 1 : vector<16x16xf32>, vector<16x16xf32>, vector<16x16xf32>, vector<16x16xf32>, vector<16x16xf32>, vector<16x16xf32>, vector<16x16xf32>, vector<16x16xf32> -> vector<16x128xf32>
    %145 = tpu.concatenate %86, %144 in 0 : vector<16x128xf32>, vector<16x128xf32> -> vector<32x128xf32>
    %146 = arith.truncf %145 : vector<32x128xf32> to vector<32x128xbf16>
    %c0_33 = arith.constant 0 : index
    %c0_34 = arith.constant 0 : index
    %c0_35 = arith.constant 0 : index
    %147 = vector.load %arg5[%c0_33, %c0_34, %c0_35] : memref<2x128x128xbf16, #tpu.memory_space<vmem>>, vector<1x128x128xbf16>
    %148 = vector.shape_cast %147 : vector<1x128x128xbf16> to vector<128x128xbf16>
    %cst_36 = arith.constant dense<0.000000e+00> : vector<32x128xf32>
    %149 = tpu.matmul %146, %148, %cst_36 {dimension_numbers = #tpu.dot_dimension_numbers<[1], [0], [0], [1], [0, 0, 1, 1], [], []>} : vector<32x128xbf16>, vector<128x128xbf16>, vector<32x128xf32> -> vector<32x128xf32>
    %150 = arith.addf %0, %149 : vector<32x128xf32>
    %c0_37 = arith.constant 0 : index
    %c0_38 = arith.constant 0 : index
    %c0_39 = arith.constant 0 : index
    %151 = vector.load %arg6[%c0_37, %c0_38, %c0_39] : memref<2x1x128xf32, #tpu.memory_space<vmem>>, vector<1x1x128xf32>
    %152 = vector.shape_cast %151 : vector<1x1x128xf32> to vector<1x128xf32>
    %153 = vector.broadcast %152 : vector<1x128xf32> to vector<32x128xf32>
    %154 = arith.addf %150, %153 : vector<32x128xf32>
    %c0_40 = arith.constant 0 : index
    %c0_41 = arith.constant 0 : index
    %c0_42 = arith.constant 0 : index
    %155 = vector.load %arg7[%c0_40, %c0_41, %c0_42] : memref<2x128x256xbf16, #tpu.memory_space<vmem>>, vector<1x128x256xbf16>
    %156 = vector.shape_cast %155 : vector<1x128x256xbf16> to vector<128x256xbf16>
    %cst_43 = arith.constant dense<0.000000e+00> : vector<32x256xf32>
    %157 = tpu.matmul %15, %156, %cst_43 {dimension_numbers = #tpu.dot_dimension_numbers<[1], [0], [0], [1], [0, 0, 1, 1], [], []>} : vector<32x128xbf16>, vector<128x256xbf16>, vector<32x256xf32> -> vector<32x256xf32>
    %c0_44 = arith.constant 0 : index
    %c0_45 = arith.constant 0 : index
    %c0_46 = arith.constant 0 : index
    %158 = vector.load %arg8[%c0_44, %c0_45, %c0_46] : memref<2x1x256xf32, #tpu.memory_space<vmem>>, vector<1x1x256xf32>
    %159 = vector.shape_cast %158 : vector<1x1x256xf32> to vector<1x256xf32>
    %160 = vector.broadcast %159 : vector<1x256xf32> to vector<32x256xf32>
    %161 = arith.addf %157, %160 : vector<32x256xf32>
    %162 = arith.negf %161 : vector<32x256xf32>
    %163 = math.exp %162 : vector<32x256xf32>
    %cst_47 = arith.constant 1.000000e+00 : f32
    %164 = vector.broadcast %cst_47 : f32 to vector<32x256xf32>
    %165 = arith.addf %164, %163 : vector<32x256xf32>
    %166 = arith.divf %164, %165 : vector<32x256xf32>
    %167 = arith.mulf %161, %166 : vector<32x256xf32>
    %168 = arith.mulf %161, %167 : vector<32x256xf32>
    %169 = arith.truncf %168 : vector<32x256xf32> to vector<32x256xbf16>
    %c0_48 = arith.constant 0 : index
    %c0_49 = arith.constant 0 : index
    %c0_50 = arith.constant 0 : index
    %170 = vector.load %arg9[%c0_48, %c0_49, %c0_50] : memref<2x256x128xbf16, #tpu.memory_space<vmem>>, vector<1x256x128xbf16>
    %171 = vector.shape_cast %170 : vector<1x256x128xbf16> to vector<256x128xbf16>
    %cst_51 = arith.constant dense<0.000000e+00> : vector<32x128xf32>
    %172 = tpu.matmul %169, %171, %cst_51 {dimension_numbers = #tpu.dot_dimension_numbers<[1], [0], [0], [1], [0, 0, 1, 1], [], []>} : vector<32x256xbf16>, vector<256x128xbf16>, vector<32x128xf32> -> vector<32x128xf32>
    %173 = arith.addf %154, %172 : vector<32x128xf32>
    %c0_52 = arith.constant 0 : index
    %c0_53 = arith.constant 0 : index
    %c0_54 = arith.constant 0 : index
    %174 = vector.load %arg10[%c0_52, %c0_53, %c0_54] : memref<2x1x128xf32, #tpu.memory_space<vmem>>, vector<1x1x128xf32>
    %175 = vector.shape_cast %174 : vector<1x1x128xf32> to vector<1x128xf32>
    %176 = vector.broadcast %175 : vector<1x128xf32> to vector<32x128xf32>
    %177 = arith.addf %173, %176 : vector<32x128xf32>
    %c1 = arith.constant 1 : index
    %c0_55 = arith.constant 0 : index
    %c0_56 = arith.constant 0 : index
    %178 = vector.load %arg2[%c1, %c0_55, %c0_56] : memref<2x1x128xf32, #tpu.memory_space<vmem>>, vector<1x1x128xf32>
    %179 = vector.shape_cast %178 : vector<1x1x128xf32> to vector<1x128xf32>
    %180 = arith.mulf %177, %177 : vector<32x128xf32>
    %cst_57 = arith.constant dense<0.000000e+00> : vector<32xf32>
    %181 = vector.multi_reduction <add>, %180, %cst_57 [1] : vector<32x128xf32> to vector<32xf32>
    %182 = vector.shape_cast %181 : vector<32xf32> to vector<32x1xf32>
    %cst_58 = arith.constant 1.280000e+02 : f32
    %183 = vector.broadcast %cst_58 : f32 to vector<32x1xf32>
    %184 = arith.divf %182, %183 : vector<32x1xf32>
    %cst_59 = arith.constant 9.99999997E-7 : f32
    %185 = vector.broadcast %cst_59 : f32 to vector<32x1xf32>
    %186 = arith.addf %184, %185 : vector<32x1xf32>
    %187 = math.rsqrt %186 : vector<32x1xf32>
    %188 = vector.broadcast %187 : vector<32x1xf32> to vector<32x128xf32>
    %189 = arith.mulf %177, %188 : vector<32x128xf32>
    %190 = vector.broadcast %179 : vector<1x128xf32> to vector<32x128xf32>
    %191 = arith.mulf %189, %190 : vector<32x128xf32>
    %192 = arith.truncf %191 : vector<32x128xf32> to vector<32x128xbf16>
    %c1_60 = arith.constant 1 : index
    %c0_61 = arith.constant 0 : index
    %c0_62 = arith.constant 0 : index
    %193 = vector.load %arg3[%c1_60, %c0_61, %c0_62] : memref<2x128x192xbf16, #tpu.memory_space<vmem>>, vector<1x128x192xbf16>
    %194 = vector.shape_cast %193 : vector<1x128x192xbf16> to vector<128x192xbf16>
    %cst_63 = arith.constant dense<0.000000e+00> : vector<32x192xf32>
    %195 = tpu.matmul %192, %194, %cst_63 {dimension_numbers = #tpu.dot_dimension_numbers<[1], [0], [0], [1], [0, 0, 1, 1], [], []>} : vector<32x128xbf16>, vector<128x192xbf16>, vector<32x192xf32> -> vector<32x192xf32>
    %c1_64 = arith.constant 1 : index
    %c0_65 = arith.constant 0 : index
    %c0_66 = arith.constant 0 : index
    %196 = vector.load %arg4[%c1_64, %c0_65, %c0_66] : memref<2x1x192xf32, #tpu.memory_space<vmem>>, vector<1x1x192xf32>
    %197 = vector.shape_cast %196 : vector<1x1x192xf32> to vector<1x192xf32>
    %198 = vector.broadcast %197 : vector<1x192xf32> to vector<32x192xf32>
    %199 = arith.addf %195, %198 : vector<32x192xf32>
    %200 = vector.extract_strided_slice %199 {offsets = [0, 0], sizes = [32, 128], strides = [1, 1]} : vector<32x192xf32> to vector<32x128xf32>
    %201 = arith.truncf %200 : vector<32x128xf32> to vector<32x128xbf16>
    %202 = vector.extract_strided_slice %199 {offsets = [0, 128], sizes = [32, 32], strides = [1, 1]} : vector<32x192xf32> to vector<32x32xf32>
    %203 = arith.truncf %202 : vector<32x32xf32> to vector<32x32xbf16>
    %204 = vector.extract_strided_slice %199 {offsets = [0, 160], sizes = [32, 32], strides = [1, 1]} : vector<32x192xf32> to vector<32x32xf32>
    %205 = arith.truncf %204 : vector<32x32xf32> to vector<32x32xbf16>
    %206 = vector.extract_strided_slice %201 {offsets = [0, 0], sizes = [16, 128], strides = [1, 1]} : vector<32x128xbf16> to vector<16x128xbf16>
    %207 = vector.extract_strided_slice %203 {offsets = [0, 0], sizes = [16, 32], strides = [1, 1]} : vector<32x32xbf16> to vector<16x32xbf16>
    %208 = vector.extract_strided_slice %205 {offsets = [0, 0], sizes = [16, 32], strides = [1, 1]} : vector<32x32xbf16> to vector<16x32xbf16>
    %209 = vector.extract_strided_slice %206 {offsets = [0, 0], sizes = [16, 16], strides = [1, 1]} : vector<16x128xbf16> to vector<16x16xbf16>
    %210 = vector.extract_strided_slice %206 {offsets = [0, 16], sizes = [16, 16], strides = [1, 1]} : vector<16x128xbf16> to vector<16x16xbf16>
    %211 = vector.extract_strided_slice %206 {offsets = [0, 32], sizes = [16, 16], strides = [1, 1]} : vector<16x128xbf16> to vector<16x16xbf16>
    %212 = vector.extract_strided_slice %206 {offsets = [0, 48], sizes = [16, 16], strides = [1, 1]} : vector<16x128xbf16> to vector<16x16xbf16>
    %213 = vector.extract_strided_slice %206 {offsets = [0, 64], sizes = [16, 16], strides = [1, 1]} : vector<16x128xbf16> to vector<16x16xbf16>
    %214 = vector.extract_strided_slice %206 {offsets = [0, 80], sizes = [16, 16], strides = [1, 1]} : vector<16x128xbf16> to vector<16x16xbf16>
    %215 = vector.extract_strided_slice %206 {offsets = [0, 96], sizes = [16, 16], strides = [1, 1]} : vector<16x128xbf16> to vector<16x16xbf16>
    %216 = vector.extract_strided_slice %206 {offsets = [0, 112], sizes = [16, 16], strides = [1, 1]} : vector<16x128xbf16> to vector<16x16xbf16>
    %217 = tpu.concatenate %209, %210, %211, %212, %213, %214, %215, %216 in 0 : vector<16x16xbf16>, vector<16x16xbf16>, vector<16x16xbf16>, vector<16x16xbf16>, vector<16x16xbf16>, vector<16x16xbf16>, vector<16x16xbf16>, vector<16x16xbf16> -> vector<128x16xbf16>
    %218 = vector.extract_strided_slice %217 {offsets = [0, 0], sizes = [64, 16], strides = [1, 1]} : vector<128x16xbf16> to vector<64x16xbf16>
    %219 = vector.extract_strided_slice %207 {offsets = [0, 0], sizes = [16, 16], strides = [1, 1]} : vector<16x32xbf16> to vector<16x16xbf16>
    %220 = vector.extract_strided_slice %208 {offsets = [0, 0], sizes = [16, 16], strides = [1, 1]} : vector<16x32xbf16> to vector<16x16xbf16>
    %cst_67 = arith.constant dense<0.000000e+00> : vector<64x16xf32>
    %221 = tpu.matmul %218, %219, %cst_67 {dimension_numbers = #tpu.dot_dimension_numbers<[1], [1], [0], [0], [0, 0, 1, 0], [], []>} : vector<64x16xbf16>, vector<16x16xbf16>, vector<64x16xf32> -> vector<64x16xf32>
    %cst_68 = arith.constant 2.500000e-01 : f32
    %222 = vector.broadcast %cst_68 : f32 to vector<64x16xf32>
    %223 = arith.mulf %221, %222 : vector<64x16xf32>
    %cst_69 = arith.constant dense<0xFF800000> : vector<64xf32>
    %224 = vector.multi_reduction <maximumf>, %223, %cst_69 [1] : vector<64x16xf32> to vector<64xf32>
    %225 = vector.shape_cast %224 : vector<64xf32> to vector<64x1xf32>
    %226 = vector.broadcast %225 : vector<64x1xf32> to vector<64x16xf32>
    %227 = arith.subf %223, %226 : vector<64x16xf32>
    %228 = math.exp %227 : vector<64x16xf32>
    %cst_70 = arith.constant dense<0.000000e+00> : vector<64xf32>
    %229 = vector.multi_reduction <add>, %228, %cst_70 [1] : vector<64x16xf32> to vector<64xf32>
    %230 = vector.shape_cast %229 : vector<64xf32> to vector<64x1xf32>
    %231 = tpu.reciprocal %230 {approx = true} : vector<64x1xf32> -> vector<64x1xf32>
    %232 = vector.broadcast %231 : vector<64x1xf32> to vector<64x16xf32>
    %233 = arith.mulf %228, %232 : vector<64x16xf32>
    %234 = arith.truncf %233 : vector<64x16xf32> to vector<64x16xbf16>
    %cst_71 = arith.constant dense<0.000000e+00> : vector<64x16xf32>
    %235 = tpu.matmul %234, %220, %cst_71 {dimension_numbers = #tpu.dot_dimension_numbers<[1], [0], [0], [1], [0, 0, 1, 1], [], []>} : vector<64x16xbf16>, vector<16x16xbf16>, vector<64x16xf32> -> vector<64x16xf32>
    %236 = vector.extract_strided_slice %217 {offsets = [64, 0], sizes = [64, 16], strides = [1, 1]} : vector<128x16xbf16> to vector<64x16xbf16>
    %237 = vector.extract_strided_slice %207 {offsets = [0, 16], sizes = [16, 16], strides = [1, 1]} : vector<16x32xbf16> to vector<16x16xbf16>
    %238 = vector.extract_strided_slice %208 {offsets = [0, 16], sizes = [16, 16], strides = [1, 1]} : vector<16x32xbf16> to vector<16x16xbf16>
    %cst_72 = arith.constant dense<0.000000e+00> : vector<64x16xf32>
    %239 = tpu.matmul %236, %237, %cst_72 {dimension_numbers = #tpu.dot_dimension_numbers<[1], [1], [0], [0], [0, 0, 1, 0], [], []>} : vector<64x16xbf16>, vector<16x16xbf16>, vector<64x16xf32> -> vector<64x16xf32>
    %cst_73 = arith.constant 2.500000e-01 : f32
    %240 = vector.broadcast %cst_73 : f32 to vector<64x16xf32>
    %241 = arith.mulf %239, %240 : vector<64x16xf32>
    %cst_74 = arith.constant dense<0xFF800000> : vector<64xf32>
    %242 = vector.multi_reduction <maximumf>, %241, %cst_74 [1] : vector<64x16xf32> to vector<64xf32>
    %243 = vector.shape_cast %242 : vector<64xf32> to vector<64x1xf32>
    %244 = vector.broadcast %243 : vector<64x1xf32> to vector<64x16xf32>
    %245 = arith.subf %241, %244 : vector<64x16xf32>
    %246 = math.exp %245 : vector<64x16xf32>
    %cst_75 = arith.constant dense<0.000000e+00> : vector<64xf32>
    %247 = vector.multi_reduction <add>, %246, %cst_75 [1] : vector<64x16xf32> to vector<64xf32>
    %248 = vector.shape_cast %247 : vector<64xf32> to vector<64x1xf32>
    %249 = tpu.reciprocal %248 {approx = true} : vector<64x1xf32> -> vector<64x1xf32>
    %250 = vector.broadcast %249 : vector<64x1xf32> to vector<64x16xf32>
    %251 = arith.mulf %246, %250 : vector<64x16xf32>
    %252 = arith.truncf %251 : vector<64x16xf32> to vector<64x16xbf16>
    %cst_76 = arith.constant dense<0.000000e+00> : vector<64x16xf32>
    %253 = tpu.matmul %252, %238, %cst_76 {dimension_numbers = #tpu.dot_dimension_numbers<[1], [0], [0], [1], [0, 0, 1, 1], [], []>} : vector<64x16xbf16>, vector<16x16xbf16>, vector<64x16xf32> -> vector<64x16xf32>
    %254 = tpu.concatenate %235, %253 in 0 : vector<64x16xf32>, vector<64x16xf32> -> vector<128x16xf32>
    %255 = vector.extract_strided_slice %254 {offsets = [0, 0], sizes = [16, 16], strides = [1, 1]} : vector<128x16xf32> to vector<16x16xf32>
    %256 = vector.extract_strided_slice %254 {offsets = [16, 0], sizes = [16, 16], strides = [1, 1]} : vector<128x16xf32> to vector<16x16xf32>
    %257 = vector.extract_strided_slice %254 {offsets = [32, 0], sizes = [16, 16], strides = [1, 1]} : vector<128x16xf32> to vector<16x16xf32>
    %258 = vector.extract_strided_slice %254 {offsets = [48, 0], sizes = [16, 16], strides = [1, 1]} : vector<128x16xf32> to vector<16x16xf32>
    %259 = vector.extract_strided_slice %254 {offsets = [64, 0], sizes = [16, 16], strides = [1, 1]} : vector<128x16xf32> to vector<16x16xf32>
    %260 = vector.extract_strided_slice %254 {offsets = [80, 0], sizes = [16, 16], strides = [1, 1]} : vector<128x16xf32> to vector<16x16xf32>
    %261 = vector.extract_strided_slice %254 {offsets = [96, 0], sizes = [16, 16], strides = [1, 1]} : vector<128x16xf32> to vector<16x16xf32>
    %262 = vector.extract_strided_slice %254 {offsets = [112, 0], sizes = [16, 16], strides = [1, 1]} : vector<128x16xf32> to vector<16x16xf32>
    %263 = tpu.concatenate %255, %256, %257, %258, %259, %260, %261, %262 in 1 : vector<16x16xf32>, vector<16x16xf32>, vector<16x16xf32>, vector<16x16xf32>, vector<16x16xf32>, vector<16x16xf32>, vector<16x16xf32>, vector<16x16xf32> -> vector<16x128xf32>
    %264 = vector.extract_strided_slice %201 {offsets = [16, 0], sizes = [16, 128], strides = [1, 1]} : vector<32x128xbf16> to vector<16x128xbf16>
    %265 = vector.extract_strided_slice %203 {offsets = [16, 0], sizes = [16, 32], strides = [1, 1]} : vector<32x32xbf16> to vector<16x32xbf16>
    %266 = vector.extract_strided_slice %205 {offsets = [16, 0], sizes = [16, 32], strides = [1, 1]} : vector<32x32xbf16> to vector<16x32xbf16>
    %267 = vector.extract_strided_slice %264 {offsets = [0, 0], sizes = [16, 16], strides = [1, 1]} : vector<16x128xbf16> to vector<16x16xbf16>
    %268 = vector.extract_strided_slice %264 {offsets = [0, 16], sizes = [16, 16], strides = [1, 1]} : vector<16x128xbf16> to vector<16x16xbf16>
    %269 = vector.extract_strided_slice %264 {offsets = [0, 32], sizes = [16, 16], strides = [1, 1]} : vector<16x128xbf16> to vector<16x16xbf16>
    %270 = vector.extract_strided_slice %264 {offsets = [0, 48], sizes = [16, 16], strides = [1, 1]} : vector<16x128xbf16> to vector<16x16xbf16>
    %271 = vector.extract_strided_slice %264 {offsets = [0, 64], sizes = [16, 16], strides = [1, 1]} : vector<16x128xbf16> to vector<16x16xbf16>
    %272 = vector.extract_strided_slice %264 {offsets = [0, 80], sizes = [16, 16], strides = [1, 1]} : vector<16x128xbf16> to vector<16x16xbf16>
    %273 = vector.extract_strided_slice %264 {offsets = [0, 96], sizes = [16, 16], strides = [1, 1]} : vector<16x128xbf16> to vector<16x16xbf16>
    %274 = vector.extract_strided_slice %264 {offsets = [0, 112], sizes = [16, 16], strides = [1, 1]} : vector<16x128xbf16> to vector<16x16xbf16>
    %275 = tpu.concatenate %267, %268, %269, %270, %271, %272, %273, %274 in 0 : vector<16x16xbf16>, vector<16x16xbf16>, vector<16x16xbf16>, vector<16x16xbf16>, vector<16x16xbf16>, vector<16x16xbf16>, vector<16x16xbf16>, vector<16x16xbf16> -> vector<128x16xbf16>
    %276 = vector.extract_strided_slice %275 {offsets = [0, 0], sizes = [64, 16], strides = [1, 1]} : vector<128x16xbf16> to vector<64x16xbf16>
    %277 = vector.extract_strided_slice %265 {offsets = [0, 0], sizes = [16, 16], strides = [1, 1]} : vector<16x32xbf16> to vector<16x16xbf16>
    %278 = vector.extract_strided_slice %266 {offsets = [0, 0], sizes = [16, 16], strides = [1, 1]} : vector<16x32xbf16> to vector<16x16xbf16>
    %cst_77 = arith.constant dense<0.000000e+00> : vector<64x16xf32>
    %279 = tpu.matmul %276, %277, %cst_77 {dimension_numbers = #tpu.dot_dimension_numbers<[1], [1], [0], [0], [0, 0, 1, 0], [], []>} : vector<64x16xbf16>, vector<16x16xbf16>, vector<64x16xf32> -> vector<64x16xf32>
    %cst_78 = arith.constant 2.500000e-01 : f32
    %280 = vector.broadcast %cst_78 : f32 to vector<64x16xf32>
    %281 = arith.mulf %279, %280 : vector<64x16xf32>
    %cst_79 = arith.constant dense<0xFF800000> : vector<64xf32>
    %282 = vector.multi_reduction <maximumf>, %281, %cst_79 [1] : vector<64x16xf32> to vector<64xf32>
    %283 = vector.shape_cast %282 : vector<64xf32> to vector<64x1xf32>
    %284 = vector.broadcast %283 : vector<64x1xf32> to vector<64x16xf32>
    %285 = arith.subf %281, %284 : vector<64x16xf32>
    %286 = math.exp %285 : vector<64x16xf32>
    %cst_80 = arith.constant dense<0.000000e+00> : vector<64xf32>
    %287 = vector.multi_reduction <add>, %286, %cst_80 [1] : vector<64x16xf32> to vector<64xf32>
    %288 = vector.shape_cast %287 : vector<64xf32> to vector<64x1xf32>
    %289 = tpu.reciprocal %288 {approx = true} : vector<64x1xf32> -> vector<64x1xf32>
    %290 = vector.broadcast %289 : vector<64x1xf32> to vector<64x16xf32>
    %291 = arith.mulf %286, %290 : vector<64x16xf32>
    %292 = arith.truncf %291 : vector<64x16xf32> to vector<64x16xbf16>
    %cst_81 = arith.constant dense<0.000000e+00> : vector<64x16xf32>
    %293 = tpu.matmul %292, %278, %cst_81 {dimension_numbers = #tpu.dot_dimension_numbers<[1], [0], [0], [1], [0, 0, 1, 1], [], []>} : vector<64x16xbf16>, vector<16x16xbf16>, vector<64x16xf32> -> vector<64x16xf32>
    %294 = vector.extract_strided_slice %275 {offsets = [64, 0], sizes = [64, 16], strides = [1, 1]} : vector<128x16xbf16> to vector<64x16xbf16>
    %295 = vector.extract_strided_slice %265 {offsets = [0, 16], sizes = [16, 16], strides = [1, 1]} : vector<16x32xbf16> to vector<16x16xbf16>
    %296 = vector.extract_strided_slice %266 {offsets = [0, 16], sizes = [16, 16], strides = [1, 1]} : vector<16x32xbf16> to vector<16x16xbf16>
    %cst_82 = arith.constant dense<0.000000e+00> : vector<64x16xf32>
    %297 = tpu.matmul %294, %295, %cst_82 {dimension_numbers = #tpu.dot_dimension_numbers<[1], [1], [0], [0], [0, 0, 1, 0], [], []>} : vector<64x16xbf16>, vector<16x16xbf16>, vector<64x16xf32> -> vector<64x16xf32>
    %cst_83 = arith.constant 2.500000e-01 : f32
    %298 = vector.broadcast %cst_83 : f32 to vector<64x16xf32>
    %299 = arith.mulf %297, %298 : vector<64x16xf32>
    %cst_84 = arith.constant dense<0xFF800000> : vector<64xf32>
    %300 = vector.multi_reduction <maximumf>, %299, %cst_84 [1] : vector<64x16xf32> to vector<64xf32>
    %301 = vector.shape_cast %300 : vector<64xf32> to vector<64x1xf32>
    %302 = vector.broadcast %301 : vector<64x1xf32> to vector<64x16xf32>
    %303 = arith.subf %299, %302 : vector<64x16xf32>
    %304 = math.exp %303 : vector<64x16xf32>
    %cst_85 = arith.constant dense<0.000000e+00> : vector<64xf32>
    %305 = vector.multi_reduction <add>, %304, %cst_85 [1] : vector<64x16xf32> to vector<64xf32>
    %306 = vector.shape_cast %305 : vector<64xf32> to vector<64x1xf32>
    %307 = tpu.reciprocal %306 {approx = true} : vector<64x1xf32> -> vector<64x1xf32>
    %308 = vector.broadcast %307 : vector<64x1xf32> to vector<64x16xf32>
    %309 = arith.mulf %304, %308 : vector<64x16xf32>
    %310 = arith.truncf %309 : vector<64x16xf32> to vector<64x16xbf16>
    %cst_86 = arith.constant dense<0.000000e+00> : vector<64x16xf32>
    %311 = tpu.matmul %310, %296, %cst_86 {dimension_numbers = #tpu.dot_dimension_numbers<[1], [0], [0], [1], [0, 0, 1, 1], [], []>} : vector<64x16xbf16>, vector<16x16xbf16>, vector<64x16xf32> -> vector<64x16xf32>
    %312 = tpu.concatenate %293, %311 in 0 : vector<64x16xf32>, vector<64x16xf32> -> vector<128x16xf32>
    %313 = vector.extract_strided_slice %312 {offsets = [0, 0], sizes = [16, 16], strides = [1, 1]} : vector<128x16xf32> to vector<16x16xf32>
    %314 = vector.extract_strided_slice %312 {offsets = [16, 0], sizes = [16, 16], strides = [1, 1]} : vector<128x16xf32> to vector<16x16xf32>
    %315 = vector.extract_strided_slice %312 {offsets = [32, 0], sizes = [16, 16], strides = [1, 1]} : vector<128x16xf32> to vector<16x16xf32>
    %316 = vector.extract_strided_slice %312 {offsets = [48, 0], sizes = [16, 16], strides = [1, 1]} : vector<128x16xf32> to vector<16x16xf32>
    %317 = vector.extract_strided_slice %312 {offsets = [64, 0], sizes = [16, 16], strides = [1, 1]} : vector<128x16xf32> to vector<16x16xf32>
    %318 = vector.extract_strided_slice %312 {offsets = [80, 0], sizes = [16, 16], strides = [1, 1]} : vector<128x16xf32> to vector<16x16xf32>
    %319 = vector.extract_strided_slice %312 {offsets = [96, 0], sizes = [16, 16], strides = [1, 1]} : vector<128x16xf32> to vector<16x16xf32>
    %320 = vector.extract_strided_slice %312 {offsets = [112, 0], sizes = [16, 16], strides = [1, 1]} : vector<128x16xf32> to vector<16x16xf32>
    %321 = tpu.concatenate %313, %314, %315, %316, %317, %318, %319, %320 in 1 : vector<16x16xf32>, vector<16x16xf32>, vector<16x16xf32>, vector<16x16xf32>, vector<16x16xf32>, vector<16x16xf32>, vector<16x16xf32>, vector<16x16xf32> -> vector<16x128xf32>
    %322 = tpu.concatenate %263, %321 in 0 : vector<16x128xf32>, vector<16x128xf32> -> vector<32x128xf32>
    %323 = arith.truncf %322 : vector<32x128xf32> to vector<32x128xbf16>
    %c1_87 = arith.constant 1 : index
    %c0_88 = arith.constant 0 : index
    %c0_89 = arith.constant 0 : index
    %324 = vector.load %arg5[%c1_87, %c0_88, %c0_89] : memref<2x128x128xbf16, #tpu.memory_space<vmem>>, vector<1x128x128xbf16>
    %325 = vector.shape_cast %324 : vector<1x128x128xbf16> to vector<128x128xbf16>
    %cst_90 = arith.constant dense<0.000000e+00> : vector<32x128xf32>
    %326 = tpu.matmul %323, %325, %cst_90 {dimension_numbers = #tpu.dot_dimension_numbers<[1], [0], [0], [1], [0, 0, 1, 1], [], []>} : vector<32x128xbf16>, vector<128x128xbf16>, vector<32x128xf32> -> vector<32x128xf32>
    %327 = arith.addf %177, %326 : vector<32x128xf32>
    %c1_91 = arith.constant 1 : index
    %c0_92 = arith.constant 0 : index
    %c0_93 = arith.constant 0 : index
    %328 = vector.load %arg6[%c1_91, %c0_92, %c0_93] : memref<2x1x128xf32, #tpu.memory_space<vmem>>, vector<1x1x128xf32>
    %329 = vector.shape_cast %328 : vector<1x1x128xf32> to vector<1x128xf32>
    %330 = vector.broadcast %329 : vector<1x128xf32> to vector<32x128xf32>
    %331 = arith.addf %327, %330 : vector<32x128xf32>
    %c1_94 = arith.constant 1 : index
    %c0_95 = arith.constant 0 : index
    %c0_96 = arith.constant 0 : index
    %332 = vector.load %arg7[%c1_94, %c0_95, %c0_96] : memref<2x128x256xbf16, #tpu.memory_space<vmem>>, vector<1x128x256xbf16>
    %333 = vector.shape_cast %332 : vector<1x128x256xbf16> to vector<128x256xbf16>
    %cst_97 = arith.constant dense<0.000000e+00> : vector<32x256xf32>
    %334 = tpu.matmul %192, %333, %cst_97 {dimension_numbers = #tpu.dot_dimension_numbers<[1], [0], [0], [1], [0, 0, 1, 1], [], []>} : vector<32x128xbf16>, vector<128x256xbf16>, vector<32x256xf32> -> vector<32x256xf32>
    %c1_98 = arith.constant 1 : index
    %c0_99 = arith.constant 0 : index
    %c0_100 = arith.constant 0 : index
    %335 = vector.load %arg8[%c1_98, %c0_99, %c0_100] : memref<2x1x256xf32, #tpu.memory_space<vmem>>, vector<1x1x256xf32>
    %336 = vector.shape_cast %335 : vector<1x1x256xf32> to vector<1x256xf32>
    %337 = vector.broadcast %336 : vector<1x256xf32> to vector<32x256xf32>
    %338 = arith.addf %334, %337 : vector<32x256xf32>
    %339 = arith.negf %338 : vector<32x256xf32>
    %340 = math.exp %339 : vector<32x256xf32>
    %cst_101 = arith.constant 1.000000e+00 : f32
    %341 = vector.broadcast %cst_101 : f32 to vector<32x256xf32>
    %342 = arith.addf %341, %340 : vector<32x256xf32>
    %343 = arith.divf %341, %342 : vector<32x256xf32>
    %344 = arith.mulf %338, %343 : vector<32x256xf32>
    %345 = arith.mulf %338, %344 : vector<32x256xf32>
    %346 = arith.truncf %345 : vector<32x256xf32> to vector<32x256xbf16>
    %c1_102 = arith.constant 1 : index
    %c0_103 = arith.constant 0 : index
    %c0_104 = arith.constant 0 : index
    %347 = vector.load %arg9[%c1_102, %c0_103, %c0_104] : memref<2x256x128xbf16, #tpu.memory_space<vmem>>, vector<1x256x128xbf16>
    %348 = vector.shape_cast %347 : vector<1x256x128xbf16> to vector<256x128xbf16>
    %cst_105 = arith.constant dense<0.000000e+00> : vector<32x128xf32>
    %349 = tpu.matmul %346, %348, %cst_105 {dimension_numbers = #tpu.dot_dimension_numbers<[1], [0], [0], [1], [0, 0, 1, 1], [], []>} : vector<32x256xbf16>, vector<256x128xbf16>, vector<32x128xf32> -> vector<32x128xf32>
    %350 = arith.addf %331, %349 : vector<32x128xf32>
    %c1_106 = arith.constant 1 : index
    %c0_107 = arith.constant 0 : index
    %c0_108 = arith.constant 0 : index
    %351 = vector.load %arg10[%c1_106, %c0_107, %c0_108] : memref<2x1x128xf32, #tpu.memory_space<vmem>>, vector<1x1x128xf32>
    %352 = vector.shape_cast %351 : vector<1x1x128xf32> to vector<1x128xf32>
    %353 = vector.broadcast %352 : vector<1x128xf32> to vector<32x128xf32>
    %354 = arith.addf %350, %353 : vector<32x128xf32>
    %c0_109 = arith.constant 0 : index
    %c0_110 = arith.constant 0 : index
    %355 = vector.load %arg11[%c0_109, %c0_110] : memref<1x128xf32, #tpu.memory_space<vmem>>, vector<1x128xf32>
    %356 = arith.mulf %354, %354 : vector<32x128xf32>
    %cst_111 = arith.constant dense<0.000000e+00> : vector<32xf32>
    %357 = vector.multi_reduction <add>, %356, %cst_111 [1] : vector<32x128xf32> to vector<32xf32>
    %358 = vector.shape_cast %357 : vector<32xf32> to vector<32x1xf32>
    %cst_112 = arith.constant 1.280000e+02 : f32
    %359 = vector.broadcast %cst_112 : f32 to vector<32x1xf32>
    %360 = arith.divf %358, %359 : vector<32x1xf32>
    %cst_113 = arith.constant 9.99999997E-7 : f32
    %361 = vector.broadcast %cst_113 : f32 to vector<32x1xf32>
    %362 = arith.addf %360, %361 : vector<32x1xf32>
    %363 = math.rsqrt %362 : vector<32x1xf32>
    %364 = vector.broadcast %363 : vector<32x1xf32> to vector<32x128xf32>
    %365 = arith.mulf %354, %364 : vector<32x128xf32>
    %366 = vector.broadcast %355 : vector<1x128xf32> to vector<32x128xf32>
    %367 = arith.mulf %365, %366 : vector<32x128xf32>
    %368 = arith.truncf %367 : vector<32x128xf32> to vector<32x128xbf16>
    %c0_114 = arith.constant 0 : index
    %c0_115 = arith.constant 0 : index
    %369 = vector.load %arg12[%c0_114, %c0_115] : memref<128x512xbf16, #tpu.memory_space<vmem>>, vector<128x512xbf16>
    %cst_116 = arith.constant dense<0.000000e+00> : vector<32x512xf32>
    %370 = tpu.matmul %368, %369, %cst_116 {dimension_numbers = #tpu.dot_dimension_numbers<[1], [0], [0], [1], [0, 0, 1, 1], [], []>} : vector<32x128xbf16>, vector<128x512xbf16>, vector<32x512xf32> -> vector<32x512xf32>
    %c0_117 = arith.constant 0 : index
    %c0_118 = arith.constant 0 : index
    %371 = vector.load %arg13[%c0_117, %c0_118] : memref<1x512xf32, #tpu.memory_space<vmem>>, vector<1x512xf32>
    %372 = vector.broadcast %371 : vector<1x512xf32> to vector<32x512xf32>
    %373 = arith.addf %370, %372 : vector<32x512xf32>
    %c0_119 = arith.constant 0 : index
    %c0_120 = arith.constant 0 : index
    %374 = vector.load %arg14[%c0_119, %c0_120] : memref<32x512xf32, #tpu.memory_space<vmem>>, vector<32x512xf32>
    tpu.vector_store %arg14[%c0_119, %c0_120], %373 {strides = array<i32>} : memref<32x512xf32, #tpu.memory_space<vmem>>, vector<32x512xf32>,
    return
  }
  func.func @transform_0(%arg0: i32) -> (i32, i32) {
    %c0_i32 = arith.constant 0 : i32
    %c0_i32_0 = arith.constant 0 : i32
    return %arg0, %c0_i32 : i32, i32
  }
  func.func @transform_1(%arg0: i32) -> (i32, i32, i32) {
    %c0_i32 = arith.constant 0 : i32
    %c0_i32_0 = arith.constant 0 : i32
    %c0_i32_1 = arith.constant 0 : i32
    %c0_i32_2 = arith.constant 0 : i32
    return %c0_i32, %c0_i32_0, %c0_i32_1 : i32, i32, i32
  }
  func.func @transform_2(%arg0: i32) -> (i32, i32, i32) {
    %c0_i32 = arith.constant 0 : i32
    %c0_i32_0 = arith.constant 0 : i32
    %c0_i32_1 = arith.constant 0 : i32
    %c0_i32_2 = arith.constant 0 : i32
    return %c0_i32, %c0_i32_0, %c0_i32_1 : i32, i32, i32
  }
  func.func @transform_3(%arg0: i32) -> (i32, i32, i32) {
    %c0_i32 = arith.constant 0 : i32
    %c0_i32_0 = arith.constant 0 : i32
    %c0_i32_1 = arith.constant 0 : i32
    %c0_i32_2 = arith.constant 0 : i32
    return %c0_i32, %c0_i32_0, %c0_i32_1 : i32, i32, i32
  }
  func.func @transform_4(%arg0: i32) -> (i32, i32, i32) {
    %c0_i32 = arith.constant 0 : i32
    %c0_i32_0 = arith.constant 0 : i32
    %c0_i32_1 = arith.constant 0 : i32
    %c0_i32_2 = arith.constant 0 : i32
    return %c0_i32, %c0_i32_0, %c0_i32_1 : i32, i32, i32
  }
  func.func @transform_5(%arg0: i32) -> (i32, i32, i32) {
    %c0_i32 = arith.constant 0 : i32
    %c0_i32_0 = arith.constant 0 : i32
    %c0_i32_1 = arith.constant 0 : i32
    %c0_i32_2 = arith.constant 0 : i32
    return %c0_i32, %c0_i32_0, %c0_i32_1 : i32, i32, i32
  }
  func.func @transform_6(%arg0: i32) -> (i32, i32, i32) {
    %c0_i32 = arith.constant 0 : i32
    %c0_i32_0 = arith.constant 0 : i32
    %c0_i32_1 = arith.constant 0 : i32
    %c0_i32_2 = arith.constant 0 : i32
    return %c0_i32, %c0_i32_0, %c0_i32_1 : i32, i32, i32
  }
  func.func @transform_7(%arg0: i32) -> (i32, i32, i32) {
    %c0_i32 = arith.constant 0 : i32
    %c0_i32_0 = arith.constant 0 : i32
    %c0_i32_1 = arith.constant 0 : i32
    %c0_i32_2 = arith.constant 0 : i32
    return %c0_i32, %c0_i32_0, %c0_i32_1 : i32, i32, i32
  }
  func.func @transform_8(%arg0: i32) -> (i32, i32, i32) {
    %c0_i32 = arith.constant 0 : i32
    %c0_i32_0 = arith.constant 0 : i32
    %c0_i32_1 = arith.constant 0 : i32
    %c0_i32_2 = arith.constant 0 : i32
    return %c0_i32, %c0_i32_0, %c0_i32_1 : i32, i32, i32
  }
  func.func @transform_9(%arg0: i32) -> (i32, i32, i32) {
    %c0_i32 = arith.constant 0 : i32
    %c0_i32_0 = arith.constant 0 : i32
    %c0_i32_1 = arith.constant 0 : i32
    %c0_i32_2 = arith.constant 0 : i32
    return %c0_i32, %c0_i32_0, %c0_i32_1 : i32, i32, i32
  }
  func.func @transform_10(%arg0: i32) -> (i32, i32) {
    %c0_i32 = arith.constant 0 : i32
    %c0_i32_0 = arith.constant 0 : i32
    %c0_i32_1 = arith.constant 0 : i32
    return %c0_i32, %c0_i32_0 : i32, i32
  }
  func.func @transform_11(%arg0: i32) -> (i32, i32) {
    %c0_i32 = arith.constant 0 : i32
    %c0_i32_0 = arith.constant 0 : i32
    %c0_i32_1 = arith.constant 0 : i32
    return %c0_i32, %c0_i32_0 : i32, i32
  }
  func.func @transform_12(%arg0: i32) -> (i32, i32) {
    %c0_i32 = arith.constant 0 : i32
    %c0_i32_0 = arith.constant 0 : i32
    %c0_i32_1 = arith.constant 0 : i32
    return %c0_i32, %c0_i32_0 : i32, i32
  }
  func.func @transform_13(%arg0: i32) -> (i32, i32) {
    %c0_i32 = arith.constant 0 : i32
    %c0_i32_0 = arith.constant 0 : i32
    return %arg0, %c0_i32 : i32, i32
  }
}

</mosaic_0001>

<llo_original>
// kernel: llama_forward.1
$region0: #{llama_forward.1}
  #allocation0 [shape = 'u32[]', space=smem, size = 0x4, offset = 0x4, fixed_abs, tag = 'smem constant byte address 0x4 - core index']
  #allocation1 [shape = 'u32[72,128]{1,0:T(1,128)}', space=vmem, size = 0x9000, scoped, tag = 'internal scratch']
  %s0 = inlined_call_operand.vmem [shape: f32[32,128], index: 0, kind: input, shape index: {}]
  %s1 = inlined_call_operand.vmem [shape: f32[2,1,128], index: 1, kind: input, shape index: {}]
  %s2 = inlined_call_operand.vmem [shape: bf16[2,128,192], index: 2, kind: input, shape index: {}]
  %s3 = inlined_call_operand.vmem [shape: f32[2,1,192], index: 3, kind: input, shape index: {}]
  %s4 = inlined_call_operand.hbm [shape: bf16[2,128,128], index: 4, kind: input, shape index: {}]
  %s5 = inlined_call_operand.vmem [shape: f32[2,1,128], index: 5, kind: input, shape index: {}]
  %s6 = inlined_call_operand.vmem [shape: bf16[2,128,256], index: 6, kind: input, shape index: {}]
  %s7 = inlined_call_operand.vmem [shape: f32[2,1,256], index: 7, kind: input, shape index: {}]
  %s8 = inlined_call_operand.vmem [shape: bf16[2,256,128], index: 8, kind: input, shape index: {}]
  %s9 = inlined_call_operand.vmem [shape: f32[2,1,128], index: 9, kind: input, shape index: {}]
  %s10 = inlined_call_operand.vmem [shape: f32[1,128], index: 10, kind: input, shape index: {}]
  %s11 = inlined_call_operand.vmem [shape: bf16[128,512], index: 11, kind: input, shape index: {}]
  %s12 = inlined_call_operand.vmem [shape: f32[1,512], index: 12, kind: input, shape index: {}]
  %s13 = inlined_call_operand.hbm [shape: f32[32,512], index: 13, kind: output, shape index: {}]
  %s14 = sld [smem:[#allocation0]]
  $region66: #{llama_forward.1} parent=0
    _
  %s16 = ssub.s32 1, %s14
  %s17 = scalar_select 0, %s16, %s14
  $region1: #{llama_forward.1} parent=0
    #allocation2 [shape = 'u8[65536]{0}', space=vmem, size = 0x10000, scoped, tag = 'input window, operand 4, single buffered']
    #allocation3 [shape = 's32[1]{0}', space=sflag, size = 0x4, scoped, tag = 'scoped memory for llama_forward.1']
    #allocation4 [shape = 's32[1]{0}', space=sflag, size = 0x4, scoped, tag = 'scoped memory for llama_forward.1']
    #allocation5 [shape = 'u8[65536]{0}', space=vmem, size = 0x10000, scoped, tag = 'output window, operand 0, single buffered']
    %18 = vsyncpa [#allocation3], 0
    %19 = vsyncpa [#allocation4], 0
    // Predicated region
    $region2: #{llama_forward.1} parent=1 // pred_check
      _
    $region3: #{llama_forward.1} parent=1 // pred_check_branch
      %21 = sbr.rel (0) target = $region5
    $region4: #{llama_forward.1} parent=1 // pred_region
      _
    $region5: #{llama_forward.1} parent=1 // pred_fallthru
      _
    // Predicated region
    $region6: #{llama_forward.1} parent=1 // pred_check
      _
    $region7: #{llama_forward.1} parent=1 // pred_check_branch
      %23 = sbr.rel (0) target = $region9
    $region8: #{llama_forward.1} parent=1 // pred_region
      _
    $region9: #{llama_forward.1} parent=1 // pred_fallthru
      _
    // Predicated region
    $region10: #{llama_forward.1} parent=1 // pred_check
      _
    $region11: #{llama_forward.1} parent=1 // pred_check_branch
      %25 = sbr.rel (0) target = $region13
    $region12: #{llama_forward.1} parent=1 // pred_region
      _
    $region13: #{llama_forward.1} parent=1 // pred_fallthru
      _
    // Predicated region
    $region14: #{llama_forward.1} parent=1 // pred_check
      _
    $region15: #{llama_forward.1} parent=1 // pred_check_branch
      %27 = sbr.rel (0) target = $region17
    $region16: #{llama_forward.1} parent=1 // pred_region
      _
    $region17: #{llama_forward.1} parent=1 // pred_fallthru
      _
    // Predicated region
    $region18: #{llama_forward.1} parent=1 // pred_check
      _
    $region19: #{llama_forward.1} parent=1 // pred_check_branch
      %29 = sbr.rel (0) target = $region21
    $region20: #{llama_forward.1} parent=1 // pred_region
      %31 = vsyncadd [#allocation3], 0
      %s32 = sshll.u32 %s4, 4
      %s33 = int_to_ptr.hbm [resolvable:$true] %s32
      %s34 = sshll.u32 [#allocation2], 4
      %s35 = int_to_ptr.vmem [resolvable:$true] %s34
      %40 = dma.hbm_to_vmem [thread:$0]  %s33, 2048, %s35, [#allocation3], 64, 64, 4
    $region21: #{llama_forward.1} parent=1 // pred_fallthru
      _
    // Predicated region
    $region22: #{llama_forward.1} parent=1 // pred_check
      _
    $region23: #{llama_forward.1} parent=1 // pred_check_branch
      %42 = sbr.rel (0) target = $region25
    $region24: #{llama_forward.1} parent=1 // pred_region
      _
    $region25: #{llama_forward.1} parent=1 // pred_fallthru
      _
    // Predicated region
    $region26: #{llama_forward.1} parent=1 // pred_check
      _
    $region27: #{llama_forward.1} parent=1 // pred_check_branch
      %44 = sbr.rel (0) target = $region29
    $region28: #{llama_forward.1} parent=1 // pred_region
      _
    $region29: #{llama_forward.1} parent=1 // pred_fallthru
      _
    // Predicated region
    $region30: #{llama_forward.1} parent=1 // pred_check
      _
    $region31: #{llama_forward.1} parent=1 // pred_check_branch
      %46 = sbr.rel (0) target = $region33
    $region32: #{llama_forward.1} parent=1 // pred_region
      _
    $region33: #{llama_forward.1} parent=1 // pred_fallthru
      _
    // Predicated region
    $region34: #{llama_forward.1} parent=1 // pred_check
      _
    $region35: #{llama_forward.1} parent=1 // pred_check_branch
      %48 = sbr.rel (0) target = $region37
    $region36: #{llama_forward.1} parent=1 // pred_region
      _
    $region37: #{llama_forward.1} parent=1 // pred_fallthru
      _
    // Predicated region
    $region38: #{llama_forward.1} parent=1 // pred_check
      _
    $region39: #{llama_forward.1} parent=1 // pred_check_branch
      %50 = sbr.rel (0) target = $region41
    $region40: #{llama_forward.1} parent=1 // pred_region
      _
    $region41: #{llama_forward.1} parent=1 // pred_fallthru
      _
    // Predicated region
    $region42: #{llama_forward.1} parent=1 // pred_check
      _
    $region43: #{llama_forward.1} parent=1 // pred_check_branch
      %52 = sbr.rel (0) target = $region45
    $region44: #{llama_forward.1} parent=1 // pred_region
      _
    $region45: #{llama_forward.1} parent=1 // pred_fallthru
      _
    // Predicated region
    $region46: #{llama_forward.1} parent=1 // pred_check
      _
    $region47: #{llama_forward.1} parent=1 // pred_check_branch
      %54 = sbr.rel (0) target = $region49
    $region48: #{llama_forward.1} parent=1 // pred_region
      _
    $region49: #{llama_forward.1} parent=1 // pred_fallthru
      _
    // Predicated region
    $region50: #{llama_forward.1} parent=1 // pred_check
      _
    $region51: #{llama_forward.1} parent=1 // pred_check_branch
      %56 = sbr.rel (0) target = $region53
    $region52: #{llama_forward.1} parent=1 // pred_region
      _
    $region53: #{llama_forward.1} parent=1 // pred_fallthru
      _
    // Predicated region
    $region54: #{llama_forward.1} parent=1 // pred_check
      _
    $region55: #{llama_forward.1} parent=1 // pred_check_branch
      %58 = sbr.rel (0) target = $region57
    $region56: #{llama_forward.1} parent=1 // pred_region
      %60 = dma.done [#allocation3], 2048
    $region57: #{llama_forward.1} parent=1 // pred_fallthru
      _
    %v62 = vld [vmem:[%s0] sm:$0xff]
    %v63 = vld [vmem:[%s0 + $0x8] sm:$0xff]
    %v64 = vld [vmem:[%s0 + $0x10] sm:$0xff]
    %v65 = vld [vmem:[%s0 + $0x18] sm:$0xff]
    %v66 = vld [vmem:[%s1] sm:$0x1]
    %v67 = vmul.f32 %v62, %v62
    %v68 = vmul.f32 %v63, %v63
    %v69 = vmul.f32 %v64, %v64
    %v70 = vmul.f32 %v65, %v65
    %71 = vadd.xlane.f32.xlu0 %v67
    %v72 = vpop.xlane.xlu0 %71
    %73 = vadd.xlane.f32.xlu0 %v68
    %v74 = vpop.xlane.xlu0 %73
    %75 = vadd.xlane.f32.xlu0 %v69
    %v76 = vpop.xlane.xlu0 %75
    %77 = vadd.xlane.f32.xlu0 %v70
    %v78 = vpop.xlane.xlu0 %77
    %v79 = vrcp.pop 128.0
    %v80 = vmul.f32 128.0, %v79
    %v81 = vsub.f32 1.0, %v80
    %v82 = vmul.f32 %v79, %v81
    %v83 = vadd.f32 %v79, %v82
    %vm84 = vweird.f32 %v79
    %v85 = vsel %vm84, %v79, %v83
    %v86 = vmul.f32 %v72, %v85
    %v87 = vmul.f32 %v74, %v85
    %v88 = vmul.f32 %v76, %v85
    %v89 = vmul.f32 %v78, %v85
    %v90 = vadd.f32 %v86, 1e-06
    %v91 = vadd.f32 %v87, 1e-06
    %v92 = vadd.f32 %v88, 1e-06
    %v93 = vadd.f32 %v89, 1e-06
    %v94 = vrsqrt.pop %v90
    %v95 = vmul.f32 %v94, %v90
    %v96 = vmul.f32 %v95, %v94
    %v97 = vmul.f32 0.5, %v96
    %v98 = vsub.f32 1.5, %v97
    %v99 = vmul.f32 %v94, %v98
    %vm100 = vweird.f32 %v90
    %vm101 = vweird.f32 %v94
    %vm102 = vmor %vm100, %vm101
    %v103 = vsel %vm102, %v94, %v99
    %v104 = vrsqrt.pop %v91
    %v105 = vmul.f32 %v104, %v91
    %v106 = vmul.f32 %v105, %v104
    %v107 = vmul.f32 0.5, %v106
    %v108 = vsub.f32 1.5, %v107
    %v109 = vmul.f32 %v104, %v108
    %vm110 = vweird.f32 %v91
    %vm111 = vweird.f32 %v104
    %vm112 = vmor %vm110, %vm111
    %v113 = vsel %vm112, %v104, %v109
    %v114 = vrsqrt.pop %v92
    %v115 = vmul.f32 %v114, %v92
    %v116 = vmul.f32 %v115, %v114
    %v117 = vmul.f32 0.5, %v116
    %v118 = vsub.f32 1.5, %v117
    %v119 = vmul.f32 %v114, %v118
    %vm120 = vweird.f32 %v92
    %vm121 = vweird.f32 %v114
    %vm122 = vmor %vm120, %vm121
    %v123 = vsel %vm122, %v114, %v119
    %v124 = vrsqrt.pop %v93
    %v125 = vmul.f32 %v124, %v93
    %v126 = vmul.f32 %v125, %v124
    %v127 = vmul.f32 0.5, %v126
    %v128 = vsub.f32 1.5, %v127
    %v129 = vmul.f32 %v124, %v128
    %vm130 = vweird.f32 %v93
    %vm131 = vweird.f32 %v124
    %vm132 = vmor %vm130, %vm131
    %v133 = vsel %vm132, %v124, %v129
    %v134 = vmul.f32 %v62, %v103
    %v135 = vmul.f32 %v63, %v113
    %v136 = vmul.f32 %v64, %v123
    %v137 = vmul.f32 %v65, %v133
    %v139 = vperm.slane %v66, 0
    %v141 = vmul.f32 %v134, %v139
    %v142 = vmul.f32 %v135, %v139
    %v143 = vmul.f32 %v136, %v139
    %v144 = vmul.f32 %v137, %v139
    %v145 = vpack.c.bf16 %v142, %v141
    %v146 = vpack.c.bf16 %v144, %v143
    %v147 = vld [vmem:[%s2] sm:$0xff]
    %v148 = vld [vmem:[%s2 + $0x8] sm:$0xff]
    %v149 = vld [vmem:[%s2 + $0x10] sm:$0xff]
    %v150 = vld [vmem:[%s2 + $0x18] sm:$0xff]
    %v151 = vld [vmem:[%s2 + $0x20] sm:$0xff]
    %v152 = vld [vmem:[%s2 + $0x28] sm:$0xff]
    %v153 = vld [vmem:[%s2 + $0x30] sm:$0xff]
    %v154 = vld [vmem:[%s2 + $0x38] sm:$0xff]
    %v155 = vld [vmem:[%s2 + $0x40] sm:$0xff]
    %v156 = vld [vmem:[%s2 + $0x48] sm:$0xff]
    %v157 = vld [vmem:[%s2 + $0x50] sm:$0xff]
    %v158 = vld [vmem:[%s2 + $0x58] sm:$0xff]
    %v159 = vld [vmem:[%s2 + $0x60] sm:$0xff]
    %v160 = vld [vmem:[%s2 + $0x68] sm:$0xff]
    %v161 = vld [vmem:[%s2 + $0x70] sm:$0xff]
    %v162 = vld [vmem:[%s2 + $0x78] sm:$0xff]
    %v163 = vld [vmem:[%s3] sm:$0x3]
    %v165 = vperm.slane %v163, 0
    %v166 = vperm.slane %v163, 1
    %v185 = vunpack.c.l.b16 %v147
    %v186 = vunpack.c.h.b16 %v147
    %v187 = vunpack.c.l.b16 %v148
    %v188 = vunpack.c.h.b16 %v148
    %v189 = vunpack.c.l.b16 %v149
    %v190 = vunpack.c.h.b16 %v149
    %v191 = vunpack.c.l.b16 %v150
    %v192 = vunpack.c.h.b16 %v150
    %v193 = vunpack.c.l.b16 %v151
    %v194 = vunpack.c.h.b16 %v151
    %v195 = vunpack.c.l.b16 %v152
    %v196 = vunpack.c.h.b16 %v152
    %v197 = vunpack.c.l.b16 %v153
    %v198 = vunpack.c.h.b16 %v153
    %v199 = vunpack.c.l.b16 %v154
    %v200 = vunpack.c.h.b16 %v154
    %v201 = vunpack.c.l.b16 %v155
    %v202 = vunpack.c.h.b16 %v155
    %v203 = vunpack.c.l.b16 %v156
    %v204 = vunpack.c.h.b16 %v156
    %v205 = vunpack.c.l.b16 %v157
    %v206 = vunpack.c.h.b16 %v157
    %v207 = vunpack.c.l.b16 %v158
    %v208 = vunpack.c.h.b16 %v158
    %v209 = vunpack.c.l.b16 %v159
    %v210 = vunpack.c.h.b16 %v159
    %v211 = vunpack.c.l.b16 %v160
    %v212 = vunpack.c.h.b16 %v160
    %v213 = vunpack.c.l.b16 %v161
    %v214 = vunpack.c.h.b16 %v161
    %v215 = vunpack.c.l.b16 %v162
    %v216 = vunpack.c.h.b16 %v162
    %v217 = vpack.c.b16 %v187, %v185
    %v218 = vpack.c.b16 %v188, %v186
    %v219 = vpack.c.b16 %v191, %v189
    %v220 = vpack.c.b16 %v192, %v190
    %v221 = vpack.c.b16 %v195, %v193
    %v222 = vpack.c.b16 %v196, %v194
    %v223 = vpack.c.b16 %v199, %v197
    %v224 = vpack.c.b16 %v200, %v198
    %v225 = vpack.c.b16 %v203, %v201
    %v226 = vpack.c.b16 %v204, %v202
    %v227 = vpack.c.b16 %v207, %v205
    %v228 = vpack.c.b16 %v208, %v206
    %v229 = vpack.c.b16 %v211, %v209
    %v230 = vpack.c.b16 %v212, %v210
    %v231 = vpack.c.b16 %v215, %v213
    %v232 = vpack.c.b16 %v216, %v214
    %249 = vmatpush.bf16.msra.mxu0 %v231
    %250 = vmatpush.bf16.msra.mxu0 %v229
    %251 = vmatpush.bf16.msra.mxu0 %v227
    %252 = vmatpush.bf16.msra.mxu0 %v225
    %253 = vmatpush.bf16.msra.mxu0 %v223
    %254 = vmatpush.bf16.msra.mxu0 %v221
    %255 = vmatpush.bf16.msra.mxu0 %v219
    %256 = vmatpush.bf16.msra.mxu0 %v217
    %257 = vmatmul.bf16.gmra.mxu0 %v145
    %v258 = vpop.f32.mrf.mxu0
    %v259 = vadd.f32 %v165, %v258
    %v260 = vpop.f32.mrf.mxu0
    %v261 = vadd.f32 %v165, %v260
    %262 = vmatmul.bf16.gmra.mxu0 %v146
    %v263 = vpop.f32.mrf.mxu0
    %v264 = vadd.f32 %v165, %v263
    %v265 = vpop.f32.mrf.mxu0
    %v266 = vadd.f32 %v165, %v265
    %267 = vdwg.mxu0
    %268 = vmatpush.bf16.msra.mxu0 %v232
    %269 = vmatpush.bf16.msra.mxu0 %v230
    %270 = vmatpush.bf16.msra.mxu0 %v228
    %271 = vmatpush.bf16.msra.mxu0 %v226
    %272 = vmatpush.bf16.msra.mxu0 %v224
    %273 = vmatpush.bf16.msra.mxu0 %v222
    %274 = vmatpush.bf16.msra.mxu0 %v220
    %275 = vmatpush.bf16.msra.mxu0 %v218
    %276 = vmatmul.bf16.gmra.mxu0 %v145
    %v277 = vpop.f32.mrf.mxu0
    %v278 = vadd.f32 %v166, %v277
    %v279 = vpop.f32.mrf.mxu0
    %v280 = vadd.f32 %v166, %v279
    %281 = vmatmul.bf16.gmra.mxu0 %v146
    %v282 = vpop.f32.mrf.mxu0
    %v283 = vadd.f32 %v166, %v282
    %v284 = vpop.f32.mrf.mxu0
    %v285 = vadd.f32 %v166, %v284
    %286 = vdwg.mxu0
    %v287 = vpack.c.bf16 %v259, %v259
    %v288 = vpack.c.bf16 %v261, %v261
    %v289 = vpack.c.bf16 %v264, %v264
    %v290 = vpack.c.bf16 %v266, %v266
    %v291 = vpack.c.bf16 %v278, %v278
    %v292 = vpack.c.bf16 %v280, %v280
    %v293 = vpack.c.bf16 %v283, %v283
    %v294 = vpack.c.bf16 %v285, %v285
    %v297 = vunpack.c.l.b16 %v287
    %v298 = vunpack.c.l.b16 %v288
    %v299 = vpack.c.b16 %v298, %v297
    %300 = vrot.lane.b32.xlu0 %v299, 112
    %v301 = vpop.permute.xlu0 %300
    %302 = vrot.lane.b32.xlu0 %v299, 96
    %v303 = vpop.permute.xlu0 %302
    %304 = vrot.lane.b32.xlu0 %v299, 80
    %v305 = vpop.permute.xlu0 %304
    %306 = vrot.lane.b32.xlu0 %v299, 64
    %v307 = vpop.permute.xlu0 %306
    %308 = vrot.lane.b32.xlu0 %v299, 48
    %v309 = vpop.permute.xlu0 %308
    %310 = vrot.lane.b32.xlu0 %v299, 32
    %v311 = vpop.permute.xlu0 %310
    %312 = vrot.lane.b32.xlu0 %v299, 16
    %v313 = vpop.permute.xlu0 %312
    %v316 = vunpack.c.l.b16 %v291
    %v317 = vunpack.c.l.b16 %v292
    %v318 = vpack.c.b16 %v317, %v316
    %vm319 = vcmask 130048
    %v321 = vsel %vm319, %v299, 0
    %v324 = vsel %vm319, %v301, 0
    %v327 = vsel %vm319, %v303, 0
    %v330 = vsel %vm319, %v305, 0
    %v333 = vsel %vm319, %v318, 0
    %335 = vmatpush.bf16.xpose.msra.mxu0 0
    %336 = vmatpush.bf16.xpose.msra.mxu0 0
    %337 = vmatpush.bf16.xpose.msra.mxu0 0
    %338 = vmatpush.bf16.xpose.msra.mxu0 0
    %339 = vmatpush.bf16.xpose.msra.mxu0 0
    %340 = vmatpush.bf16.xpose.msra.mxu0 0
    %341 = vmatpush.bf16.xpose.msra.mxu0 0
    %342 = vmatpush.bf16.xpose.msra.mxu0 %v333
    %343 = vmatmul.bf16.gmra.mxu0 %v321
    %v344 = vpop.f32.mrf.mxu0
    %v345 = vadd.f32 0.0, %v344
    %v346 = vpop.f32.mrf.mxu0
    %v347 = vadd.f32 0.0, %v346
    %348 = vmatmul.bf16.gmra.mxu0 %v324
    %v349 = vpop.f32.mrf.mxu0
    %v350 = vadd.f32 0.0, %v349
    %v351 = vpop.f32.mrf.mxu0
    %v352 = vadd.f32 0.0, %v351
    %353 = vmatmul.bf16.gmra.mxu0 %v327
    %v354 = vpop.f32.mrf.mxu0
    %v355 = vadd.f32 0.0, %v354
    %v356 = vpop.f32.mrf.mxu0
    %v357 = vadd.f32 0.0, %v356
    %358 = vmatmul.bf16.gmra.mxu0 %v330
    %v359 = vpop.f32.mrf.mxu0
    %v360 = vadd.f32 0.0, %v359
    %v361 = vpop.f32.mrf.mxu0
    %v362 = vadd.f32 0.0, %v361
    %363 = vdwg.mxu0
    %v364 = vmul.f32 %v345, 0.25
    %v365 = vmul.f32 %v347, 0.25
    %v366 = vmul.f32 %v350, 0.25
    %v367 = vmul.f32 %v352, 0.25
    %v368 = vmul.f32 %v355, 0.25
    %v369 = vmul.f32 %v357, 0.25
    %v370 = vmul.f32 %v360, 0.25
    %v371 = vmul.f32 %v362, 0.25
    %v372 = vsel %vm319, %v364, -inf
    %373 = vmax.xlane.f32.xlu0 %v372
    %v374 = vpop.xlane.xlu0 %373
    %v375 = vsel %vm319, %v365, -inf
    %376 = vmax.xlane.f32.xlu0 %v375
    %v377 = vpop.xlane.xlu0 %376
    %v378 = vsel %vm319, %v366, -inf
    %379 = vmax.xlane.f32.xlu0 %v378
    %v380 = vpop.xlane.xlu0 %379
    %v381 = vsel %vm319, %v367, -inf
    %382 = vmax.xlane.f32.xlu0 %v381
    %v383 = vpop.xlane.xlu0 %382
    %v384 = vsel %vm319, %v368, -inf
    %385 = vmax.xlane.f32.xlu0 %v384
    %v386 = vpop.xlane.xlu0 %385
    %v387 = vsel %vm319, %v369, -inf
    %388 = vmax.xlane.f32.xlu0 %v387
    %v389 = vpop.xlane.xlu0 %388
    %v390 = vsel %vm319, %v370, -inf
    %391 = vmax.xlane.f32.xlu0 %v390
    %v392 = vpop.xlane.xlu0 %391
    %v393 = vsel %vm319, %v371, -inf
    %394 = vmax.xlane.f32.xlu0 %v393
    %v395 = vpop.xlane.xlu0 %394
    %v396 = vsub.f32 %v364, %v374
    %v397 = vsub.f32 %v365, %v377
    %v398 = vsub.f32 %v366, %v380
    %v399 = vsub.f32 %v367, %v383
    %v400 = vsub.f32 %v368, %v386
    %v401 = vsub.f32 %v369, %v389
    %v402 = vsub.f32 %v370, %v392
    %v403 = vsub.f32 %v371, %v395
    %v404 = vmul.f32 %v396, 1.442695
    %v405 = vpow.pop %v404
    %v406 = vmul.f32 %v397, 1.442695
    %v407 = vpow.pop %v406
    %v408 = vmul.f32 %v398, 1.442695
    %v409 = vpow.pop %v408
    %v410 = vmul.f32 %v399, 1.442695
    %v411 = vpow.pop %v410
    %v412 = vmul.f32 %v400, 1.442695
    %v413 = vpow.pop %v412
    %v414 = vmul.f32 %v401, 1.442695
    %v415 = vpow.pop %v414
    %v416 = vmul.f32 %v402, 1.442695
    %v417 = vpow.pop %v416
    %v418 = vmul.f32 %v403, 1.442695
    %v419 = vpow.pop %v418
    %v420 = vsel %vm319, %v405, 0.0
    %421 = vadd.xlane.f32.xlu0 %v420
    %v422 = vpop.xlane.xlu0 %421
    %v423 = vsel %vm319, %v407, 0.0
    %424 = vadd.xlane.f32.xlu0 %v423
    %v425 = vpop.xlane.xlu0 %424
    %v426 = vsel %vm319, %v409, 0.0
    %427 = vadd.xlane.f32.xlu0 %v426
    %v428 = vpop.xlane.xlu0 %427
    %v429 = vsel %vm319, %v411, 0.0
    %430 = vadd.xlane.f32.xlu0 %v429
    %v431 = vpop.xlane.xlu0 %430
    %v432 = vsel %vm319, %v413, 0.0
    %433 = vadd.xlane.f32.xlu0 %v432
    %v434 = vpop.xlane.xlu0 %433
    %v435 = vsel %vm319, %v415, 0.0
    %436 = vadd.xlane.f32.xlu0 %v435
    %v437 = vpop.xlane.xlu0 %436
    %v438 = vsel %vm319, %v417, 0.0
    %439 = vadd.xlane.f32.xlu0 %v438
    %v440 = vpop.xlane.xlu0 %439
    %v441 = vsel %vm319, %v419, 0.0
    %442 = vadd.xlane.f32.xlu0 %v441
    %v443 = vpop.xlane.xlu0 %442
    %v444 = vrcp.pop %v422
    %v445 = vrcp.pop %v425
    %v446 = vrcp.pop %v428
    %v447 = vrcp.pop %v431
    %v448 = vrcp.pop %v434
    %v449 = vrcp.pop %v437
    %v450 = vrcp.pop %v440
    %v451 = vrcp.pop %v443
    %v452 = vmul.f32 %v405, %v444
    %v453 = vmul.f32 %v407, %v445
    %v454 = vmul.f32 %v409, %v446
    %v455 = vmul.f32 %v411, %v447
    %v456 = vmul.f32 %v413, %v448
    %v457 = vmul.f32 %v415, %v449
    %v458 = vmul.f32 %v417, %v450
    %v459 = vmul.f32 %v419, %v451
    %v460 = vpack.c.bf16 %v453, %v452
    %v461 = vpack.c.bf16 %v455, %v454
    %v462 = vpack.c.bf16 %v457, %v456
    %v463 = vpack.c.bf16 %v459, %v458
    %464 = vrot.lane.b32.xlu0 %v318, 96
    %v465 = vpop.permute.xlu0 %464
    %v468 = vsel %vm319, %v460, 0
    %v471 = vsel %vm319, %v461, 0
    %v474 = vsel %vm319, %v462, 0
    %v477 = vsel %vm319, %v463, 0
    %479 = vmatpush.bf16.msra.mxu0 0
    %480 = vmatpush.bf16.msra.mxu0 0
    %481 = vmatpush.bf16.msra.mxu0 0
    %482 = vmatpush.bf16.msra.mxu0 0
    %483 = vmatpush.bf16.msra.mxu0 0
    %484 = vmatpush.bf16.msra.mxu0 0
    %485 = vmatpush.bf16.msra.mxu0 0
    %486 = vmatpush.bf16.msra.mxu0 %v465
    %487 = vmatmul.bf16.gmra.mxu0 %v468
    %v488 = vpop.f32.mrf.mxu0
    %v489 = vadd.f32 0.0, %v488
    %v490 = vpop.f32.mrf.mxu0
    %v491 = vadd.f32 0.0, %v490
    %492 = vmatmul.bf16.gmra.mxu0 %v471
    %v493 = vpop.f32.mrf.mxu0
    %v494 = vadd.f32 0.0, %v493
    %v495 = vpop.f32.mrf.mxu0
    %v496 = vadd.f32 0.0, %v495
    %497 = vmatmul.bf16.gmra.mxu0 %v474
    %v498 = vpop.f32.mrf.mxu0
    %v499 = vadd.f32 0.0, %v498
    %v500 = vpop.f32.mrf.mxu0
    %v501 = vadd.f32 0.0, %v500
    %502 = vmatmul.bf16.gmra.mxu0 %v477
    %v503 = vpop.f32.mrf.mxu0
    %v504 = vadd.f32 0.0, %v503
    %v505 = vpop.f32.mrf.mxu0
    %v506 = vadd.f32 0.0, %v505
    %507 = vdwg.mxu0
    %508 = vrot.lane.b32.xlu0 %v318, 112
    %v509 = vpop.permute.xlu0 %508
    %v511 = vsel %vm319, %v307, 0
    %v514 = vsel %vm319, %v309, 0
    %v517 = vsel %vm319, %v311, 0
    %v520 = vsel %vm319, %v313, 0
    %v523 = vsel %vm319, %v509, 0
    %525 = vmatpush.bf16.xpose.msra.mxu0 0
    %526 = vmatpush.bf16.xpose.msra.mxu0 0
    %527 = vmatpush.bf16.xpose.msra.mxu0 0
    %528 = vmatpush.bf16.xpose.msra.mxu0 0
    %529 = vmatpush.bf16.xpose.msra.mxu0 0
    %530 = vmatpush.bf16.xpose.msra.mxu0 0
    %531 = vmatpush.bf16.xpose.msra.mxu0 0
    %532 = vmatpush.bf16.xpose.msra.mxu0 %v523
    %533 = vmatmul.bf16.gmra.mxu0 %v511
    %v534 = vpop.f32.mrf.mxu0
    %v535 = vadd.f32 0.0, %v534
    %v536 = vpop.f32.mrf.mxu0
    %v537 = vadd.f32 0.0, %v536
    %538 = vmatmul.bf16.gmra.mxu0 %v514
    %v539 = vpop.f32.mrf.mxu0
    %v540 = vadd.f32 0.0, %v539
    %v541 = vpop.f32.mrf.mxu0
    %v542 = vadd.f32 0.0, %v541
    %543 = vmatmul.bf16.gmra.mxu0 %v517
    %v544 = vpop.f32.mrf.mxu0
    %v545 = vadd.f32 0.0, %v544
    %v546 = vpop.f32.mrf.mxu0
    %v547 = vadd.f32 0.0, %v546
    %548 = vmatmul.bf16.gmra.mxu0 %v520
    %v549 = vpop.f32.mrf.mxu0
    %v550 = vadd.f32 0.0, %v549
    %v551 = vpop.f32.mrf.mxu0
    %v552 = vadd.f32 0.0, %v551
    %553 = vdwg.mxu0
    %v554 = vmul.f32 %v535, 0.25
    %v555 = vmul.f32 %v537, 0.25
    %v556 = vmul.f32 %v540, 0.25
    %v557 = vmul.f32 %v542, 0.25
    %v558 = vmul.f32 %v545, 0.25
    %v559 = vmul.f32 %v547, 0.25
    %v560 = vmul.f32 %v550, 0.25
    %v561 = vmul.f32 %v552, 0.25
    %v562 = vsel %vm319, %v554, -inf
    %563 = vmax.xlane.f32.xlu0 %v562
    %v564 = vpop.xlane.xlu0 %563
    %v565 = vsel %vm319, %v555, -inf
    %566 = vmax.xlane.f32.xlu0 %v565
    %v567 = vpop.xlane.xlu0 %566
    %v568 = vsel %vm319, %v556, -inf
    %569 = vmax.xlane.f32.xlu0 %v568
    %v570 = vpop.xlane.xlu0 %569
    %v571 = vsel %vm319, %v557, -inf
    %572 = vmax.xlane.f32.xlu0 %v571
    %v573 = vpop.xlane.xlu0 %572
    %v574 = vsel %vm319, %v558, -inf
    %575 = vmax.xlane.f32.xlu0 %v574
    %v576 = vpop.xlane.xlu0 %575
    %v577 = vsel %vm319, %v559, -inf
    %578 = vmax.xlane.f32.xlu0 %v577
    %v579 = vpop.xlane.xlu0 %578
    %v580 = vsel %vm319, %v560, -inf
    %581 = vmax.xlane.f32.xlu0 %v580
    %v582 = vpop.xlane.xlu0 %581
    %v583 = vsel %vm319, %v561, -inf
    %584 = vmax.xlane.f32.xlu0 %v583
    %v585 = vpop.xlane.xlu0 %584
    %v586 = vsub.f32 %v554, %v564
    %v587 = vsub.f32 %v555, %v567
    %v588 = vsub.f32 %v556, %v570
    %v589 = vsub.f32 %v557, %v573
    %v590 = vsub.f32 %v558, %v576
    %v591 = vsub.f32 %v559, %v579
    %v592 = vsub.f32 %v560, %v582
    %v593 = vsub.f32 %v561, %v585
    %v594 = vmul.f32 %v586, 1.442695
    %v595 = vpow.pop %v594
    %v596 = vmul.f32 %v587, 1.442695
    %v597 = vpow.pop %v596
    %v598 = vmul.f32 %v588, 1.442695
    %v599 = vpow.pop %v598
    %v600 = vmul.f32 %v589, 1.442695
    %v601 = vpow.pop %v600
    %v602 = vmul.f32 %v590, 1.442695
    %v603 = vpow.pop %v602
    %v604 = vmul.f32 %v591, 1.442695
    %v605 = vpow.pop %v604
    %v606 = vmul.f32 %v592, 1.442695
    %v607 = vpow.pop %v606
    %v608 = vmul.f32 %v593, 1.442695
    %v609 = vpow.pop %v608
    %v610 = vsel %vm319, %v595, 0.0
    %611 = vadd.xlane.f32.xlu0 %v610
    %v612 = vpop.xlane.xlu0 %611
    %v613 = vsel %vm319, %v597, 0.0
    %614 = vadd.xlane.f32.xlu0 %v613
    %v615 = vpop.xlane.xlu0 %614
    %v616 = vsel %vm319, %v599, 0.0
    %617 = vadd.xlane.f32.xlu0 %v616
    %v618 = vpop.xlane.xlu0 %617
    %v619 = vsel %vm319, %v601, 0.0
    %620 = vadd.xlane.f32.xlu0 %v619
    %v621 = vpop.xlane.xlu0 %620
    %v622 = vsel %vm319, %v603, 0.0
    %623 = vadd.xlane.f32.xlu0 %v622
    %v624 = vpop.xlane.xlu0 %623
    %v625 = vsel %vm319, %v605, 0.0
    %626 = vadd.xlane.f32.xlu0 %v625
    %v627 = vpop.xlane.xlu0 %626
    %v628 = vsel %vm319, %v607, 0.0
    %629 = vadd.xlane.f32.xlu0 %v628
    %v630 = vpop.xlane.xlu0 %629
    %v631 = vsel %vm319, %v609, 0.0
    %632 = vadd.xlane.f32.xlu0 %v631
    %v633 = vpop.xlane.xlu0 %632
    %v634 = vrcp.pop %v612
    %v635 = vrcp.pop %v615
    %v636 = vrcp.pop %v618
    %v637 = vrcp.pop %v621
    %v638 = vrcp.pop %v624
    %v639 = vrcp.pop %v627
    %v640 = vrcp.pop %v630
    %v641 = vrcp.pop %v633
    %v642 = vmul.f32 %v595, %v634
    %v643 = vmul.f32 %v597, %v635
    %v644 = vmul.f32 %v599, %v636
    %v645 = vmul.f32 %v601, %v637
    %v646 = vmul.f32 %v603, %v638
    %v647 = vmul.f32 %v605, %v639
    %v648 = vmul.f32 %v607, %v640
    %v649 = vmul.f32 %v609, %v641
    %v650 = vpack.c.bf16 %v643, %v642
    %v651 = vpack.c.bf16 %v645, %v644
    %v652 = vpack.c.bf16 %v647, %v646
    %v653 = vpack.c.bf16 %v649, %v648
    %654 = vrot.lane.b32.xlu0 %v318, 80
    %v655 = vpop.permute.xlu0 %654
    %v658 = vsel %vm319, %v650, 0
    %v661 = vsel %vm319, %v651, 0
    %v664 = vsel %vm319, %v652, 0
    %v667 = vsel %vm319, %v653, 0
    %669 = vmatpush.bf16.msra.mxu0 0
    %670 = vmatpush.bf16.msra.mxu0 0
    %671 = vmatpush.bf16.msra.mxu0 0
    %672 = vmatpush.bf16.msra.mxu0 0
    %673 = vmatpush.bf16.msra.mxu0 0
    %674 = vmatpush.bf16.msra.mxu0 0
    %675 = vmatpush.bf16.msra.mxu0 0
    %676 = vmatpush.bf16.msra.mxu0 %v655
    %677 = vmatmul.bf16.gmra.mxu0 %v658
    %v678 = vpop.f32.mrf.mxu0
    %v679 = vadd.f32 0.0, %v678
    %v680 = vpop.f32.mrf.mxu0
    %v681 = vadd.f32 0.0, %v680
    %682 = vmatmul.bf16.gmra.mxu0 %v661
    %v683 = vpop.f32.mrf.mxu0
    %v684 = vadd.f32 0.0, %v683
    %v685 = vpop.f32.mrf.mxu0
    %v686 = vadd.f32 0.0, %v685
    %687 = vmatmul.bf16.gmra.mxu0 %v664
    %v688 = vpop.f32.mrf.mxu0
    %v689 = vadd.f32 0.0, %v688
    %v690 = vpop.f32.mrf.mxu0
    %v691 = vadd.f32 0.0, %v690
    %692 = vmatmul.bf16.gmra.mxu0 %v667
    %v693 = vpop.f32.mrf.mxu0
    %v694 = vadd.f32 0.0, %v693
    %v695 = vpop.f32.mrf.mxu0
    %v696 = vadd.f32 0.0, %v695
    %697 = vdwg.mxu0
    %700 = vrot.lane.b32.xlu0 %v494, 16
    %v701 = vpop.permute.xlu0 %700
    %702 = vrot.lane.b32.xlu0 %v496, 16
    %v703 = vpop.permute.xlu0 %702
    %708 = vrot.lane.b32.xlu0 %v499, 32
    %v709 = vpop.permute.xlu0 %708
    %710 = vrot.lane.b32.xlu0 %v501, 32
    %v711 = vpop.permute.xlu0 %710
    %716 = vrot.lane.b32.xlu0 %v504, 48
    %v717 = vpop.permute.xlu0 %716
    %718 = vrot.lane.b32.xlu0 %v506, 48
    %v719 = vpop.permute.xlu0 %718
    %724 = vrot.lane.b32.xlu0 %v679, 64
    %v725 = vpop.permute.xlu0 %724
    %726 = vrot.lane.b32.xlu0 %v681, 64
    %v727 = vpop.permute.xlu0 %726
    %732 = vrot.lane.b32.xlu0 %v684, 80
    %v733 = vpop.permute.xlu0 %732
    %734 = vrot.lane.b32.xlu0 %v686, 80
    %v735 = vpop.permute.xlu0 %734
    %740 = vrot.lane.b32.xlu0 %v689, 96
    %v741 = vpop.permute.xlu0 %740
    %742 = vrot.lane.b32.xlu0 %v691, 96
    %v743 = vpop.permute.xlu0 %742
    %748 = vrot.lane.b32.xlu0 %v694, 112
    %v749 = vpop.permute.xlu0 %748
    %750 = vrot.lane.b32.xlu0 %v696, 112
    %v751 = vpop.permute.xlu0 %750
    %v754 = vsel %vm319, %v489, %v701
    %v755 = vsel %vm319, %v491, %v703
    %vm756 = vcmask 261120
    %v757 = vsel %vm756, %v754, %v709
    %v758 = vsel %vm756, %v755, %v711
    %vm759 = vcmask 392192
    %v760 = vsel %vm759, %v757, %v717
    %v761 = vsel %vm759, %v758, %v719
    %vm762 = vcmask 523264
    %v763 = vsel %vm762, %v760, %v725
    %v764 = vsel %vm762, %v761, %v727
    %vm765 = vcmask 654336
    %v766 = vsel %vm765, %v763, %v733
    %v767 = vsel %vm765, %v764, %v735
    %vm768 = vcmask 785408
    %v769 = vsel %vm768, %v766, %v741
    %v770 = vsel %vm768, %v767, %v743
    %vm771 = vcmask 916480
    %v772 = vsel %vm771, %v769, %v749
    %v773 = vsel %vm771, %v770, %v751
    %v776 = vunpack.c.l.b16 %v289
    %v777 = vunpack.c.l.b16 %v290
    %v778 = vpack.c.b16 %v777, %v776
    %779 = vrot.lane.b32.xlu0 %v778, 112
    %v780 = vpop.permute.xlu0 %779
    %781 = vrot.lane.b32.xlu0 %v778, 96
    %v782 = vpop.permute.xlu0 %781
    %783 = vrot.lane.b32.xlu0 %v778, 80
    %v784 = vpop.permute.xlu0 %783
    %785 = vrot.lane.b32.xlu0 %v778, 64
    %v786 = vpop.permute.xlu0 %785
    %787 = vrot.lane.b32.xlu0 %v778, 48
    %v788 = vpop.permute.xlu0 %787
    %789 = vrot.lane.b32.xlu0 %v778, 32
    %v790 = vpop.permute.xlu0 %789
    %791 = vrot.lane.b32.xlu0 %v778, 16
    %v792 = vpop.permute.xlu0 %791
    %v795 = vunpack.c.l.b16 %v293
    %v796 = vunpack.c.l.b16 %v294
    %v797 = vpack.c.b16 %v796, %v795
    %v799 = vsel %vm319, %v778, 0
    %v802 = vsel %vm319, %v780, 0
    %v805 = vsel %vm319, %v782, 0
    %v808 = vsel %vm319, %v784, 0
    %v811 = vsel %vm319, %v797, 0
    %813 = vmatpush.bf16.xpose.msra.mxu0 0
    %814 = vmatpush.bf16.xpose.msra.mxu0 0
    %815 = vmatpush.bf16.xpose.msra.mxu0 0
    %816 = vmatpush.bf16.xpose.msra.mxu0 0
    %817 = vmatpush.bf16.xpose.msra.mxu0 0
    %818 = vmatpush.bf16.xpose.msra.mxu0 0
    %819 = vmatpush.bf16.xpose.msra.mxu0 0
    %820 = vmatpush.bf16.xpose.msra.mxu0 %v811
    %821 = vmatmul.bf16.gmra.mxu0 %v799
    %v822 = vpop.f32.mrf.mxu0
    %v823 = vadd.f32 0.0, %v822
    %v824 = vpop.f32.mrf.mxu0
    %v825 = vadd.f32 0.0, %v824
    %826 = vmatmul.bf16.gmra.mxu0 %v802
    %v827 = vpop.f32.mrf.mxu0
    %v828 = vadd.f32 0.0, %v827
    %v829 = vpop.f32.mrf.mxu0
    %v830 = vadd.f32 0.0, %v829
    %831 = vmatmul.bf16.gmra.mxu0 %v805
    %v832 = vpop.f32.mrf.mxu0
    %v833 = vadd.f32 0.0, %v832
    %v834 = vpop.f32.mrf.mxu0
    %v835 = vadd.f32 0.0, %v834
    %836 = vmatmul.bf16.gmra.mxu0 %v808
    %v837 = vpop.f32.mrf.mxu0
    %v838 = vadd.f32 0.0, %v837
    %v839 = vpop.f32.mrf.mxu0
    %v840 = vadd.f32 0.0, %v839
    %841 = vdwg.mxu0
    %v842 = vmul.f32 %v823, 0.25
    %v843 = vmul.f32 %v825, 0.25
    %v844 = vmul.f32 %v828, 0.25
    %v845 = vmul.f32 %v830, 0.25
    %v846 = vmul.f32 %v833, 0.25
    %v847 = vmul.f32 %v835, 0.25
    %v848 = vmul.f32 %v838, 0.25
    %v849 = vmul.f32 %v840, 0.25
    %v850 = vsel %vm319, %v842, -inf
    %851 = vmax.xlane.f32.xlu0 %v850
    %v852 = vpop.xlane.xlu0 %851
    %v853 = vsel %vm319, %v843, -inf
    %854 = vmax.xlane.f32.xlu0 %v853
    %v855 = vpop.xlane.xlu0 %854
    %v856 = vsel %vm319, %v844, -inf
    %857 = vmax.xlane.f32.xlu0 %v856
    %v858 = vpop.xlane.xlu0 %857
    %v859 = vsel %vm319, %v845, -inf
    %860 = vmax.xlane.f32.xlu0 %v859
    %v861 = vpop.xlane.xlu0 %860
    %v862 = vsel %vm319, %v846, -inf
    %863 = vmax.xlane.f32.xlu0 %v862
    %v864 = vpop.xlane.xlu0 %863
    %v865 = vsel %vm319, %v847, -inf
    %866 = vmax.xlane.f32.xlu0 %v865
    %v867 = vpop.xlane.xlu0 %866
    %v868 = vsel %vm319, %v848, -inf
    %869 = vmax.xlane.f32.xlu0 %v868
    %v870 = vpop.xlane.xlu0 %869
    %v871 = vsel %vm319, %v849, -inf
    %872 = vmax.xlane.f32.xlu0 %v871
    %v873 = vpop.xlane.xlu0 %872
    %v874 = vsub.f32 %v842, %v852
    %v875 = vsub.f32 %v843, %v855
    %v876 = vsub.f32 %v844, %v858
    %v877 = vsub.f32 %v845, %v861
    %v878 = vsub.f32 %v846, %v864
    %v879 = vsub.f32 %v847, %v867
    %v880 = vsub.f32 %v848, %v870
    %v881 = vsub.f32 %v849, %v873
    %v882 = vmul.f32 %v874, 1.442695
    %v883 = vpow.pop %v882
    %v884 = vmul.f32 %v875, 1.442695
    %v885 = vpow.pop %v884
    %v886 = vmul.f32 %v876, 1.442695
    %v887 = vpow.pop %v886
    %v888 = vmul.f32 %v877, 1.442695
    %v889 = vpow.pop %v888
    %v890 = vmul.f32 %v878, 1.442695
    %v891 = vpow.pop %v890
    %v892 = vmul.f32 %v879, 1.442695
    %v893 = vpow.pop %v892
    %v894 = vmul.f32 %v880, 1.442695
    %v895 = vpow.pop %v894
    %v896 = vmul.f32 %v881, 1.442695
    %v897 = vpow.pop %v896
    %v898 = vsel %vm319, %v883, 0.0
    %899 = vadd.xlane.f32.xlu0 %v898
    %v900 = vpop.xlane.xlu0 %899
    %v901 = vsel %vm319, %v885, 0.0
    %902 = vadd.xlane.f32.xlu0 %v901
    %v903 = vpop.xlane.xlu0 %902
    %v904 = vsel %vm319, %v887, 0.0
    %905 = vadd.xlane.f32.xlu0 %v904
    %v906 = vpop.xlane.xlu0 %905
    %v907 = vsel %vm319, %v889, 0.0
    %908 = vadd.xlane.f32.xlu0 %v907
    %v909 = vpop.xlane.xlu0 %908
    %v910 = vsel %vm319, %v891, 0.0
    %911 = vadd.xlane.f32.xlu0 %v910
    %v912 = vpop.xlane.xlu0 %911
    %v913 = vsel %vm319, %v893, 0.0
    %914 = vadd.xlane.f32.xlu0 %v913
    %v915 = vpop.xlane.xlu0 %914
    %v916 = vsel %vm319, %v895, 0.0
    %917 = vadd.xlane.f32.xlu0 %v916
    %v918 = vpop.xlane.xlu0 %917
    %v919 = vsel %vm319, %v897, 0.0
    %920 = vadd.xlane.f32.xlu0 %v919
    %v921 = vpop.xlane.xlu0 %920
    %v922 = vrcp.pop %v900
    %v923 = vrcp.pop %v903
    %v924 = vrcp.pop %v906
    %v925 = vrcp.pop %v909
    %v926 = vrcp.pop %v912
    %v927 = vrcp.pop %v915
    %v928 = vrcp.pop %v918
    %v929 = vrcp.pop %v921
    %v930 = vmul.f32 %v883, %v922
    %v931 = vmul.f32 %v885, %v923
    %v932 = vmul.f32 %v887, %v924
    %v933 = vmul.f32 %v889, %v925
    %v934 = vmul.f32 %v891, %v926
    %v935 = vmul.f32 %v893, %v927
    %v936 = vmul.f32 %v895, %v928
    %v937 = vmul.f32 %v897, %v929
    %v938 = vpack.c.bf16 %v931, %v930
    %v939 = vpack.c.bf16 %v933, %v932
    %v940 = vpack.c.bf16 %v935, %v934
    %v941 = vpack.c.bf16 %v937, %v936
    %942 = vrot.lane.b32.xlu0 %v797, 96
    %v943 = vpop.permute.xlu0 %942
    %v946 = vsel %vm319, %v938, 0
    %v949 = vsel %vm319, %v939, 0
    %v952 = vsel %vm319, %v940, 0
    %v955 = vsel %vm319, %v941, 0
    %957 = vmatpush.bf16.msra.mxu0 0
    %958 = vmatpush.bf16.msra.mxu0 0
    %959 = vmatpush.bf16.msra.mxu0 0
    %960 = vmatpush.bf16.msra.mxu0 0
    %961 = vmatpush.bf16.msra.mxu0 0
    %962 = vmatpush.bf16.msra.mxu0 0
    %963 = vmatpush.bf16.msra.mxu0 0
    %964 = vmatpush.bf16.msra.mxu0 %v943
    %965 = vmatmul.bf16.gmra.mxu0 %v946
    %v966 = vpop.f32.mrf.mxu0
    %v967 = vadd.f32 0.0, %v966
    %v968 = vpop.f32.mrf.mxu0
    %v969 = vadd.f32 0.0, %v968
    %970 = vmatmul.bf16.gmra.mxu0 %v949
    %v971 = vpop.f32.mrf.mxu0
    %v972 = vadd.f32 0.0, %v971
    %v973 = vpop.f32.mrf.mxu0
    %v974 = vadd.f32 0.0, %v973
    %975 = vmatmul.bf16.gmra.mxu0 %v952
    %v976 = vpop.f32.mrf.mxu0
    %v977 = vadd.f32 0.0, %v976
    %v978 = vpop.f32.mrf.mxu0
    %v979 = vadd.f32 0.0, %v978
    %980 = vmatmul.bf16.gmra.mxu0 %v955
    %v981 = vpop.f32.mrf.mxu0
    %v982 = vadd.f32 0.0, %v981
    %v983 = vpop.f32.mrf.mxu0
    %v984 = vadd.f32 0.0, %v983
    %985 = vdwg.mxu0
    %986 = vrot.lane.b32.xlu0 %v797, 112
    %v987 = vpop.permute.xlu0 %986
    %v989 = vsel %vm319, %v786, 0
    %v992 = vsel %vm319, %v788, 0
    %v995 = vsel %vm319, %v790, 0
    %v998 = vsel %vm319, %v792, 0
    %v1001 = vsel %vm319, %v987, 0
    %1003 = vmatpush.bf16.xpose.msra.mxu0 0
    %1004 = vmatpush.bf16.xpose.msra.mxu0 0
    %1005 = vmatpush.bf16.xpose.msra.mxu0 0
    %1006 = vmatpush.bf16.xpose.msra.mxu0 0
    %1007 = vmatpush.bf16.xpose.msra.mxu0 0
    %1008 = vmatpush.bf16.xpose.msra.mxu0 0
    %1009 = vmatpush.bf16.xpose.msra.mxu0 0
    %1010 = vmatpush.bf16.xpose.msra.mxu0 %v1001
    %1011 = vmatmul.bf16.gmra.mxu0 %v989
    %v1012 = vpop.f32.mrf.mxu0
    %v1013 = vadd.f32 0.0, %v1012
    %v1014 = vpop.f32.mrf.mxu0
    %v1015 = vadd.f32 0.0, %v1014
    %1016 = vmatmul.bf16.gmra.mxu0 %v992
    %v1017 = vpop.f32.mrf.mxu0
    %v1018 = vadd.f32 0.0, %v1017
    %v1019 = vpop.f32.mrf.mxu0
    %v1020 = vadd.f32 0.0, %v1019
    %1021 = vmatmul.bf16.gmra.mxu0 %v995
    %v1022 = vpop.f32.mrf.mxu0
    %v1023 = vadd.f32 0.0, %v1022
    %v1024 = vpop.f32.mrf.mxu0
    %v1025 = vadd.f32 0.0, %v1024
    %1026 = vmatmul.bf16.gmra.mxu0 %v998
    %v1027 = vpop.f32.mrf.mxu0
    %v1028 = vadd.f32 0.0, %v1027
    %v1029 = vpop.f32.mrf.mxu0
    %v1030 = vadd.f32 0.0, %v1029
    %1031 = vdwg.mxu0
    %v1032 = vmul.f32 %v1013, 0.25
    %v1033 = vmul.f32 %v1015, 0.25
    %v1034 = vmul.f32 %v1018, 0.25
    %v1035 = vmul.f32 %v1020, 0.25
    %v1036 = vmul.f32 %v1023, 0.25
    %v1037 = vmul.f32 %v1025, 0.25
    %v1038 = vmul.f32 %v1028, 0.25
    %v1039 = vmul.f32 %v1030, 0.25
    %v1040 = vsel %vm319, %v1032, -inf
    %1041 = vmax.xlane.f32.xlu0 %v1040
    %v1042 = vpop.xlane.xlu0 %1041
    %v1043 = vsel %vm319, %v1033, -inf
    %1044 = vmax.xlane.f32.xlu0 %v1043
    %v1045 = vpop.xlane.xlu0 %1044
    %v1046 = vsel %vm319, %v1034, -inf
    %1047 = vmax.xlane.f32.xlu0 %v1046
    %v1048 = vpop.xlane.xlu0 %1047
    %v1049 = vsel %vm319, %v1035, -inf
    %1050 = vmax.xlane.f32.xlu0 %v1049
    %v1051 = vpop.xlane.xlu0 %1050
    %v1052 = vsel %vm319, %v1036, -inf
    %1053 = vmax.xlane.f32.xlu0 %v1052
    %v1054 = vpop.xlane.xlu0 %1053
    %v1055 = vsel %vm319, %v1037, -inf
    %1056 = vmax.xlane.f32.xlu0 %v1055
    %v1057 = vpop.xlane.xlu0 %1056
    %v1058 = vsel %vm319, %v1038, -inf
    %1059 = vmax.xlane.f32.xlu0 %v1058
    %v1060 = vpop.xlane.xlu0 %1059
    %v1061 = vsel %vm319, %v1039, -inf
    %1062 = vmax.xlane.f32.xlu0 %v1061
    %v1063 = vpop.xlane.xlu0 %1062
    %v1064 = vsub.f32 %v1032, %v1042
    %v1065 = vsub.f32 %v1033, %v1045
    %v1066 = vsub.f32 %v1034, %v1048
    %v1067 = vsub.f32 %v1035, %v1051
    %v1068 = vsub.f32 %v1036, %v1054
    %v1069 = vsub.f32 %v1037, %v1057
    %v1070 = vsub.f32 %v1038, %v1060
    %v1071 = vsub.f32 %v1039, %v1063
    %v1072 = vmul.f32 %v1064, 1.442695
    %v1073 = vpow.pop %v1072
    %v1074 = vmul.f32 %v1065, 1.442695
    %v1075 = vpow.pop %v1074
    %v1076 = vmul.f32 %v1066, 1.442695
    %v1077 = vpow.pop %v1076
    %v1078 = vmul.f32 %v1067, 1.442695
    %v1079 = vpow.pop %v1078
    %v1080 = vmul.f32 %v1068, 1.442695
    %v1081 = vpow.pop %v1080
    %v1082 = vmul.f32 %v1069, 1.442695
    %v1083 = vpow.pop %v1082
    %v1084 = vmul.f32 %v1070, 1.442695
    %v1085 = vpow.pop %v1084
    %v1086 = vmul.f32 %v1071, 1.442695
    %v1087 = vpow.pop %v1086
    %v1088 = vsel %vm319, %v1073, 0.0
    %1089 = vadd.xlane.f32.xlu0 %v1088
    %v1090 = vpop.xlane.xlu0 %1089
    %v1091 = vsel %vm319, %v1075, 0.0
    %1092 = vadd.xlane.f32.xlu0 %v1091
    %v1093 = vpop.xlane.xlu0 %1092
    %v1094 = vsel %vm319, %v1077, 0.0
    %1095 = vadd.xlane.f32.xlu0 %v1094
    %v1096 = vpop.xlane.xlu0 %1095
    %v1097 = vsel %vm319, %v1079, 0.0
    %1098 = vadd.xlane.f32.xlu0 %v1097
    %v1099 = vpop.xlane.xlu0 %1098
    %v1100 = vsel %vm319, %v1081, 0.0
    %1101 = vadd.xlane.f32.xlu0 %v1100
    %v1102 = vpop.xlane.xlu0 %1101
    %v1103 = vsel %vm319, %v1083, 0.0
    %1104 = vadd.xlane.f32.xlu0 %v1103
    %v1105 = vpop.xlane.xlu0 %1104
    %v1106 = vsel %vm319, %v1085, 0.0
    %1107 = vadd.xlane.f32.xlu0 %v1106
    %v1108 = vpop.xlane.xlu0 %1107
    %v1109 = vsel %vm319, %v1087, 0.0
    %1110 = vadd.xlane.f32.xlu0 %v1109
    %v1111 = vpop.xlane.xlu0 %1110
    %v1112 = vrcp.pop %v1090
    %v1113 = vrcp.pop %v1093
    %v1114 = vrcp.pop %v1096
    %v1115 = vrcp.pop %v1099
    %v1116 = vrcp.pop %v1102
    %v1117 = vrcp.pop %v1105
    %v1118 = vrcp.pop %v1108
    %v1119 = vrcp.pop %v1111
    %v1120 = vmul.f32 %v1073, %v1112
    %v1121 = vmul.f32 %v1075, %v1113
    %v1122 = vmul.f32 %v1077, %v1114
    %v1123 = vmul.f32 %v1079, %v1115
    %v1124 = vmul.f32 %v1081, %v1116
    %v1125 = vmul.f32 %v1083, %v1117
    %v1126 = vmul.f32 %v1085, %v1118
    %v1127 = vmul.f32 %v1087, %v1119
    %v1128 = vpack.c.bf16 %v1121, %v1120
    %v1129 = vpack.c.bf16 %v1123, %v1122
    %v1130 = vpack.c.bf16 %v1125, %v1124
    %v1131 = vpack.c.bf16 %v1127, %v1126
    %1132 = vrot.lane.b32.xlu0 %v797, 80
    %v1133 = vpop.permute.xlu0 %1132
    %v1136 = vsel %vm319, %v1128, 0
    %v1139 = vsel %vm319, %v1129, 0
    %v1142 = vsel %vm319, %v1130, 0
    %v1145 = vsel %vm319, %v1131, 0
    %1147 = vmatpush.bf16.msra.mxu0 0
    %1148 = vmatpush.bf16.msra.mxu0 0
    %1149 = vmatpush.bf16.msra.mxu0 0
    %1150 = vmatpush.bf16.msra.mxu0 0
    %1151 = vmatpush.bf16.msra.mxu0 0
    %1152 = vmatpush.bf16.msra.mxu0 0
    %1153 = vmatpush.bf16.msra.mxu0 0
    %1154 = vmatpush.bf16.msra.mxu0 %v1133
    %1155 = vmatmul.bf16.gmra.mxu0 %v1136
    %v1156 = vpop.f32.mrf.mxu0
    %v1157 = vadd.f32 0.0, %v1156
    %v1158 = vpop.f32.mrf.mxu0
    %v1159 = vadd.f32 0.0, %v1158
    %1160 = vmatmul.bf16.gmra.mxu0 %v1139
    %v1161 = vpop.f32.mrf.mxu0
    %v1162 = vadd.f32 0.0, %v1161
    %v1163 = vpop.f32.mrf.mxu0
    %v1164 = vadd.f32 0.0, %v1163
    %1165 = vmatmul.bf16.gmra.mxu0 %v1142
    %v1166 = vpop.f32.mrf.mxu0
    %v1167 = vadd.f32 0.0, %v1166
    %v1168 = vpop.f32.mrf.mxu0
    %v1169 = vadd.f32 0.0, %v1168
    %1170 = vmatmul.bf16.gmra.mxu0 %v1145
    %v1171 = vpop.f32.mrf.mxu0
    %v1172 = vadd.f32 0.0, %v1171
    %v1173 = vpop.f32.mrf.mxu0
    %v1174 = vadd.f32 0.0, %v1173
    %1175 = vdwg.mxu0
    %1178 = vrot.lane.b32.xlu0 %v972, 16
    %v1179 = vpop.permute.xlu0 %1178
    %1180 = vrot.lane.b32.xlu0 %v974, 16
    %v1181 = vpop.permute.xlu0 %1180
    %1186 = vrot.lane.b32.xlu0 %v977, 32
    %v1187 = vpop.permute.xlu0 %1186
    %1188 = vrot.lane.b32.xlu0 %v979, 32
    %v1189 = vpop.permute.xlu0 %1188
    %1194 = vrot.lane.b32.xlu0 %v982, 48
    %v1195 = vpop.permute.xlu0 %1194
    %1196 = vrot.lane.b32.xlu0 %v984, 48
    %v1197 = vpop.permute.xlu0 %1196
    %1202 = vrot.lane.b32.xlu0 %v1157, 64
    %v1203 = vpop.permute.xlu0 %1202
    %1204 = vrot.lane.b32.xlu0 %v1159, 64
    %v1205 = vpop.permute.xlu0 %1204
    %1210 = vrot.lane.b32.xlu0 %v1162, 80
    %v1211 = vpop.permute.xlu0 %1210
    %1212 = vrot.lane.b32.xlu0 %v1164, 80
    %v1213 = vpop.permute.xlu0 %1212
    %1218 = vrot.lane.b32.xlu0 %v1167, 96
    %v1219 = vpop.permute.xlu0 %1218
    %1220 = vrot.lane.b32.xlu0 %v1169, 96
    %v1221 = vpop.permute.xlu0 %1220
    %1226 = vrot.lane.b32.xlu0 %v1172, 112
    %v1227 = vpop.permute.xlu0 %1226
    %1228 = vrot.lane.b32.xlu0 %v1174, 112
    %v1229 = vpop.permute.xlu0 %1228
    %v1232 = vsel %vm319, %v967, %v1179
    %v1233 = vsel %vm319, %v969, %v1181
    %v1234 = vsel %vm756, %v1232, %v1187
    %v1235 = vsel %vm756, %v1233, %v1189
    %v1236 = vsel %vm759, %v1234, %v1195
    %v1237 = vsel %vm759, %v1235, %v1197
    %v1238 = vsel %vm762, %v1236, %v1203
    %v1239 = vsel %vm762, %v1237, %v1205
    %v1240 = vsel %vm765, %v1238, %v1211
    %v1241 = vsel %vm765, %v1239, %v1213
    %v1242 = vsel %vm768, %v1240, %v1219
    %v1243 = vsel %vm768, %v1241, %v1221
    %v1244 = vsel %vm771, %v1242, %v1227
    %v1245 = vsel %vm771, %v1243, %v1229
    %v1246 = vpack.c.bf16 %v773, %v772
    %v1247 = vpack.c.bf16 %v1245, %v1244
    %v1248 = vld [vmem:[#allocation2] sm:$0xf]
    %v1249 = vld [vmem:[#allocation2 + $0x4] sm:$0xf]
    %v1250 = vld [vmem:[#allocation2 + $0x8] sm:$0xf]
    %v1251 = vld [vmem:[#allocation2 + $0xc] sm:$0xf]
    %v1252 = vld [vmem:[#allocation2 + $0x10] sm:$0xf]
    %v1253 = vld [vmem:[#allocation2 + $0x14] sm:$0xf]
    %v1254 = vld [vmem:[#allocation2 + $0x18] sm:$0xf]
    %v1255 = vld [vmem:[#allocation2 + $0x1c] sm:$0xf]
    %v1256 = vld [vmem:[#allocation2 + $0x20] sm:$0xf]
    %v1257 = vld [vmem:[#allocation2 + $0x24] sm:$0xf]
    %v1258 = vld [vmem:[#allocation2 + $0x28] sm:$0xf]
    %v1259 = vld [vmem:[#allocation2 + $0x2c] sm:$0xf]
    %v1260 = vld [vmem:[#allocation2 + $0x30] sm:$0xf]
    %v1261 = vld [vmem:[#allocation2 + $0x34] sm:$0xf]
    %v1262 = vld [vmem:[#allocation2 + $0x38] sm:$0xf]
    %v1263 = vld [vmem:[#allocation2 + $0x3c] sm:$0xf]
    %v1280 = vunpack.c.l.b16 %v1248
    %v1281 = vunpack.c.l.b16 %v1249
    %v1282 = vunpack.c.l.b16 %v1250
    %v1283 = vunpack.c.l.b16 %v1251
    %v1284 = vunpack.c.l.b16 %v1252
    %v1285 = vunpack.c.l.b16 %v1253
    %v1286 = vunpack.c.l.b16 %v1254
    %v1287 = vunpack.c.l.b16 %v1255
    %v1288 = vunpack.c.l.b16 %v1256
    %v1289 = vunpack.c.l.b16 %v1257
    %v1290 = vunpack.c.l.b16 %v1258
    %v1291 = vunpack.c.l.b16 %v1259
    %v1292 = vunpack.c.l.b16 %v1260
    %v1293 = vunpack.c.l.b16 %v1261
    %v1294 = vunpack.c.l.b16 %v1262
    %v1295 = vunpack.c.l.b16 %v1263
    %v1296 = vpack.c.b16 %v1281, %v1280
    %v1297 = vpack.c.b16 %v1283, %v1282
    %v1298 = vpack.c.b16 %v1285, %v1284
    %v1299 = vpack.c.b16 %v1287, %v1286
    %v1300 = vpack.c.b16 %v1289, %v1288
    %v1301 = vpack.c.b16 %v1291, %v1290
    %v1302 = vpack.c.b16 %v1293, %v1292
    %v1303 = vpack.c.b16 %v1295, %v1294
    %1312 = vmatpush.bf16.msra.mxu0 %v1303
    %1313 = vmatpush.bf16.msra.mxu0 %v1302
    %1314 = vmatpush.bf16.msra.mxu0 %v1301
    %1315 = vmatpush.bf16.msra.mxu0 %v1300
    %1316 = vmatpush.bf16.msra.mxu0 %v1299
    %1317 = vmatpush.bf16.msra.mxu0 %v1298
    %1318 = vmatpush.bf16.msra.mxu0 %v1297
    %1319 = vmatpush.bf16.msra.mxu0 %v1296
    %1320 = vmatmul.bf16.gmra.mxu0 %v1246
    %v1321 = vpop.f32.mrf.mxu0
    %v1322 = vadd.f32 0.0, %v1321
    %v1323 = vpop.f32.mrf.mxu0
    %v1324 = vadd.f32 0.0, %v1323
    %1325 = vmatmul.bf16.gmra.mxu0 %v1247
    %v1326 = vpop.f32.mrf.mxu0
    %v1327 = vadd.f32 0.0, %v1326
    %v1328 = vpop.f32.mrf.mxu0
    %v1329 = vadd.f32 0.0, %v1328
    %1330 = vdwg.mxu0
    %v1331 = vadd.f32 %v62, %v1322
    %v1332 = vadd.f32 %v63, %v1324
    %v1333 = vadd.f32 %v64, %v1327
    %v1334 = vadd.f32 %v65, %v1329
    %v1335 = vld [vmem:[%s5] sm:$0x1]
    %v1337 = vperm.slane %v1335, 0
    %v1339 = vadd.f32 %v1331, %v1337
    %v1340 = vadd.f32 %v1332, %v1337
    %v1341 = vadd.f32 %v1333, %v1337
    %v1342 = vadd.f32 %v1334, %v1337
    %v1343 = vld [vmem:[%s6] sm:$0xff]
    %v1344 = vld [vmem:[%s6 + $0x8] sm:$0xff]
    %v1345 = vld [vmem:[%s6 + $0x10] sm:$0xff]
    %v1346 = vld [vmem:[%s6 + $0x18] sm:$0xff]
    %v1347 = vld [vmem:[%s6 + $0x20] sm:$0xff]
    %v1348 = vld [vmem:[%s6 + $0x28] sm:$0xff]
    %v1349 = vld [vmem:[%s6 + $0x30] sm:$0xff]
    %v1350 = vld [vmem:[%s6 + $0x38] sm:$0xff]
    %v1351 = vld [vmem:[%s6 + $0x40] sm:$0xff]
    %v1352 = vld [vmem:[%s6 + $0x48] sm:$0xff]
    %v1353 = vld [vmem:[%s6 + $0x50] sm:$0xff]
    %v1354 = vld [vmem:[%s6 + $0x58] sm:$0xff]
    %v1355 = vld [vmem:[%s6 + $0x60] sm:$0xff]
    %v1356 = vld [vmem:[%s6 + $0x68] sm:$0xff]
    %v1357 = vld [vmem:[%s6 + $0x70] sm:$0xff]
    %v1358 = vld [vmem:[%s6 + $0x78] sm:$0xff]
    %v1359 = vld [vmem:[%s7] sm:$0x3]
    %v1361 = vperm.slane %v1359, 0
    %v1362 = vperm.slane %v1359, 1
    %v1381 = vunpack.c.l.b16 %v1343
    %v1382 = vunpack.c.h.b16 %v1343
    %v1383 = vunpack.c.l.b16 %v1344
    %v1384 = vunpack.c.h.b16 %v1344
    %v1385 = vunpack.c.l.b16 %v1345
    %v1386 = vunpack.c.h.b16 %v1345
    %v1387 = vunpack.c.l.b16 %v1346
    %v1388 = vunpack.c.h.b16 %v1346
    %v1389 = vunpack.c.l.b16 %v1347
    %v1390 = vunpack.c.h.b16 %v1347
    %v1391 = vunpack.c.l.b16 %v1348
    %v1392 = vunpack.c.h.b16 %v1348
    %v1393 = vunpack.c.l.b16 %v1349
    %v1394 = vunpack.c.h.b16 %v1349
    %v1395 = vunpack.c.l.b16 %v1350
    %v1396 = vunpack.c.h.b16 %v1350
    %v1397 = vunpack.c.l.b16 %v1351
    %v1398 = vunpack.c.h.b16 %v1351
    %v1399 = vunpack.c.l.b16 %v1352
    %v1400 = vunpack.c.h.b16 %v1352
    %v1401 = vunpack.c.l.b16 %v1353
    %v1402 = vunpack.c.h.b16 %v1353
    %v1403 = vunpack.c.l.b16 %v1354
    %v1404 = vunpack.c.h.b16 %v1354
    %v1405 = vunpack.c.l.b16 %v1355
    %v1406 = vunpack.c.h.b16 %v1355
    %v1407 = vunpack.c.l.b16 %v1356
    %v1408 = vunpack.c.h.b16 %v1356
    %v1409 = vunpack.c.l.b16 %v1357
    %v1410 = vunpack.c.h.b16 %v1357
    %v1411 = vunpack.c.l.b16 %v1358
    %v1412 = vunpack.c.h.b16 %v1358
    %v1413 = vpack.c.b16 %v1383, %v1381
    %v1414 = vpack.c.b16 %v1384, %v1382
    %v1415 = vpack.c.b16 %v1387, %v1385
    %v1416 = vpack.c.b16 %v1388, %v1386
    %v1417 = vpack.c.b16 %v1391, %v1389
    %v1418 = vpack.c.b16 %v1392, %v1390
    %v1419 = vpack.c.b16 %v1395, %v1393
    %v1420 = vpack.c.b16 %v1396, %v1394
    %v1421 = vpack.c.b16 %v1399, %v1397
    %v1422 = vpack.c.b16 %v1400, %v1398
    %v1423 = vpack.c.b16 %v1403, %v1401
    %v1424 = vpack.c.b16 %v1404, %v1402
    %v1425 = vpack.c.b16 %v1407, %v1405
    %v1426 = vpack.c.b16 %v1408, %v1406
    %v1427 = vpack.c.b16 %v1411, %v1409
    %v1428 = vpack.c.b16 %v1412, %v1410
    %1445 = vmatpush.bf16.msra.mxu0 %v1427
    %1446 = vmatpush.bf16.msra.mxu0 %v1425
    %1447 = vmatpush.bf16.msra.mxu0 %v1423
    %1448 = vmatpush.bf16.msra.mxu0 %v1421
    %1449 = vmatpush.bf16.msra.mxu0 %v1419
    %1450 = vmatpush.bf16.msra.mxu0 %v1417
    %1451 = vmatpush.bf16.msra.mxu0 %v1415
    %1452 = vmatpush.bf16.msra.mxu0 %v1413
    %1453 = vmatmul.bf16.gmra.mxu0 %v145
    %v1454 = vpop.f32.mrf.mxu0
    %v1455 = vadd.f32 %v1361, %v1454
    %v1456 = vpop.f32.mrf.mxu0
    %v1457 = vadd.f32 %v1361, %v1456
    %1458 = vmatmul.bf16.gmra.mxu0 %v146
    %v1459 = vpop.f32.mrf.mxu0
    %v1460 = vadd.f32 %v1361, %v1459
    %v1461 = vpop.f32.mrf.mxu0
    %v1462 = vadd.f32 %v1361, %v1461
    %1463 = vdwg.mxu0
    %1464 = vmatpush.bf16.msra.mxu0 %v1428
    %1465 = vmatpush.bf16.msra.mxu0 %v1426
    %1466 = vmatpush.bf16.msra.mxu0 %v1424
    %1467 = vmatpush.bf16.msra.mxu0 %v1422
    %1468 = vmatpush.bf16.msra.mxu0 %v1420
    %1469 = vmatpush.bf16.msra.mxu0 %v1418
    %1470 = vmatpush.bf16.msra.mxu0 %v1416
    %1471 = vmatpush.bf16.msra.mxu0 %v1414
    %1472 = vmatmul.bf16.gmra.mxu0 %v145
    %v1473 = vpop.f32.mrf.mxu0
    %v1474 = vadd.f32 %v1362, %v1473
    %v1475 = vpop.f32.mrf.mxu0
    %v1476 = vadd.f32 %v1362, %v1475
    %1477 = vmatmul.bf16.gmra.mxu0 %v146
    %v1478 = vpop.f32.mrf.mxu0
    %v1479 = vadd.f32 %v1362, %v1478
    %v1480 = vpop.f32.mrf.mxu0
    %v1481 = vadd.f32 %v1362, %v1480
    %1482 = vdwg.mxu0
    %v1483 = vxor.u32 %v1455, 2147483648
    %v1484 = vxor.u32 %v1474, 2147483648
    %v1485 = vxor.u32 %v1457, 2147483648
    %v1486 = vxor.u32 %v1476, 2147483648
    %v1487 = vxor.u32 %v1460, 2147483648
    %v1488 = vxor.u32 %v1479, 2147483648
    %v1489 = vxor.u32 %v1462, 2147483648
    %v1490 = vxor.u32 %v1481, 2147483648
    %v1491 = vmul.f32 %v1483, 1.442695
    %v1492 = vpow.pop %v1491
    %v1493 = vmul.f32 %v1484, 1.442695
    %v1494 = vpow.pop %v1493
    %v1495 = vmul.f32 %v1485, 1.442695
    %v1496 = vpow.pop %v1495
    %v1497 = vmul.f32 %v1486, 1.442695
    %v1498 = vpow.pop %v1497
    %v1499 = vmul.f32 %v1487, 1.442695
    %v1500 = vpow.pop %v1499
    %v1501 = vmul.f32 %v1488, 1.442695
    %v1502 = vpow.pop %v1501
    %v1503 = vmul.f32 %v1489, 1.442695
    %v1504 = vpow.pop %v1503
    %v1505 = vmul.f32 %v1490, 1.442695
    %v1506 = vpow.pop %v1505
    %v1507 = vadd.f32 %v1492, 1.0
    %v1508 = vadd.f32 %v1494, 1.0
    %v1509 = vadd.f32 %v1496, 1.0
    %v1510 = vadd.f32 %v1498, 1.0
    %v1511 = vadd.f32 %v1500, 1.0
    %v1512 = vadd.f32 %v1502, 1.0
    %v1513 = vadd.f32 %v1504, 1.0
    %v1514 = vadd.f32 %v1506, 1.0
    %v1515 = vrcp.pop %v1507
    %v1516 = vmul.f32 %v1507, %v1515
    %v1517 = vsub.f32 1.0, %v1516
    %v1518 = vmul.f32 %v1515, %v1517
    %v1519 = vadd.f32 %v1515, %v1518
    %vm1520 = vweird.f32 %v1507
    %vm1521 = vweird.f32 %v1515
    %vm1522 = vmor %vm1520, %vm1521
    %v1523 = vsel %vm1522, %v1515, %v1519
    %v1524 = vand.u32 2147483647, %v1507
    %vm1525 = vcmp.eq.f32.partialorder %v1524, 8.507059e+37
    %v1526 = vand.u32 %v1507, 2147483648
    %v1527 = vor.u32 1.1754944e-38, %v1526
    %v1528 = vsel %vm1525, %v1527, %v1523
    %v1529 = vmul.f32 1.0, %v1528
    %v1530 = vrcp.pop %v1508
    %v1531 = vmul.f32 %v1508, %v1530
    %v1532 = vsub.f32 1.0, %v1531
    %v1533 = vmul.f32 %v1530, %v1532
    %v1534 = vadd.f32 %v1530, %v1533
    %vm1535 = vweird.f32 %v1508
    %vm1536 = vweird.f32 %v1530
    %vm1537 = vmor %vm1535, %vm1536
    %v1538 = vsel %vm1537, %v1530, %v1534
    %v1539 = vand.u32 2147483647, %v1508
    %vm1540 = vcmp.eq.f32.partialorder %v1539, 8.507059e+37
    %v1541 = vand.u32 %v1508, 2147483648
    %v1542 = vor.u32 1.1754944e-38, %v1541
    %v1543 = vsel %vm1540, %v1542, %v1538
    %v1544 = vmul.f32 1.0, %v1543
    %v1545 = vrcp.pop %v1509
    %v1546 = vmul.f32 %v1509, %v1545
    %v1547 = vsub.f32 1.0, %v1546
    %v1548 = vmul.f32 %v1545, %v1547
    %v1549 = vadd.f32 %v1545, %v1548
    %vm1550 = vweird.f32 %v1509
    %vm1551 = vweird.f32 %v1545
    %vm1552 = vmor %vm1550, %vm1551
    %v1553 = vsel %vm1552, %v1545, %v1549
    %v1554 = vand.u32 2147483647, %v1509
    %vm1555 = vcmp.eq.f32.partialorder %v1554, 8.507059e+37
    %v1556 = vand.u32 %v1509, 2147483648
    %v1557 = vor.u32 1.1754944e-38, %v1556
    %v1558 = vsel %vm1555, %v1557, %v1553
    %v1559 = vmul.f32 1.0, %v1558
    %v1560 = vrcp.pop %v1510
    %v1561 = vmul.f32 %v1510, %v1560
    %v1562 = vsub.f32 1.0, %v1561
    %v1563 = vmul.f32 %v1560, %v1562
    %v1564 = vadd.f32 %v1560, %v1563
    %vm1565 = vweird.f32 %v1510
    %vm1566 = vweird.f32 %v1560
    %vm1567 = vmor %vm1565, %vm1566
    %v1568 = vsel %vm1567, %v1560, %v1564
    %v1569 = vand.u32 2147483647, %v1510
    %vm1570 = vcmp.eq.f32.partialorder %v1569, 8.507059e+37
    %v1571 = vand.u32 %v1510, 2147483648
    %v1572 = vor.u32 1.1754944e-38, %v1571
    %v1573 = vsel %vm1570, %v1572, %v1568
    %v1574 = vmul.f32 1.0, %v1573
    %v1575 = vrcp.pop %v1511
    %v1576 = vmul.f32 %v1511, %v1575
    %v1577 = vsub.f32 1.0, %v1576
    %v1578 = vmul.f32 %v1575, %v1577
    %v1579 = vadd.f32 %v1575, %v1578
    %vm1580 = vweird.f32 %v1511
    %vm1581 = vweird.f32 %v1575
    %vm1582 = vmor %vm1580, %vm1581
    %v1583 = vsel %vm1582, %v1575, %v1579
    %v1584 = vand.u32 2147483647, %v1511
    %vm1585 = vcmp.eq.f32.partialorder %v1584, 8.507059e+37
    %v1586 = vand.u32 %v1511, 2147483648
    %v1587 = vor.u32 1.1754944e-38, %v1586
    %v1588 = vsel %vm1585, %v1587, %v1583
    %v1589 = vmul.f32 1.0, %v1588
    %v1590 = vrcp.pop %v1512
    %v1591 = vmul.f32 %v1512, %v1590
    %v1592 = vsub.f32 1.0, %v1591
    %v1593 = vmul.f32 %v1590, %v1592
    %v1594 = vadd.f32 %v1590, %v1593
    %vm1595 = vweird.f32 %v1512
    %vm1596 = vweird.f32 %v1590
    %vm1597 = vmor %vm1595, %vm1596
    %v1598 = vsel %vm1597, %v1590, %v1594
    %v1599 = vand.u32 2147483647, %v1512
    %vm1600 = vcmp.eq.f32.partialorder %v1599, 8.507059e+37
    %v1601 = vand.u32 %v1512, 2147483648
    %v1602 = vor.u32 1.1754944e-38, %v1601
    %v1603 = vsel %vm1600, %v1602, %v1598
    %v1604 = vmul.f32 1.0, %v1603
    %v1605 = vrcp.pop %v1513
    %v1606 = vmul.f32 %v1513, %v1605
    %v1607 = vsub.f32 1.0, %v1606
    %v1608 = vmul.f32 %v1605, %v1607
    %v1609 = vadd.f32 %v1605, %v1608
    %vm1610 = vweird.f32 %v1513
    %vm1611 = vweird.f32 %v1605
    %vm1612 = vmor %vm1610, %vm1611
    %v1613 = vsel %vm1612, %v1605, %v1609
    %v1614 = vand.u32 2147483647, %v1513
    %vm1615 = vcmp.eq.f32.partialorder %v1614, 8.507059e+37
    %v1616 = vand.u32 %v1513, 2147483648
    %v1617 = vor.u32 1.1754944e-38, %v1616
    %v1618 = vsel %vm1615, %v1617, %v1613
    %v1619 = vmul.f32 1.0, %v1618
    %v1620 = vrcp.pop %v1514
    %v1621 = vmul.f32 %v1514, %v1620
    %v1622 = vsub.f32 1.0, %v1621
    %v1623 = vmul.f32 %v1620, %v1622
    %v1624 = vadd.f32 %v1620, %v1623
    %vm1625 = vweird.f32 %v1514
    %vm1626 = vweird.f32 %v1620
    %vm1627 = vmor %vm1625, %vm1626
    %v1628 = vsel %vm1627, %v1620, %v1624
    %v1629 = vand.u32 2147483647, %v1514
    %vm1630 = vcmp.eq.f32.partialorder %v1629, 8.507059e+37
    %v1631 = vand.u32 %v1514, 2147483648
    %v1632 = vor.u32 1.1754944e-38, %v1631
    %v1633 = vsel %vm1630, %v1632, %v1628
    %v1634 = vmul.f32 1.0, %v1633
    %v1635 = vmul.f32 %v1455, %v1529
    %v1636 = vmul.f32 %v1474, %v1544
    %v1637 = vmul.f32 %v1457, %v1559
    %v1638 = vmul.f32 %v1476, %v1574
    %v1639 = vmul.f32 %v1460, %v1589
    %v1640 = vmul.f32 %v1479, %v1604
    %v1641 = vmul.f32 %v1462, %v1619
    %v1642 = vmul.f32 %v1481, %v1634
    %v1643 = vmul.f32 %v1455, %v1635
    %v1644 = vmul.f32 %v1474, %v1636
    %v1645 = vmul.f32 %v1457, %v1637
    %v1646 = vmul.f32 %v1476, %v1638
    %v1647 = vmul.f32 %v1460, %v1639
    %v1648 = vmul.f32 %v1479, %v1640
    %v1649 = vmul.f32 %v1462, %v1641
    %v1650 = vmul.f32 %v1481, %v1642
    %v1651 = vpack.c.bf16 %v1645, %v1643
    %v1652 = vpack.c.bf16 %v1646, %v1644
    %v1653 = vpack.c.bf16 %v1649, %v1647
    %v1654 = vpack.c.bf16 %v1650, %v1648
    %v1655 = vld [vmem:[%s8] sm:$0xf]
    %v1656 = vld [vmem:[%s8 + $0x4] sm:$0xf]
    %v1657 = vld [vmem:[%s8 + $0x8] sm:$0xf]
    %v1658 = vld [vmem:[%s8 + $0xc] sm:$0xf]
    %v1659 = vld [vmem:[%s8 + $0x10] sm:$0xf]
    %v1660 = vld [vmem:[%s8 + $0x14] sm:$0xf]
    %v1661 = vld [vmem:[%s8 + $0x18] sm:$0xf]
    %v1662 = vld [vmem:[%s8 + $0x1c] sm:$0xf]
    %v1663 = vld [vmem:[%s8 + $0x20] sm:$0xf]
    %v1664 = vld [vmem:[%s8 + $0x24] sm:$0xf]
    %v1665 = vld [vmem:[%s8 + $0x28] sm:$0xf]
    %v1666 = vld [vmem:[%s8 + $0x2c] sm:$0xf]
    %v1667 = vld [vmem:[%s8 + $0x30] sm:$0xf]
    %v1668 = vld [vmem:[%s8 + $0x34] sm:$0xf]
    %v1669 = vld [vmem:[%s8 + $0x38] sm:$0xf]
    %v1670 = vld [vmem:[%s8 + $0x3c] sm:$0xf]
    %v1671 = vld [vmem:[%s8 + $0x40] sm:$0xf]
    %v1672 = vld [vmem:[%s8 + $0x44] sm:$0xf]
    %v1673 = vld [vmem:[%s8 + $0x48] sm:$0xf]
    %v1674 = vld [vmem:[%s8 + $0x4c] sm:$0xf]
    %v1675 = vld [vmem:[%s8 + $0x50] sm:$0xf]
    %v1676 = vld [vmem:[%s8 + $0x54] sm:$0xf]
    %v1677 = vld [vmem:[%s8 + $0x58] sm:$0xf]
    %v1678 = vld [vmem:[%s8 + $0x5c] sm:$0xf]
    %v1679 = vld [vmem:[%s8 + $0x60] sm:$0xf]
    %v1680 = vld [vmem:[%s8 + $0x64] sm:$0xf]
    %v1681 = vld [vmem:[%s8 + $0x68] sm:$0xf]
    %v1682 = vld [vmem:[%s8 + $0x6c] sm:$0xf]
    %v1683 = vld [vmem:[%s8 + $0x70] sm:$0xf]
    %v1684 = vld [vmem:[%s8 + $0x74] sm:$0xf]
    %v1685 = vld [vmem:[%s8 + $0x78] sm:$0xf]
    %v1686 = vld [vmem:[%s8 + $0x7c] sm:$0xf]
    %v1719 = vunpack.c.l.b16 %v1655
    %v1720 = vunpack.c.l.b16 %v1656
    %v1721 = vunpack.c.l.b16 %v1657
    %v1722 = vunpack.c.l.b16 %v1658
    %v1723 = vunpack.c.l.b16 %v1659
    %v1724 = vunpack.c.l.b16 %v1660
    %v1725 = vunpack.c.l.b16 %v1661
    %v1726 = vunpack.c.l.b16 %v1662
    %v1727 = vunpack.c.l.b16 %v1663
    %v1728 = vunpack.c.l.b16 %v1664
    %v1729 = vunpack.c.l.b16 %v1665
    %v1730 = vunpack.c.l.b16 %v1666
    %v1731 = vunpack.c.l.b16 %v1667
    %v1732 = vunpack.c.l.b16 %v1668
    %v1733 = vunpack.c.l.b16 %v1669
    %v1734 = vunpack.c.l.b16 %v1670
    %v1735 = vunpack.c.l.b16 %v1671
    %v1736 = vunpack.c.l.b16 %v1672
    %v1737 = vunpack.c.l.b16 %v1673
    %v1738 = vunpack.c.l.b16 %v1674
    %v1739 = vunpack.c.l.b16 %v1675
    %v1740 = vunpack.c.l.b16 %v1676
    %v1741 = vunpack.c.l.b16 %v1677
    %v1742 = vunpack.c.l.b16 %v1678
    %v1743 = vunpack.c.l.b16 %v1679
    %v1744 = vunpack.c.l.b16 %v1680
    %v1745 = vunpack.c.l.b16 %v1681
    %v1746 = vunpack.c.l.b16 %v1682
    %v1747 = vunpack.c.l.b16 %v1683
    %v1748 = vunpack.c.l.b16 %v1684
    %v1749 = vunpack.c.l.b16 %v1685
    %v1750 = vunpack.c.l.b16 %v1686
    %v1751 = vpack.c.b16 %v1720, %v1719
    %v1752 = vpack.c.b16 %v1722, %v1721
    %v1753 = vpack.c.b16 %v1724, %v1723
    %v1754 = vpack.c.b16 %v1726, %v1725
    %v1755 = vpack.c.b16 %v1728, %v1727
    %v1756 = vpack.c.b16 %v1730, %v1729
    %v1757 = vpack.c.b16 %v1732, %v1731
    %v1758 = vpack.c.b16 %v1734, %v1733
    %v1759 = vpack.c.b16 %v1736, %v1735
    %v1760 = vpack.c.b16 %v1738, %v1737
    %v1761 = vpack.c.b16 %v1740, %v1739
    %v1762 = vpack.c.b16 %v1742, %v1741
    %v1763 = vpack.c.b16 %v1744, %v1743
    %v1764 = vpack.c.b16 %v1746, %v1745
    %v1765 = vpack.c.b16 %v1748, %v1747
    %v1766 = vpack.c.b16 %v1750, %v1749
    %1783 = vmatpush.bf16.msra.mxu0 %v1758
    %1784 = vmatpush.bf16.msra.mxu0 %v1757
    %1785 = vmatpush.bf16.msra.mxu0 %v1756
    %1786 = vmatpush.bf16.msra.mxu0 %v1755
    %1787 = vmatpush.bf16.msra.mxu0 %v1754
    %1788 = vmatpush.bf16.msra.mxu0 %v1753
    %1789 = vmatpush.bf16.msra.mxu0 %v1752
    %1790 = vmatpush.bf16.msra.mxu0 %v1751
    %1791 = vmatmul.bf16.gmra.mxu0 %v1651
    %v1792 = vpop.f32.mrf.mxu0
    %v1793 = vadd.f32 0.0, %v1792
    %v1794 = vpop.f32.mrf.mxu0
    %v1795 = vadd.f32 0.0, %v1794
    %1796 = vmatmul.bf16.gmra.mxu0 %v1653
    %v1797 = vpop.f32.mrf.mxu0
    %v1798 = vadd.f32 0.0, %v1797
    %v1799 = vpop.f32.mrf.mxu0
    %v1800 = vadd.f32 0.0, %v1799
    %1801 = vdwg.mxu0
    %1802 = vmatpush.bf16.msra.mxu0 %v1766
    %1803 = vmatpush.bf16.msra.mxu0 %v1765
    %1804 = vmatpush.bf16.msra.mxu0 %v1764
    %1805 = vmatpush.bf16.msra.mxu0 %v1763
    %1806 = vmatpush.bf16.msra.mxu0 %v1762
    %1807 = vmatpush.bf16.msra.mxu0 %v1761
    %1808 = vmatpush.bf16.msra.mxu0 %v1760
    %1809 = vmatpush.bf16.msra.mxu0 %v1759
    %1810 = vmatmul.bf16.gmra.mxu0 %v1652
    %v1811 = vpop.f32.mrf.mxu0
    %v1812 = vadd.f32 %v1793, %v1811
    %v1813 = vpop.f32.mrf.mxu0
    %v1814 = vadd.f32 %v1795, %v1813
    %1815 = vmatmul.bf16.gmra.mxu0 %v1654
    %v1816 = vpop.f32.mrf.mxu0
    %v1817 = vadd.f32 %v1798, %v1816
    %v1818 = vpop.f32.mrf.mxu0
    %v1819 = vadd.f32 %v1800, %v1818
    %1820 = vdwg.mxu0
    %v1821 = vadd.f32 %v1339, %v1812
    %v1822 = vadd.f32 %v1340, %v1814
    %v1823 = vadd.f32 %v1341, %v1817
    %v1824 = vadd.f32 %v1342, %v1819
    %v1825 = vld [vmem:[%s9] sm:$0x1]
    %v1827 = vperm.slane %v1825, 0
    %v1829 = vadd.f32 %v1821, %v1827
    %v1830 = vadd.f32 %v1822, %v1827
    %v1831 = vadd.f32 %v1823, %v1827
    %v1832 = vadd.f32 %v1824, %v1827
    %s1833 = scalar_lea.vmem %s1, 1
    %v1834 = vld [vmem:[%s1833] sm:$0x1]
    %v1835 = vmul.f32 %v1829, %v1829
    %v1836 = vmul.f32 %v1830, %v1830
    %v1837 = vmul.f32 %v1831, %v1831
    %v1838 = vmul.f32 %v1832, %v1832
    %1839 = vadd.xlane.f32.xlu0 %v1835
    %v1840 = vpop.xlane.xlu0 %1839
    %1841 = vadd.xlane.f32.xlu0 %v1836
    %v1842 = vpop.xlane.xlu0 %1841
    %1843 = vadd.xlane.f32.xlu0 %v1837
    %v1844 = vpop.xlane.xlu0 %1843
    %1845 = vadd.xlane.f32.xlu0 %v1838
    %v1846 = vpop.xlane.xlu0 %1845
    %v1847 = vmul.f32 %v1840, %v85
    %v1848 = vmul.f32 %v1842, %v85
    %v1849 = vmul.f32 %v1844, %v85
    %v1850 = vmul.f32 %v1846, %v85
    %v1851 = vadd.f32 %v1847, 1e-06
    %v1852 = vadd.f32 %v1848, 1e-06
    %v1853 = vadd.f32 %v1849, 1e-06
    %v1854 = vadd.f32 %v1850, 1e-06
    %v1855 = vrsqrt.pop %v1851
    %v1856 = vmul.f32 %v1855, %v1851
    %v1857 = vmul.f32 %v1856, %v1855
    %v1858 = vmul.f32 0.5, %v1857
    %v1859 = vsub.f32 1.5, %v1858
    %v1860 = vmul.f32 %v1855, %v1859
    %vm1861 = vweird.f32 %v1851
    %vm1862 = vweird.f32 %v1855
    %vm1863 = vmor %vm1861, %vm1862
    %v1864 = vsel %vm1863, %v1855, %v1860
    %v1865 = vrsqrt.pop %v1852
    %v1866 = vmul.f32 %v1865, %v1852
    %v1867 = vmul.f32 %v1866, %v1865
    %v1868 = vmul.f32 0.5, %v1867
    %v1869 = vsub.f32 1.5, %v1868
    %v1870 = vmul.f32 %v1865, %v1869
    %vm1871 = vweird.f32 %v1852
    %vm1872 = vweird.f32 %v1865
    %vm1873 = vmor %vm1871, %vm1872
    %v1874 = vsel %vm1873, %v1865, %v1870
    %v1875 = vrsqrt.pop %v1853
    %v1876 = vmul.f32 %v1875, %v1853
    %v1877 = vmul.f32 %v1876, %v1875
    %v1878 = vmul.f32 0.5, %v1877
    %v1879 = vsub.f32 1.5, %v1878
    %v1880 = vmul.f32 %v1875, %v1879
    %vm1881 = vweird.f32 %v1853
    %vm1882 = vweird.f32 %v1875
    %vm1883 = vmor %vm1881, %vm1882
    %v1884 = vsel %vm1883, %v1875, %v1880
    %v1885 = vrsqrt.pop %v1854
    %v1886 = vmul.f32 %v1885, %v1854
    %v1887 = vmul.f32 %v1886, %v1885
    %v1888 = vmul.f32 0.5, %v1887
    %v1889 = vsub.f32 1.5, %v1888
    %v1890 = vmul.f32 %v1885, %v1889
    %vm1891 = vweird.f32 %v1854
    %vm1892 = vweird.f32 %v1885
    %vm1893 = vmor %vm1891, %vm1892
    %v1894 = vsel %vm1893, %v1885, %v1890
    %v1895 = vmul.f32 %v1829, %v1864
    %v1896 = vmul.f32 %v1830, %v1874
    %v1897 = vmul.f32 %v1831, %v1884
    %v1898 = vmul.f32 %v1832, %v1894
    %v1900 = vperm.slane %v1834, 0
    %v1902 = vmul.f32 %v1895, %v1900
    %v1903 = vmul.f32 %v1896, %v1900
    %v1904 = vmul.f32 %v1897, %v1900
    %v1905 = vmul.f32 %v1898, %v1900
    %v1906 = vpack.c.bf16 %v1903, %v1902
    %v1907 = vpack.c.bf16 %v1905, %v1904
    %s1908 = scalar_lea.vmem %s2, 128
    %v1909 = vld [vmem:[%s1908] sm:$0xff]
    %v1910 = vld [vmem:[%s1908 + $0x8] sm:$0xff]
    %v1911 = vld [vmem:[%s1908 + $0x10] sm:$0xff]
    %v1912 = vld [vmem:[%s1908 + $0x18] sm:$0xff]
    %v1913 = vld [vmem:[%s1908 + $0x20] sm:$0xff]
    %v1914 = vld [vmem:[%s1908 + $0x28] sm:$0xff]
    %v1915 = vld [vmem:[%s1908 + $0x30] sm:$0xff]
    %v1916 = vld [vmem:[%s1908 + $0x38] sm:$0xff]
    %v1917 = vld [vmem:[%s1908 + $0x40] sm:$0xff]
    %v1918 = vld [vmem:[%s1908 + $0x48] sm:$0xff]
    %v1919 = vld [vmem:[%s1908 + $0x50] sm:$0xff]
    %v1920 = vld [vmem:[%s1908 + $0x58] sm:$0xff]
    %v1921 = vld [vmem:[%s1908 + $0x60] sm:$0xff]
    %v1922 = vld [vmem:[%s1908 + $0x68] sm:$0xff]
    %v1923 = vld [vmem:[%s1908 + $0x70] sm:$0xff]
    %v1924 = vld [vmem:[%s1908 + $0x78] sm:$0xff]
    %s1925 = scalar_lea.vmem %s3, 2
    %v1926 = vld [vmem:[%s1925] sm:$0x3]
    %v1928 = vperm.slane %v1926, 0
    %v1929 = vperm.slane %v1926, 1
    %v1948 = vunpack.c.l.b16 %v1909
    %v1949 = vunpack.c.h.b16 %v1909
    %v1950 = vunpack.c.l.b16 %v1910
    %v1951 = vunpack.c.h.b16 %v1910
    %v1952 = vunpack.c.l.b16 %v1911
    %v1953 = vunpack.c.h.b16 %v1911
    %v1954 = vunpack.c.l.b16 %v1912
    %v1955 = vunpack.c.h.b16 %v1912
    %v1956 = vunpack.c.l.b16 %v1913
    %v1957 = vunpack.c.h.b16 %v1913
    %v1958 = vunpack.c.l.b16 %v1914
    %v1959 = vunpack.c.h.b16 %v1914
    %v1960 = vunpack.c.l.b16 %v1915
    %v1961 = vunpack.c.h.b16 %v1915
    %v1962 = vunpack.c.l.b16 %v1916
    %v1963 = vunpack.c.h.b16 %v1916
    %v1964 = vunpack.c.l.b16 %v1917
    %v1965 = vunpack.c.h.b16 %v1917
    %v1966 = vunpack.c.l.b16 %v1918
    %v1967 = vunpack.c.h.b16 %v1918
    %v1968 = vunpack.c.l.b16 %v1919
    %v1969 = vunpack.c.h.b16 %v1919
    %v1970 = vunpack.c.l.b16 %v1920
    %v1971 = vunpack.c.h.b16 %v1920
    %v1972 = vunpack.c.l.b16 %v1921
    %v1973 = vunpack.c.h.b16 %v1921
    %v1974 = vunpack.c.l.b16 %v1922
    %v1975 = vunpack.c.h.b16 %v1922
    %v1976 = vunpack.c.l.b16 %v1923
    %v1977 = vunpack.c.h.b16 %v1923
    %v1978 = vunpack.c.l.b16 %v1924
    %v1979 = vunpack.c.h.b16 %v1924
    %v1980 = vpack.c.b16 %v1950, %v1948
    %v1981 = vpack.c.b16 %v1951, %v1949
    %v1982 = vpack.c.b16 %v1954, %v1952
    %v1983 = vpack.c.b16 %v1955, %v1953
    %v1984 = vpack.c.b16 %v1958, %v1956
    %v1985 = vpack.c.b16 %v1959, %v1957
    %v1986 = vpack.c.b16 %v1962, %v1960
    %v1987 = vpack.c.b16 %v1963, %v1961
    %v1988 = vpack.c.b16 %v1966, %v1964
    %v1989 = vpack.c.b16 %v1967, %v1965
    %v1990 = vpack.c.b16 %v1970, %v1968
    %v1991 = vpack.c.b16 %v1971, %v1969
    %v1992 = vpack.c.b16 %v1974, %v1972
    %v1993 = vpack.c.b16 %v1975, %v1973
    %v1994 = vpack.c.b16 %v1978, %v1976
    %v1995 = vpack.c.b16 %v1979, %v1977
    %2012 = vmatpush.bf16.msra.mxu0 %v1994
    %2013 = vmatpush.bf16.msra.mxu0 %v1992
    %2014 = vmatpush.bf16.msra.mxu0 %v1990
    %2015 = vmatpush.bf16.msra.mxu0 %v1988
    %2016 = vmatpush.bf16.msra.mxu0 %v1986
    %2017 = vmatpush.bf16.msra.mxu0 %v1984
    %2018 = vmatpush.bf16.msra.mxu0 %v1982
    %2019 = vmatpush.bf16.msra.mxu0 %v1980
    %2020 = vmatmul.bf16.gmra.mxu0 %v1906
    %v2021 = vpop.f32.mrf.mxu0
    %v2022 = vadd.f32 %v1928, %v2021
    %v2023 = vpop.f32.mrf.mxu0
    %v2024 = vadd.f32 %v1928, %v2023
    %2025 = vmatmul.bf16.gmra.mxu0 %v1907
    %v2026 = vpop.f32.mrf.mxu0
    %v2027 = vadd.f32 %v1928, %v2026
    %v2028 = vpop.f32.mrf.mxu0
    %v2029 = vadd.f32 %v1928, %v2028
    %2030 = vdwg.mxu0
    %2031 = vmatpush.bf16.msra.mxu0 %v1995
    %2032 = vmatpush.bf16.msra.mxu0 %v1993
    %2033 = vmatpush.bf16.msra.mxu0 %v1991
    %2034 = vmatpush.bf16.msra.mxu0 %v1989
    %2035 = vmatpush.bf16.msra.mxu0 %v1987
    %2036 = vmatpush.bf16.msra.mxu0 %v1985
    %2037 = vmatpush.bf16.msra.mxu0 %v1983
    %2038 = vmatpush.bf16.msra.mxu0 %v1981
    %2039 = vmatmul.bf16.gmra.mxu0 %v1906
    %v2040 = vpop.f32.mrf.mxu0
    %v2041 = vadd.f32 %v1929, %v2040
    %v2042 = vpop.f32.mrf.mxu0
    %v2043 = vadd.f32 %v1929, %v2042
    %2044 = vmatmul.bf16.gmra.mxu0 %v1907
    %v2045 = vpop.f32.mrf.mxu0
    %v2046 = vadd.f32 %v1929, %v2045
    %v2047 = vpop.f32.mrf.mxu0
    %v2048 = vadd.f32 %v1929, %v2047
    %2049 = vdwg.mxu0
    %v2050 = vpack.c.bf16 %v2022, %v2022
    %v2051 = vpack.c.bf16 %v2024, %v2024
    %v2052 = vpack.c.bf16 %v2027, %v2027
    %v2053 = vpack.c.bf16 %v2029, %v2029
    %v2054 = vpack.c.bf16 %v2041, %v2041
    %v2055 = vpack.c.bf16 %v2043, %v2043
    %v2056 = vpack.c.bf16 %v2046, %v2046
    %v2057 = vpack.c.bf16 %v2048, %v2048
    %v2060 = vunpack.c.l.b16 %v2050
    %v2061 = vunpack.c.l.b16 %v2051
    %v2062 = vpack.c.b16 %v2061, %v2060
    %2063 = vrot.lane.b32.xlu0 %v2062, 112
    %v2064 = vpop.permute.xlu0 %2063
    %2065 = vrot.lane.b32.xlu0 %v2062, 96
    %v2066 = vpop.permute.xlu0 %2065
    %2067 = vrot.lane.b32.xlu0 %v2062, 80
    %v2068 = vpop.permute.xlu0 %2067
    %2069 = vrot.lane.b32.xlu0 %v2062, 64
    %v2070 = vpop.permute.xlu0 %2069
    %2071 = vrot.lane.b32.xlu0 %v2062, 48
    %v2072 = vpop.permute.xlu0 %2071
    %2073 = vrot.lane.b32.xlu0 %v2062, 32
    %v2074 = vpop.permute.xlu0 %2073
    %2075 = vrot.lane.b32.xlu0 %v2062, 16
    %v2076 = vpop.permute.xlu0 %2075
    %v2079 = vunpack.c.l.b16 %v2054
    %v2080 = vunpack.c.l.b16 %v2055
    %v2081 = vpack.c.b16 %v2080, %v2079
    %v2083 = vsel %vm319, %v2062, 0
    %v2086 = vsel %vm319, %v2064, 0
    %v2089 = vsel %vm319, %v2066, 0
    %v2092 = vsel %vm319, %v2068, 0
    %v2095 = vsel %vm319, %v2081, 0
    %2097 = vmatpush.bf16.xpose.msra.mxu0 0
    %2098 = vmatpush.bf16.xpose.msra.mxu0 0
    %2099 = vmatpush.bf16.xpose.msra.mxu0 0
    %2100 = vmatpush.bf16.xpose.msra.mxu0 0
    %2101 = vmatpush.bf16.xpose.msra.mxu0 0
    %2102 = vmatpush.bf16.xpose.msra.mxu0 0
    %2103 = vmatpush.bf16.xpose.msra.mxu0 0
    %2104 = vmatpush.bf16.xpose.msra.mxu0 %v2095
    %2105 = vmatmul.bf16.gmra.mxu0 %v2083
    %v2106 = vpop.f32.mrf.mxu0
    %v2107 = vadd.f32 0.0, %v2106
    %v2108 = vpop.f32.mrf.mxu0
    %v2109 = vadd.f32 0.0, %v2108
    %2110 = vmatmul.bf16.gmra.mxu0 %v2086
    %v2111 = vpop.f32.mrf.mxu0
    %v2112 = vadd.f32 0.0, %v2111
    %v2113 = vpop.f32.mrf.mxu0
    %v2114 = vadd.f32 0.0, %v2113
    %2115 = vmatmul.bf16.gmra.mxu0 %v2089
    %v2116 = vpop.f32.mrf.mxu0
    %v2117 = vadd.f32 0.0, %v2116
    %v2118 = vpop.f32.mrf.mxu0
    %v2119 = vadd.f32 0.0, %v2118
    %2120 = vmatmul.bf16.gmra.mxu0 %v2092
    %v2121 = vpop.f32.mrf.mxu0
    %v2122 = vadd.f32 0.0, %v2121
    %v2123 = vpop.f32.mrf.mxu0
    %v2124 = vadd.f32 0.0, %v2123
    %2125 = vdwg.mxu0
    %v2126 = vmul.f32 %v2107, 0.25
    %v2127 = vmul.f32 %v2109, 0.25
    %v2128 = vmul.f32 %v2112, 0.25
    %v2129 = vmul.f32 %v2114, 0.25
    %v2130 = vmul.f32 %v2117, 0.25
    %v2131 = vmul.f32 %v2119, 0.25
    %v2132 = vmul.f32 %v2122, 0.25
    %v2133 = vmul.f32 %v2124, 0.25
    %v2134 = vsel %vm319, %v2126, -inf
    %2135 = vmax.xlane.f32.xlu0 %v2134
    %v2136 = vpop.xlane.xlu0 %2135
    %v2137 = vsel %vm319, %v2127, -inf
    %2138 = vmax.xlane.f32.xlu0 %v2137
    %v2139 = vpop.xlane.xlu0 %2138
    %v2140 = vsel %vm319, %v2128, -inf
    %2141 = vmax.xlane.f32.xlu0 %v2140
    %v2142 = vpop.xlane.xlu0 %2141
    %v2143 = vsel %vm319, %v2129, -inf
    %2144 = vmax.xlane.f32.xlu0 %v2143
    %v2145 = vpop.xlane.xlu0 %2144
    %v2146 = vsel %vm319, %v2130, -inf
    %2147 = vmax.xlane.f32.xlu0 %v2146
    %v2148 = vpop.xlane.xlu0 %2147
    %v2149 = vsel %vm319, %v2131, -inf
    %2150 = vmax.xlane.f32.xlu0 %v2149
    %v2151 = vpop.xlane.xlu0 %2150
    %v2152 = vsel %vm319, %v2132, -inf
    %2153 = vmax.xlane.f32.xlu0 %v2152
    %v2154 = vpop.xlane.xlu0 %2153
    %v2155 = vsel %vm319, %v2133, -inf
    %2156 = vmax.xlane.f32.xlu0 %v2155
    %v2157 = vpop.xlane.xlu0 %2156
    %v2158 = vsub.f32 %v2126, %v2136
    %v2159 = vsub.f32 %v2127, %v2139
    %v2160 = vsub.f32 %v2128, %v2142
    %v2161 = vsub.f32 %v2129, %v2145
    %v2162 = vsub.f32 %v2130, %v2148
    %v2163 = vsub.f32 %v2131, %v2151
    %v2164 = vsub.f32 %v2132, %v2154
    %v2165 = vsub.f32 %v2133, %v2157
    %v2166 = vmul.f32 %v2158, 1.442695
    %v2167 = vpow.pop %v2166
    %v2168 = vmul.f32 %v2159, 1.442695
    %v2169 = vpow.pop %v2168
    %v2170 = vmul.f32 %v2160, 1.442695
    %v2171 = vpow.pop %v2170
    %v2172 = vmul.f32 %v2161, 1.442695
    %v2173 = vpow.pop %v2172
    %v2174 = vmul.f32 %v2162, 1.442695
    %v2175 = vpow.pop %v2174
    %v2176 = vmul.f32 %v2163, 1.442695
    %v2177 = vpow.pop %v2176
    %v2178 = vmul.f32 %v2164, 1.442695
    %v2179 = vpow.pop %v2178
    %v2180 = vmul.f32 %v2165, 1.442695
    %v2181 = vpow.pop %v2180
    %v2182 = vsel %vm319, %v2167, 0.0
    %2183 = vadd.xlane.f32.xlu0 %v2182
    %v2184 = vpop.xlane.xlu0 %2183
    %v2185 = vsel %vm319, %v2169, 0.0
    %2186 = vadd.xlane.f32.xlu0 %v2185
    %v2187 = vpop.xlane.xlu0 %2186
    %v2188 = vsel %vm319, %v2171, 0.0
    %2189 = vadd.xlane.f32.xlu0 %v2188
    %v2190 = vpop.xlane.xlu0 %2189
    %v2191 = vsel %vm319, %v2173, 0.0
    %2192 = vadd.xlane.f32.xlu0 %v2191
    %v2193 = vpop.xlane.xlu0 %2192
    %v2194 = vsel %vm319, %v2175, 0.0
    %2195 = vadd.xlane.f32.xlu0 %v2194
    %v2196 = vpop.xlane.xlu0 %2195
    %v2197 = vsel %vm319, %v2177, 0.0
    %2198 = vadd.xlane.f32.xlu0 %v2197
    %v2199 = vpop.xlane.xlu0 %2198
    %v2200 = vsel %vm319, %v2179, 0.0
    %2201 = vadd.xlane.f32.xlu0 %v2200
    %v2202 = vpop.xlane.xlu0 %2201
    %v2203 = vsel %vm319, %v2181, 0.0
    %2204 = vadd.xlane.f32.xlu0 %v2203
    %v2205 = vpop.xlane.xlu0 %2204
    %v2206 = vrcp.pop %v2184
    %v2207 = vrcp.pop %v2187
    %v2208 = vrcp.pop %v2190
    %v2209 = vrcp.pop %v2193
    %v2210 = vrcp.pop %v2196
    %v2211 = vrcp.pop %v2199
    %v2212 = vrcp.pop %v2202
    %v2213 = vrcp.pop %v2205
    %v2214 = vmul.f32 %v2167, %v2206
    %v2215 = vmul.f32 %v2169, %v2207
    %v2216 = vmul.f32 %v2171, %v2208
    %v2217 = vmul.f32 %v2173, %v2209
    %v2218 = vmul.f32 %v2175, %v2210
    %v2219 = vmul.f32 %v2177, %v2211
    %v2220 = vmul.f32 %v2179, %v2212
    %v2221 = vmul.f32 %v2181, %v2213
    %v2222 = vpack.c.bf16 %v2215, %v2214
    %v2223 = vpack.c.bf16 %v2217, %v2216
    %v2224 = vpack.c.bf16 %v2219, %v2218
    %v2225 = vpack.c.bf16 %v2221, %v2220
    %2226 = vrot.lane.b32.xlu0 %v2081, 96
    %v2227 = vpop.permute.xlu0 %2226
    %v2230 = vsel %vm319, %v2222, 0
    %v2233 = vsel %vm319, %v2223, 0
    %v2236 = vsel %vm319, %v2224, 0
    %v2239 = vsel %vm319, %v2225, 0
    %2241 = vmatpush.bf16.msra.mxu0 0
    %2242 = vmatpush.bf16.msra.mxu0 0
    %2243 = vmatpush.bf16.msra.mxu0 0
    %2244 = vmatpush.bf16.msra.mxu0 0
    %2245 = vmatpush.bf16.msra.mxu0 0
    %2246 = vmatpush.bf16.msra.mxu0 0
    %2247 = vmatpush.bf16.msra.mxu0 0
    %2248 = vmatpush.bf16.msra.mxu0 %v2227
    %2249 = vmatmul.bf16.gmra.mxu0 %v2230
    %v2250 = vpop.f32.mrf.mxu0
    %v2251 = vadd.f32 0.0, %v2250
    %v2252 = vpop.f32.mrf.mxu0
    %v2253 = vadd.f32 0.0, %v2252
    %2254 = vmatmul.bf16.gmra.mxu0 %v2233
    %v2255 = vpop.f32.mrf.mxu0
    %v2256 = vadd.f32 0.0, %v2255
    %v2257 = vpop.f32.mrf.mxu0
    %v2258 = vadd.f32 0.0, %v2257
    %2259 = vmatmul.bf16.gmra.mxu0 %v2236
    %v2260 = vpop.f32.mrf.mxu0
    %v2261 = vadd.f32 0.0, %v2260
    %v2262 = vpop.f32.mrf.mxu0
    %v2263 = vadd.f32 0.0, %v2262
    %2264 = vmatmul.bf16.gmra.mxu0 %v2239
    %v2265 = vpop.f32.mrf.mxu0
    %v2266 = vadd.f32 0.0, %v2265
    %v2267 = vpop.f32.mrf.mxu0
    %v2268 = vadd.f32 0.0, %v2267
    %2269 = vdwg.mxu0
    %2270 = vrot.lane.b32.xlu0 %v2081, 112
    %v2271 = vpop.permute.xlu0 %2270
    %v2273 = vsel %vm319, %v2070, 0
    %v2276 = vsel %vm319, %v2072, 0
    %v2279 = vsel %vm319, %v2074, 0
    %v2282 = vsel %vm319, %v2076, 0
    %v2285 = vsel %vm319, %v2271, 0
    %2287 = vmatpush.bf16.xpose.msra.mxu0 0
    %2288 = vmatpush.bf16.xpose.msra.mxu0 0
    %2289 = vmatpush.bf16.xpose.msra.mxu0 0
    %2290 = vmatpush.bf16.xpose.msra.mxu0 0
    %2291 = vmatpush.bf16.xpose.msra.mxu0 0
    %2292 = vmatpush.bf16.xpose.msra.mxu0 0
    %2293 = vmatpush.bf16.xpose.msra.mxu0 0
    %2294 = vmatpush.bf16.xpose.msra.mxu0 %v2285
    %2295 = vmatmul.bf16.gmra.mxu0 %v2273
    %v2296 = vpop.f32.mrf.mxu0
    %v2297 = vadd.f32 0.0, %v2296
    %v2298 = vpop.f32.mrf.mxu0
    %v2299 = vadd.f32 0.0, %v2298
    %2300 = vmatmul.bf16.gmra.mxu0 %v2276
    %v2301 = vpop.f32.mrf.mxu0
    %v2302 = vadd.f32 0.0, %v2301
    %v2303 = vpop.f32.mrf.mxu0
    %v2304 = vadd.f32 0.0, %v2303
    %2305 = vmatmul.bf16.gmra.mxu0 %v2279
    %v2306 = vpop.f32.mrf.mxu0
    %v2307 = vadd.f32 0.0, %v2306
    %v2308 = vpop.f32.mrf.mxu0
    %v2309 = vadd.f32 0.0, %v2308
    %2310 = vmatmul.bf16.gmra.mxu0 %v2282
    %v2311 = vpop.f32.mrf.mxu0
    %v2312 = vadd.f32 0.0, %v2311
    %v2313 = vpop.f32.mrf.mxu0
    %v2314 = vadd.f32 0.0, %v2313
    %2315 = vdwg.mxu0
    %v2316 = vmul.f32 %v2297, 0.25
    %v2317 = vmul.f32 %v2299, 0.25
    %v2318 = vmul.f32 %v2302, 0.25
    %v2319 = vmul.f32 %v2304, 0.25
    %v2320 = vmul.f32 %v2307, 0.25
    %v2321 = vmul.f32 %v2309, 0.25
    %v2322 = vmul.f32 %v2312, 0.25
    %v2323 = vmul.f32 %v2314, 0.25
    %v2324 = vsel %vm319, %v2316, -inf
    %2325 = vmax.xlane.f32.xlu0 %v2324
    %v2326 = vpop.xlane.xlu0 %2325
    %v2327 = vsel %vm319, %v2317, -inf
    %2328 = vmax.xlane.f32.xlu0 %v2327
    %v2329 = vpop.xlane.xlu0 %2328
    %v2330 = vsel %vm319, %v2318, -inf
    %2331 = vmax.xlane.f32.xlu0 %v2330
    %v2332 = vpop.xlane.xlu0 %2331
    %v2333 = vsel %vm319, %v2319, -inf
    %2334 = vmax.xlane.f32.xlu0 %v2333
    %v2335 = vpop.xlane.xlu0 %2334
    %v2336 = vsel %vm319, %v2320, -inf
    %2337 = vmax.xlane.f32.xlu0 %v2336
    %v2338 = vpop.xlane.xlu0 %2337
    %v2339 = vsel %vm319, %v2321, -inf
    %2340 = vmax.xlane.f32.xlu0 %v2339
    %v2341 = vpop.xlane.xlu0 %2340
    %v2342 = vsel %vm319, %v2322, -inf
    %2343 = vmax.xlane.f32.xlu0 %v2342
    %v2344 = vpop.xlane.xlu0 %2343
    %v2345 = vsel %vm319, %v2323, -inf
    %2346 = vmax.xlane.f32.xlu0 %v2345
    %v2347 = vpop.xlane.xlu0 %2346
    %v2348 = vsub.f32 %v2316, %v2326
    %v2349 = vsub.f32 %v2317, %v2329
    %v2350 = vsub.f32 %v2318, %v2332
    %v2351 = vsub.f32 %v2319, %v2335
    %v2352 = vsub.f32 %v2320, %v2338
    %v2353 = vsub.f32 %v2321, %v2341
    %v2354 = vsub.f32 %v2322, %v2344
    %v2355 = vsub.f32 %v2323, %v2347
    %v2356 = vmul.f32 %v2348, 1.442695
    %v2357 = vpow.pop %v2356
    %v2358 = vmul.f32 %v2349, 1.442695
    %v2359 = vpow.pop %v2358
    %v2360 = vmul.f32 %v2350, 1.442695
    %v2361 = vpow.pop %v2360
    %v2362 = vmul.f32 %v2351, 1.442695
    %v2363 = vpow.pop %v2362
    %v2364 = vmul.f32 %v2352, 1.442695
    %v2365 = vpow.pop %v2364
    %v2366 = vmul.f32 %v2353, 1.442695
    %v2367 = vpow.pop %v2366
    %v2368 = vmul.f32 %v2354, 1.442695
    %v2369 = vpow.pop %v2368
    %v2370 = vmul.f32 %v2355, 1.442695
    %v2371 = vpow.pop %v2370
    %v2372 = vsel %vm319, %v2357, 0.0
    %2373 = vadd.xlane.f32.xlu0 %v2372
    %v2374 = vpop.xlane.xlu0 %2373
    %v2375 = vsel %vm319, %v2359, 0.0
    %2376 = vadd.xlane.f32.xlu0 %v2375
    %v2377 = vpop.xlane.xlu0 %2376
    %v2378 = vsel %vm319, %v2361, 0.0
    %2379 = vadd.xlane.f32.xlu0 %v2378
    %v2380 = vpop.xlane.xlu0 %2379
    %v2381 = vsel %vm319, %v2363, 0.0
    %2382 = vadd.xlane.f32.xlu0 %v2381
    %v2383 = vpop.xlane.xlu0 %2382
    %v2384 = vsel %vm319, %v2365, 0.0
    %2385 = vadd.xlane.f32.xlu0 %v2384
    %v2386 = vpop.xlane.xlu0 %2385
    %v2387 = vsel %vm319, %v2367, 0.0
    %2388 = vadd.xlane.f32.xlu0 %v2387
    %v2389 = vpop.xlane.xlu0 %2388
    %v2390 = vsel %vm319, %v2369, 0.0
    %2391 = vadd.xlane.f32.xlu0 %v2390
    %v2392 = vpop.xlane.xlu0 %2391
    %v2393 = vsel %vm319, %v2371, 0.0
    %2394 = vadd.xlane.f32.xlu0 %v2393
    %v2395 = vpop.xlane.xlu0 %2394
    %v2396 = vrcp.pop %v2374
    %v2397 = vrcp.pop %v2377
    %v2398 = vrcp.pop %v2380
    %v2399 = vrcp.pop %v2383
    %v2400 = vrcp.pop %v2386
    %v2401 = vrcp.pop %v2389
    %v2402 = vrcp.pop %v2392
    %v2403 = vrcp.pop %v2395
    %v2404 = vmul.f32 %v2357, %v2396
    %v2405 = vmul.f32 %v2359, %v2397
    %v2406 = vmul.f32 %v2361, %v2398
    %v2407 = vmul.f32 %v2363, %v2399
    %v2408 = vmul.f32 %v2365, %v2400
    %v2409 = vmul.f32 %v2367, %v2401
    %v2410 = vmul.f32 %v2369, %v2402
    %v2411 = vmul.f32 %v2371, %v2403
    %v2412 = vpack.c.bf16 %v2405, %v2404
    %v2413 = vpack.c.bf16 %v2407, %v2406
    %v2414 = vpack.c.bf16 %v2409, %v2408
    %v2415 = vpack.c.bf16 %v2411, %v2410
    %2416 = vrot.lane.b32.xlu0 %v2081, 80
    %v2417 = vpop.permute.xlu0 %2416
    %v2420 = vsel %vm319, %v2412, 0
    %v2423 = vsel %vm319, %v2413, 0
    %v2426 = vsel %vm319, %v2414, 0
    %v2429 = vsel %vm319, %v2415, 0
    %2431 = vmatpush.bf16.msra.mxu0 0
    %2432 = vmatpush.bf16.msra.mxu0 0
    %2433 = vmatpush.bf16.msra.mxu0 0
    %2434 = vmatpush.bf16.msra.mxu0 0
    %2435 = vmatpush.bf16.msra.mxu0 0
    %2436 = vmatpush.bf16.msra.mxu0 0
    %2437 = vmatpush.bf16.msra.mxu0 0
    %2438 = vmatpush.bf16.msra.mxu0 %v2417
    %2439 = vmatmul.bf16.gmra.mxu0 %v2420
    %v2440 = vpop.f32.mrf.mxu0
    %v2441 = vadd.f32 0.0, %v2440
    %v2442 = vpop.f32.mrf.mxu0
    %v2443 = vadd.f32 0.0, %v2442
    %2444 = vmatmul.bf16.gmra.mxu0 %v2423
    %v2445 = vpop.f32.mrf.mxu0
    %v2446 = vadd.f32 0.0, %v2445
    %v2447 = vpop.f32.mrf.mxu0
    %v2448 = vadd.f32 0.0, %v2447
    %2449 = vmatmul.bf16.gmra.mxu0 %v2426
    %v2450 = vpop.f32.mrf.mxu0
    %v2451 = vadd.f32 0.0, %v2450
    %v2452 = vpop.f32.mrf.mxu0
    %v2453 = vadd.f32 0.0, %v2452
    %2454 = vmatmul.bf16.gmra.mxu0 %v2429
    %v2455 = vpop.f32.mrf.mxu0
    %v2456 = vadd.f32 0.0, %v2455
    %v2457 = vpop.f32.mrf.mxu0
    %v2458 = vadd.f32 0.0, %v2457
    %2459 = vdwg.mxu0
    %2462 = vrot.lane.b32.xlu0 %v2256, 16
    %v2463 = vpop.permute.xlu0 %2462
    %2464 = vrot.lane.b32.xlu0 %v2258, 16
    %v2465 = vpop.permute.xlu0 %2464
    %2470 = vrot.lane.b32.xlu0 %v2261, 32
    %v2471 = vpop.permute.xlu0 %2470
    %2472 = vrot.lane.b32.xlu0 %v2263, 32
    %v2473 = vpop.permute.xlu0 %2472
    %2478 = vrot.lane.b32.xlu0 %v2266, 48
    %v2479 = vpop.permute.xlu0 %2478
    %2480 = vrot.lane.b32.xlu0 %v2268, 48
    %v2481 = vpop.permute.xlu0 %2480
    %2486 = vrot.lane.b32.xlu0 %v2441, 64
    %v2487 = vpop.permute.xlu0 %2486
    %2488 = vrot.lane.b32.xlu0 %v2443, 64
    %v2489 = vpop.permute.xlu0 %2488
    %2494 = vrot.lane.b32.xlu0 %v2446, 80
    %v2495 = vpop.permute.xlu0 %2494
    %2496 = vrot.lane.b32.xlu0 %v2448, 80
    %v2497 = vpop.permute.xlu0 %2496
    %2502 = vrot.lane.b32.xlu0 %v2451, 96
    %v2503 = vpop.permute.xlu0 %2502
    %2504 = vrot.lane.b32.xlu0 %v2453, 96
    %v2505 = vpop.permute.xlu0 %2504
    %2510 = vrot.lane.b32.xlu0 %v2456, 112
    %v2511 = vpop.permute.xlu0 %2510
    %2512 = vrot.lane.b32.xlu0 %v2458, 112
    %v2513 = vpop.permute.xlu0 %2512
    %v2516 = vsel %vm319, %v2251, %v2463
    %v2517 = vsel %vm319, %v2253, %v2465
    %v2518 = vsel %vm756, %v2516, %v2471
    %v2519 = vsel %vm756, %v2517, %v2473
    %v2520 = vsel %vm759, %v2518, %v2479
    %v2521 = vsel %vm759, %v2519, %v2481
    %v2522 = vsel %vm762, %v2520, %v2487
    %v2523 = vsel %vm762, %v2521, %v2489
    %v2524 = vsel %vm765, %v2522, %v2495
    %v2525 = vsel %vm765, %v2523, %v2497
    %v2526 = vsel %vm768, %v2524, %v2503
    %v2527 = vsel %vm768, %v2525, %v2505
    %v2528 = vsel %vm771, %v2526, %v2511
    %v2529 = vsel %vm771, %v2527, %v2513
    %v2532 = vunpack.c.l.b16 %v2052
    %v2533 = vunpack.c.l.b16 %v2053
    %v2534 = vpack.c.b16 %v2533, %v2532
    %2535 = vrot.lane.b32.xlu0 %v2534, 112
    %v2536 = vpop.permute.xlu0 %2535
    %2537 = vrot.lane.b32.xlu0 %v2534, 96
    %v2538 = vpop.permute.xlu0 %2537
    %2539 = vrot.lane.b32.xlu0 %v2534, 80
    %v2540 = vpop.permute.xlu0 %2539
    %2541 = vrot.lane.b32.xlu0 %v2534, 64
    %v2542 = vpop.permute.xlu0 %2541
    %2543 = vrot.lane.b32.xlu0 %v2534, 48
    %v2544 = vpop.permute.xlu0 %2543
    %2545 = vrot.lane.b32.xlu0 %v2534, 32
    %v2546 = vpop.permute.xlu0 %2545
    %2547 = vrot.lane.b32.xlu0 %v2534, 16
    %v2548 = vpop.permute.xlu0 %2547
    %v2551 = vunpack.c.l.b16 %v2056
    %v2552 = vunpack.c.l.b16 %v2057
    %v2553 = vpack.c.b16 %v2552, %v2551
    %v2555 = vsel %vm319, %v2534, 0
    %v2558 = vsel %vm319, %v2536, 0
    %v2561 = vsel %vm319, %v2538, 0
    %v2564 = vsel %vm319, %v2540, 0
    %v2567 = vsel %vm319, %v2553, 0
    %2569 = vmatpush.bf16.xpose.msra.mxu0 0
    %2570 = vmatpush.bf16.xpose.msra.mxu0 0
    %2571 = vmatpush.bf16.xpose.msra.mxu0 0
    %2572 = vmatpush.bf16.xpose.msra.mxu0 0
    %2573 = vmatpush.bf16.xpose.msra.mxu0 0
    %2574 = vmatpush.bf16.xpose.msra.mxu0 0
    %2575 = vmatpush.bf16.xpose.msra.mxu0 0
    %2576 = vmatpush.bf16.xpose.msra.mxu0 %v2567
    %2577 = vmatmul.bf16.gmra.mxu0 %v2555
    %v2578 = vpop.f32.mrf.mxu0
    %v2579 = vadd.f32 0.0, %v2578
    %v2580 = vpop.f32.mrf.mxu0
    %v2581 = vadd.f32 0.0, %v2580
    %2582 = vmatmul.bf16.gmra.mxu0 %v2558
    %v2583 = vpop.f32.mrf.mxu0
    %v2584 = vadd.f32 0.0, %v2583
    %v2585 = vpop.f32.mrf.mxu0
    %v2586 = vadd.f32 0.0, %v2585
    %2587 = vmatmul.bf16.gmra.mxu0 %v2561
    %v2588 = vpop.f32.mrf.mxu0
    %v2589 = vadd.f32 0.0, %v2588
    %v2590 = vpop.f32.mrf.mxu0
    %v2591 = vadd.f32 0.0, %v2590
    %2592 = vmatmul.bf16.gmra.mxu0 %v2564
    %v2593 = vpop.f32.mrf.mxu0
    %v2594 = vadd.f32 0.0, %v2593
    %v2595 = vpop.f32.mrf.mxu0
    %v2596 = vadd.f32 0.0, %v2595
    %2597 = vdwg.mxu0
    %v2598 = vmul.f32 %v2579, 0.25
    %v2599 = vmul.f32 %v2581, 0.25
    %v2600 = vmul.f32 %v2584, 0.25
    %v2601 = vmul.f32 %v2586, 0.25
    %v2602 = vmul.f32 %v2589, 0.25
    %v2603 = vmul.f32 %v2591, 0.25
    %v2604 = vmul.f32 %v2594, 0.25
    %v2605 = vmul.f32 %v2596, 0.25
    %v2606 = vsel %vm319, %v2598, -inf
    %2607 = vmax.xlane.f32.xlu0 %v2606
    %v2608 = vpop.xlane.xlu0 %2607
    %v2609 = vsel %vm319, %v2599, -inf
    %2610 = vmax.xlane.f32.xlu0 %v2609
    %v2611 = vpop.xlane.xlu0 %2610
    %v2612 = vsel %vm319, %v2600, -inf
    %2613 = vmax.xlane.f32.xlu0 %v2612
    %v2614 = vpop.xlane.xlu0 %2613
    %v2615 = vsel %vm319, %v2601, -inf
    %2616 = vmax.xlane.f32.xlu0 %v2615
    %v2617 = vpop.xlane.xlu0 %2616
    %v2618 = vsel %vm319, %v2602, -inf
    %2619 = vmax.xlane.f32.xlu0 %v2618
    %v2620 = vpop.xlane.xlu0 %2619
    %v2621 = vsel %vm319, %v2603, -inf
    %2622 = vmax.xlane.f32.xlu0 %v2621
    %v2623 = vpop.xlane.xlu0 %2622
    %v2624 = vsel %vm319, %v2604, -inf
    %2625 = vmax.xlane.f32.xlu0 %v2624
    %v2626 = vpop.xlane.xlu0 %2625
    %v2627 = vsel %vm319, %v2605, -inf
    %2628 = vmax.xlane.f32.xlu0 %v2627
    %v2629 = vpop.xlane.xlu0 %2628
    %v2630 = vsub.f32 %v2598, %v2608
    %v2631 = vsub.f32 %v2599, %v2611
    %v2632 = vsub.f32 %v2600, %v2614
    %v2633 = vsub.f32 %v2601, %v2617
    %v2634 = vsub.f32 %v2602, %v2620
    %v2635 = vsub.f32 %v2603, %v2623
    %v2636 = vsub.f32 %v2604, %v2626
    %v2637 = vsub.f32 %v2605, %v2629
    %v2638 = vmul.f32 %v2630, 1.442695
    %v2639 = vpow.pop %v2638
    %v2640 = vmul.f32 %v2631, 1.442695
    %v2641 = vpow.pop %v2640
    %v2642 = vmul.f32 %v2632, 1.442695
    %v2643 = vpow.pop %v2642
    %v2644 = vmul.f32 %v2633, 1.442695
    %v2645 = vpow.pop %v2644
    %v2646 = vmul.f32 %v2634, 1.442695
    %v2647 = vpow.pop %v2646
    %v2648 = vmul.f32 %v2635, 1.442695
    %v2649 = vpow.pop %v2648
    %v2650 = vmul.f32 %v2636, 1.442695
    %v2651 = vpow.pop %v2650
    %v2652 = vmul.f32 %v2637, 1.442695
    %v2653 = vpow.pop %v2652
    %v2654 = vsel %vm319, %v2639, 0.0
    %2655 = vadd.xlane.f32.xlu0 %v2654
    %v2656 = vpop.xlane.xlu0 %2655
    %v2657 = vsel %vm319, %v2641, 0.0
    %2658 = vadd.xlane.f32.xlu0 %v2657
    %v2659 = vpop.xlane.xlu0 %2658
    %v2660 = vsel %vm319, %v2643, 0.0
    %2661 = vadd.xlane.f32.xlu0 %v2660
    %v2662 = vpop.xlane.xlu0 %2661
    %v2663 = vsel %vm319, %v2645, 0.0
    %2664 = vadd.xlane.f32.xlu0 %v2663
    %v2665 = vpop.xlane.xlu0 %2664
    %v2666 = vsel %vm319, %v2647, 0.0
    %2667 = vadd.xlane.f32.xlu0 %v2666
    %v2668 = vpop.xlane.xlu0 %2667
    %v2669 = vsel %vm319, %v2649, 0.0
    %2670 = vadd.xlane.f32.xlu0 %v2669
    %v2671 = vpop.xlane.xlu0 %2670
    %v2672 = vsel %vm319, %v2651, 0.0
    %2673 = vadd.xlane.f32.xlu0 %v2672
    %v2674 = vpop.xlane.xlu0 %2673
    %v2675 = vsel %vm319, %v2653, 0.0
    %2676 = vadd.xlane.f32.xlu0 %v2675
    %v2677 = vpop.xlane.xlu0 %2676
    %v2678 = vrcp.pop %v2656
    %v2679 = vrcp.pop %v2659
    %v2680 = vrcp.pop %v2662
    %v2681 = vrcp.pop %v2665
    %v2682 = vrcp.pop %v2668
    %v2683 = vrcp.pop %v2671
    %v2684 = vrcp.pop %v2674
    %v2685 = vrcp.pop %v2677
    %v2686 = vmul.f32 %v2639, %v2678
    %v2687 = vmul.f32 %v2641, %v2679
    %v2688 = vmul.f32 %v2643, %v2680
    %v2689 = vmul.f32 %v2645, %v2681
    %v2690 = vmul.f32 %v2647, %v2682
    %v2691 = vmul.f32 %v2649, %v2683
    %v2692 = vmul.f32 %v2651, %v2684
    %v2693 = vmul.f32 %v2653, %v2685
    %v2694 = vpack.c.bf16 %v2687, %v2686
    %v2695 = vpack.c.bf16 %v2689, %v2688
    %v2696 = vpack.c.bf16 %v2691, %v2690
    %v2697 = vpack.c.bf16 %v2693, %v2692
    %2698 = vrot.lane.b32.xlu0 %v2553, 96
    %v2699 = vpop.permute.xlu0 %2698
    %v2702 = vsel %vm319, %v2694, 0
    %v2705 = vsel %vm319, %v2695, 0
    %v2708 = vsel %vm319, %v2696, 0
    %v2711 = vsel %vm319, %v2697, 0
    %2713 = vmatpush.bf16.msra.mxu0 0
    %2714 = vmatpush.bf16.msra.mxu0 0
    %2715 = vmatpush.bf16.msra.mxu0 0
    %2716 = vmatpush.bf16.msra.mxu0 0
    %2717 = vmatpush.bf16.msra.mxu0 0
    %2718 = vmatpush.bf16.msra.mxu0 0
    %2719 = vmatpush.bf16.msra.mxu0 0
    %2720 = vmatpush.bf16.msra.mxu0 %v2699
    %2721 = vmatmul.bf16.gmra.mxu0 %v2702
    %v2722 = vpop.f32.mrf.mxu0
    %v2723 = vadd.f32 0.0, %v2722
    %v2724 = vpop.f32.mrf.mxu0
    %v2725 = vadd.f32 0.0, %v2724
    %2726 = vmatmul.bf16.gmra.mxu0 %v2705
    %v2727 = vpop.f32.mrf.mxu0
    %v2728 = vadd.f32 0.0, %v2727
    %v2729 = vpop.f32.mrf.mxu0
    %v2730 = vadd.f32 0.0, %v2729
    %2731 = vmatmul.bf16.gmra.mxu0 %v2708
    %v2732 = vpop.f32.mrf.mxu0
    %v2733 = vadd.f32 0.0, %v2732
    %v2734 = vpop.f32.mrf.mxu0
    %v2735 = vadd.f32 0.0, %v2734
    %2736 = vmatmul.bf16.gmra.mxu0 %v2711
    %v2737 = vpop.f32.mrf.mxu0
    %v2738 = vadd.f32 0.0, %v2737
    %v2739 = vpop.f32.mrf.mxu0
    %v2740 = vadd.f32 0.0, %v2739
    %2741 = vdwg.mxu0
    %2742 = vrot.lane.b32.xlu0 %v2553, 112
    %v2743 = vpop.permute.xlu0 %2742
    %v2745 = vsel %vm319, %v2542, 0
    %v2748 = vsel %vm319, %v2544, 0
    %v2751 = vsel %vm319, %v2546, 0
    %v2754 = vsel %vm319, %v2548, 0
    %v2757 = vsel %vm319, %v2743, 0
    %2759 = vmatpush.bf16.xpose.msra.mxu0 0
    %2760 = vmatpush.bf16.xpose.msra.mxu0 0
    %2761 = vmatpush.bf16.xpose.msra.mxu0 0
    %2762 = vmatpush.bf16.xpose.msra.mxu0 0
    %2763 = vmatpush.bf16.xpose.msra.mxu0 0
    %2764 = vmatpush.bf16.xpose.msra.mxu0 0
    %2765 = vmatpush.bf16.xpose.msra.mxu0 0
    %2766 = vmatpush.bf16.xpose.msra.mxu0 %v2757
    %2767 = vmatmul.bf16.gmra.mxu0 %v2745
    %v2768 = vpop.f32.mrf.mxu0
    %v2769 = vadd.f32 0.0, %v2768
    %v2770 = vpop.f32.mrf.mxu0
    %v2771 = vadd.f32 0.0, %v2770
    %2772 = vmatmul.bf16.gmra.mxu0 %v2748
    %v2773 = vpop.f32.mrf.mxu0
    %v2774 = vadd.f32 0.0, %v2773
    %v2775 = vpop.f32.mrf.mxu0
    %v2776 = vadd.f32 0.0, %v2775
    %2777 = vmatmul.bf16.gmra.mxu0 %v2751
    %v2778 = vpop.f32.mrf.mxu0
    %v2779 = vadd.f32 0.0, %v2778
    %v2780 = vpop.f32.mrf.mxu0
    %v2781 = vadd.f32 0.0, %v2780
    %2782 = vmatmul.bf16.gmra.mxu0 %v2754
    %v2783 = vpop.f32.mrf.mxu0
    %v2784 = vadd.f32 0.0, %v2783
    %v2785 = vpop.f32.mrf.mxu0
    %v2786 = vadd.f32 0.0, %v2785
    %2787 = vdwg.mxu0
    %v2788 = vmul.f32 %v2769, 0.25
    %v2789 = vmul.f32 %v2771, 0.25
    %v2790 = vmul.f32 %v2774, 0.25
    %v2791 = vmul.f32 %v2776, 0.25
    %v2792 = vmul.f32 %v2779, 0.25
    %v2793 = vmul.f32 %v2781, 0.25
    %v2794 = vmul.f32 %v2784, 0.25
    %v2795 = vmul.f32 %v2786, 0.25
    %v2796 = vsel %vm319, %v2788, -inf
    %2797 = vmax.xlane.f32.xlu0 %v2796
    %v2798 = vpop.xlane.xlu0 %2797
    %v2799 = vsel %vm319, %v2789, -inf
    %2800 = vmax.xlane.f32.xlu0 %v2799
    %v2801 = vpop.xlane.xlu0 %2800
    %v2802 = vsel %vm319, %v2790, -inf
    %2803 = vmax.xlane.f32.xlu0 %v2802
    %v2804 = vpop.xlane.xlu0 %2803
    %v2805 = vsel %vm319, %v2791, -inf
    %2806 = vmax.xlane.f32.xlu0 %v2805
    %v2807 = vpop.xlane.xlu0 %2806
    %v2808 = vsel %vm319, %v2792, -inf
    %2809 = vmax.xlane.f32.xlu0 %v2808
    %v2810 = vpop.xlane.xlu0 %2809
    %v2811 = vsel %vm319, %v2793, -inf
    %2812 = vmax.xlane.f32.xlu0 %v2811
    %v2813 = vpop.xlane.xlu0 %2812
    %v2814 = vsel %vm319, %v2794, -inf
    %2815 = vmax.xlane.f32.xlu0 %v2814
    %v2816 = vpop.xlane.xlu0 %2815
    %v2817 = vsel %vm319, %v2795, -inf
    %2818 = vmax.xlane.f32.xlu0 %v2817
    %v2819 = vpop.xlane.xlu0 %2818
    %v2820 = vsub.f32 %v2788, %v2798
    %v2821 = vsub.f32 %v2789, %v2801
    %v2822 = vsub.f32 %v2790, %v2804
    %v2823 = vsub.f32 %v2791, %v2807
    %v2824 = vsub.f32 %v2792, %v2810
    %v2825 = vsub.f32 %v2793, %v2813
    %v2826 = vsub.f32 %v2794, %v2816
    %v2827 = vsub.f32 %v2795, %v2819
    %v2828 = vmul.f32 %v2820, 1.442695
    %v2829 = vpow.pop %v2828
    %v2830 = vmul.f32 %v2821, 1.442695
    %v2831 = vpow.pop %v2830
    %v2832 = vmul.f32 %v2822, 1.442695
    %v2833 = vpow.pop %v2832
    %v2834 = vmul.f32 %v2823, 1.442695
    %v2835 = vpow.pop %v2834
    %v2836 = vmul.f32 %v2824, 1.442695
    %v2837 = vpow.pop %v2836
    %v2838 = vmul.f32 %v2825, 1.442695
    %v2839 = vpow.pop %v2838
    %v2840 = vmul.f32 %v2826, 1.442695
    %v2841 = vpow.pop %v2840
    %v2842 = vmul.f32 %v2827, 1.442695
    %v2843 = vpow.pop %v2842
    %v2844 = vsel %vm319, %v2829, 0.0
    %2845 = vadd.xlane.f32.xlu0 %v2844
    %v2846 = vpop.xlane.xlu0 %2845
    %v2847 = vsel %vm319, %v2831, 0.0
    %2848 = vadd.xlane.f32.xlu0 %v2847
    %v2849 = vpop.xlane.xlu0 %2848
    %v2850 = vsel %vm319, %v2833, 0.0
    %2851 = vadd.xlane.f32.xlu0 %v2850
    %v2852 = vpop.xlane.xlu0 %2851
    %v2853 = vsel %vm319, %v2835, 0.0
    %2854 = vadd.xlane.f32.xlu0 %v2853
    %v2855 = vpop.xlane.xlu0 %2854
    %v2856 = vsel %vm319, %v2837, 0.0
    %2857 = vadd.xlane.f32.xlu0 %v2856
    %v2858 = vpop.xlane.xlu0 %2857
    %v2859 = vsel %vm319, %v2839, 0.0
    %2860 = vadd.xlane.f32.xlu0 %v2859
    %v2861 = vpop.xlane.xlu0 %2860
    %v2862 = vsel %vm319, %v2841, 0.0
    %2863 = vadd.xlane.f32.xlu0 %v2862
    %v2864 = vpop.xlane.xlu0 %2863
    %v2865 = vsel %vm319, %v2843, 0.0
    %2866 = vadd.xlane.f32.xlu0 %v2865
    %v2867 = vpop.xlane.xlu0 %2866
    %v2868 = vrcp.pop %v2846
    %v2869 = vrcp.pop %v2849
    %v2870 = vrcp.pop %v2852
    %v2871 = vrcp.pop %v2855
    %v2872 = vrcp.pop %v2858
    %v2873 = vrcp.pop %v2861
    %v2874 = vrcp.pop %v2864
    %v2875 = vrcp.pop %v2867
    %v2876 = vmul.f32 %v2829, %v2868
    %v2877 = vmul.f32 %v2831, %v2869
    %v2878 = vmul.f32 %v2833, %v2870
    %v2879 = vmul.f32 %v2835, %v2871
    %v2880 = vmul.f32 %v2837, %v2872
    %v2881 = vmul.f32 %v2839, %v2873
    %v2882 = vmul.f32 %v2841, %v2874
    %v2883 = vmul.f32 %v2843, %v2875
    %v2884 = vpack.c.bf16 %v2877, %v2876
    %v2885 = vpack.c.bf16 %v2879, %v2878
    %v2886 = vpack.c.bf16 %v2881, %v2880
    %v2887 = vpack.c.bf16 %v2883, %v2882
    %2888 = vrot.lane.b32.xlu0 %v2553, 80
    %v2889 = vpop.permute.xlu0 %2888
    %v2892 = vsel %vm319, %v2884, 0
    %v2895 = vsel %vm319, %v2885, 0
    %v2898 = vsel %vm319, %v2886, 0
    %v2901 = vsel %vm319, %v2887, 0
    %2903 = vmatpush.bf16.msra.mxu0 0
    %2904 = vmatpush.bf16.msra.mxu0 0
    %2905 = vmatpush.bf16.msra.mxu0 0
    %2906 = vmatpush.bf16.msra.mxu0 0
    %2907 = vmatpush.bf16.msra.mxu0 0
    %2908 = vmatpush.bf16.msra.mxu0 0
    %2909 = vmatpush.bf16.msra.mxu0 0
    %2910 = vmatpush.bf16.msra.mxu0 %v2889
    %2911 = vmatmul.bf16.gmra.mxu0 %v2892
    %v2912 = vpop.f32.mrf.mxu0
    %v2913 = vadd.f32 0.0, %v2912
    %v2914 = vpop.f32.mrf.mxu0
    %v2915 = vadd.f32 0.0, %v2914
    %2916 = vmatmul.bf16.gmra.mxu0 %v2895
    %v2917 = vpop.f32.mrf.mxu0
    %v2918 = vadd.f32 0.0, %v2917
    %v2919 = vpop.f32.mrf.mxu0
    %v2920 = vadd.f32 0.0, %v2919
    %2921 = vmatmul.bf16.gmra.mxu0 %v2898
    %v2922 = vpop.f32.mrf.mxu0
    %v2923 = vadd.f32 0.0, %v2922
    %v2924 = vpop.f32.mrf.mxu0
    %v2925 = vadd.f32 0.0, %v2924
    %2926 = vmatmul.bf16.gmra.mxu0 %v2901
    %v2927 = vpop.f32.mrf.mxu0
    %v2928 = vadd.f32 0.0, %v2927
    %v2929 = vpop.f32.mrf.mxu0
    %v2930 = vadd.f32 0.0, %v2929
    %2931 = vdwg.mxu0
    %2934 = vrot.lane.b32.xlu0 %v2728, 16
    %v2935 = vpop.permute.xlu0 %2934
    %2936 = vrot.lane.b32.xlu0 %v2730, 16
    %v2937 = vpop.permute.xlu0 %2936
    %2942 = vrot.lane.b32.xlu0 %v2733, 32
    %v2943 = vpop.permute.xlu0 %2942
    %2944 = vrot.lane.b32.xlu0 %v2735, 32
    %v2945 = vpop.permute.xlu0 %2944
    %2950 = vrot.lane.b32.xlu0 %v2738, 48
    %v2951 = vpop.permute.xlu0 %2950
    %2952 = vrot.lane.b32.xlu0 %v2740, 48
    %v2953 = vpop.permute.xlu0 %2952
    %2958 = vrot.lane.b32.xlu0 %v2913, 64
    %v2959 = vpop.permute.xlu0 %2958
    %2960 = vrot.lane.b32.xlu0 %v2915, 64
    %v2961 = vpop.permute.xlu0 %2960
    %2966 = vrot.lane.b32.xlu0 %v2918, 80
    %v2967 = vpop.permute.xlu0 %2966
    %2968 = vrot.lane.b32.xlu0 %v2920, 80
    %v2969 = vpop.permute.xlu0 %2968
    %2974 = vrot.lane.b32.xlu0 %v2923, 96
    %v2975 = vpop.permute.xlu0 %2974
    %2976 = vrot.lane.b32.xlu0 %v2925, 96
    %v2977 = vpop.permute.xlu0 %2976
    %2982 = vrot.lane.b32.xlu0 %v2928, 112
    %v2983 = vpop.permute.xlu0 %2982
    %2984 = vrot.lane.b32.xlu0 %v2930, 112
    %v2985 = vpop.permute.xlu0 %2984
    %v2988 = vsel %vm319, %v2723, %v2935
    %v2989 = vsel %vm319, %v2725, %v2937
    %v2990 = vsel %vm756, %v2988, %v2943
    %v2991 = vsel %vm756, %v2989, %v2945
    %v2992 = vsel %vm759, %v2990, %v2951
    %v2993 = vsel %vm759, %v2991, %v2953
    %v2994 = vsel %vm762, %v2992, %v2959
    %v2995 = vsel %vm762, %v2993, %v2961
    %v2996 = vsel %vm765, %v2994, %v2967
    %v2997 = vsel %vm765, %v2995, %v2969
    %v2998 = vsel %vm768, %v2996, %v2975
    %v2999 = vsel %vm768, %v2997, %v2977
    %v3000 = vsel %vm771, %v2998, %v2983
    %v3001 = vsel %vm771, %v2999, %v2985
    %v3002 = vpack.c.bf16 %v2529, %v2528
    %v3003 = vpack.c.bf16 %v3001, %v3000
    %s3004 = scalar_lea.vmem [#allocation2], 64
    %v3005 = vld [vmem:[%s3004] sm:$0xf]
    %v3006 = vld [vmem:[%s3004 + $0x4] sm:$0xf]
    %v3007 = vld [vmem:[%s3004 + $0x8] sm:$0xf]
    %v3008 = vld [vmem:[%s3004 + $0xc] sm:$0xf]
    %v3009 = vld [vmem:[%s3004 + $0x10] sm:$0xf]
    %v3010 = vld [vmem:[%s3004 + $0x14] sm:$0xf]
    %v3011 = vld [vmem:[%s3004 + $0x18] sm:$0xf]
    %v3012 = vld [vmem:[%s3004 + $0x1c] sm:$0xf]
    %v3013 = vld [vmem:[%s3004 + $0x20] sm:$0xf]
    %v3014 = vld [vmem:[%s3004 + $0x24] sm:$0xf]
    %v3015 = vld [vmem:[%s3004 + $0x28] sm:$0xf]
    %v3016 = vld [vmem:[%s3004 + $0x2c] sm:$0xf]
    %v3017 = vld [vmem:[%s3004 + $0x30] sm:$0xf]
    %v3018 = vld [vmem:[%s3004 + $0x34] sm:$0xf]
    %v3019 = vld [vmem:[%s3004 + $0x38] sm:$0xf]
    %v3020 = vld [vmem:[%s3004 + $0x3c] sm:$0xf]
    %v3037 = vunpack.c.l.b16 %v3005
    %v3038 = vunpack.c.l.b16 %v3006
    %v3039 = vunpack.c.l.b16 %v3007
    %v3040 = vunpack.c.l.b16 %v3008
    %v3041 = vunpack.c.l.b16 %v3009
    %v3042 = vunpack.c.l.b16 %v3010
    %v3043 = vunpack.c.l.b16 %v3011
    %v3044 = vunpack.c.l.b16 %v3012
    %v3045 = vunpack.c.l.b16 %v3013
    %v3046 = vunpack.c.l.b16 %v3014
    %v3047 = vunpack.c.l.b16 %v3015
    %v3048 = vunpack.c.l.b16 %v3016
    %v3049 = vunpack.c.l.b16 %v3017
    %v3050 = vunpack.c.l.b16 %v3018
    %v3051 = vunpack.c.l.b16 %v3019
    %v3052 = vunpack.c.l.b16 %v3020
    %v3053 = vpack.c.b16 %v3038, %v3037
    %v3054 = vpack.c.b16 %v3040, %v3039
    %v3055 = vpack.c.b16 %v3042, %v3041
    %v3056 = vpack.c.b16 %v3044, %v3043
    %v3057 = vpack.c.b16 %v3046, %v3045
    %v3058 = vpack.c.b16 %v3048, %v3047
    %v3059 = vpack.c.b16 %v3050, %v3049
    %v3060 = vpack.c.b16 %v3052, %v3051
    %3069 = vmatpush.bf16.msra.mxu0 %v3060
    %3070 = vmatpush.bf16.msra.mxu0 %v3059
    %3071 = vmatpush.bf16.msra.mxu0 %v3058
    %3072 = vmatpush.bf16.msra.mxu0 %v3057
    %3073 = vmatpush.bf16.msra.mxu0 %v3056
    %3074 = vmatpush.bf16.msra.mxu0 %v3055
    %3075 = vmatpush.bf16.msra.mxu0 %v3054
    %3076 = vmatpush.bf16.msra.mxu0 %v3053
    %3077 = vmatmul.bf16.gmra.mxu0 %v3002
    %v3078 = vpop.f32.mrf.mxu0
    %v3079 = vadd.f32 0.0, %v3078
    %v3080 = vpop.f32.mrf.mxu0
    %v3081 = vadd.f32 0.0, %v3080
    %3082 = vmatmul.bf16.gmra.mxu0 %v3003
    %v3083 = vpop.f32.mrf.mxu0
    %v3084 = vadd.f32 0.0, %v3083
    %v3085 = vpop.f32.mrf.mxu0
    %v3086 = vadd.f32 0.0, %v3085
    %3087 = vdwg.mxu0
    %v3088 = vadd.f32 %v1829, %v3079
    %v3089 = vadd.f32 %v1830, %v3081
    %v3090 = vadd.f32 %v1831, %v3084
    %v3091 = vadd.f32 %v1832, %v3086
    %s3092 = scalar_lea.vmem %s5, 1
    %v3093 = vld [vmem:[%s3092] sm:$0x1]
    %v3095 = vperm.slane %v3093, 0
    %v3097 = vadd.f32 %v3088, %v3095
    %v3098 = vadd.f32 %v3089, %v3095
    %v3099 = vadd.f32 %v3090, %v3095
    %v3100 = vadd.f32 %v3091, %v3095
    %s3101 = scalar_lea.vmem %s6, 128
    %v3102 = vld [vmem:[%s3101] sm:$0xff]
    %v3103 = vld [vmem:[%s3101 + $0x8] sm:$0xff]
    %v3104 = vld [vmem:[%s3101 + $0x10] sm:$0xff]
    %v3105 = vld [vmem:[%s3101 + $0x18] sm:$0xff]
    %v3106 = vld [vmem:[%s3101 + $0x20] sm:$0xff]
    %v3107 = vld [vmem:[%s3101 + $0x28] sm:$0xff]
    %v3108 = vld [vmem:[%s3101 + $0x30] sm:$0xff]
    %v3109 = vld [vmem:[%s3101 + $0x38] sm:$0xff]
    %v3110 = vld [vmem:[%s3101 + $0x40] sm:$0xff]
    %v3111 = vld [vmem:[%s3101 + $0x48] sm:$0xff]
    %v3112 = vld [vmem:[%s3101 + $0x50] sm:$0xff]
    %v3113 = vld [vmem:[%s3101 + $0x58] sm:$0xff]
    %v3114 = vld [vmem:[%s3101 + $0x60] sm:$0xff]
    %v3115 = vld [vmem:[%s3101 + $0x68] sm:$0xff]
    %v3116 = vld [vmem:[%s3101 + $0x70] sm:$0xff]
    %v3117 = vld [vmem:[%s3101 + $0x78] sm:$0xff]
    %s3118 = scalar_lea.vmem %s7, 2
    %v3119 = vld [vmem:[%s3118] sm:$0x3]
    %v3121 = vperm.slane %v3119, 0
    %v3122 = vperm.slane %v3119, 1
    %v3141 = vunpack.c.l.b16 %v3102
    %v3142 = vunpack.c.h.b16 %v3102
    %v3143 = vunpack.c.l.b16 %v3103
    %v3144 = vunpack.c.h.b16 %v3103
    %v3145 = vunpack.c.l.b16 %v3104
    %v3146 = vunpack.c.h.b16 %v3104
    %v3147 = vunpack.c.l.b16 %v3105
    %v3148 = vunpack.c.h.b16 %v3105
    %v3149 = vunpack.c.l.b16 %v3106
    %v3150 = vunpack.c.h.b16 %v3106
    %v3151 = vunpack.c.l.b16 %v3107
    %v3152 = vunpack.c.h.b16 %v3107
    %v3153 = vunpack.c.l.b16 %v3108
    %v3154 = vunpack.c.h.b16 %v3108
    %v3155 = vunpack.c.l.b16 %v3109
    %v3156 = vunpack.c.h.b16 %v3109
    %v3157 = vunpack.c.l.b16 %v3110
    %v3158 = vunpack.c.h.b16 %v3110
    %v3159 = vunpack.c.l.b16 %v3111
    %v3160 = vunpack.c.h.b16 %v3111
    %v3161 = vunpack.c.l.b16 %v3112
    %v3162 = vunpack.c.h.b16 %v3112
    %v3163 = vunpack.c.l.b16 %v3113
    %v3164 = vunpack.c.h.b16 %v3113
    %v3165 = vunpack.c.l.b16 %v3114
    %v3166 = vunpack.c.h.b16 %v3114
    %v3167 = vunpack.c.l.b16 %v3115
    %v3168 = vunpack.c.h.b16 %v3115
    %v3169 = vunpack.c.l.b16 %v3116
    %v3170 = vunpack.c.h.b16 %v3116
    %v3171 = vunpack.c.l.b16 %v3117
    %v3172 = vunpack.c.h.b16 %v3117
    %v3173 = vpack.c.b16 %v3143, %v3141
    %v3174 = vpack.c.b16 %v3144, %v3142
    %v3175 = vpack.c.b16 %v3147, %v3145
    %v3176 = vpack.c.b16 %v3148, %v3146
    %v3177 = vpack.c.b16 %v3151, %v3149
    %v3178 = vpack.c.b16 %v3152, %v3150
    %v3179 = vpack.c.b16 %v3155, %v3153
    %v3180 = vpack.c.b16 %v3156, %v3154
    %v3181 = vpack.c.b16 %v3159, %v3157
    %v3182 = vpack.c.b16 %v3160, %v3158
    %v3183 = vpack.c.b16 %v3163, %v3161
    %v3184 = vpack.c.b16 %v3164, %v3162
    %v3185 = vpack.c.b16 %v3167, %v3165
    %v3186 = vpack.c.b16 %v3168, %v3166
    %v3187 = vpack.c.b16 %v3171, %v3169
    %v3188 = vpack.c.b16 %v3172, %v3170
    %3205 = vmatpush.bf16.msra.mxu0 %v3187
    %3206 = vmatpush.bf16.msra.mxu0 %v3185
    %3207 = vmatpush.bf16.msra.mxu0 %v3183
    %3208 = vmatpush.bf16.msra.mxu0 %v3181
    %3209 = vmatpush.bf16.msra.mxu0 %v3179
    %3210 = vmatpush.bf16.msra.mxu0 %v3177
    %3211 = vmatpush.bf16.msra.mxu0 %v3175
    %3212 = vmatpush.bf16.msra.mxu0 %v3173
    %3213 = vmatmul.bf16.gmra.mxu0 %v1906
    %v3214 = vpop.f32.mrf.mxu0
    %v3215 = vadd.f32 %v3121, %v3214
    %v3216 = vpop.f32.mrf.mxu0
    %v3217 = vadd.f32 %v3121, %v3216
    %3218 = vmatmul.bf16.gmra.mxu0 %v1907
    %v3219 = vpop.f32.mrf.mxu0
    %v3220 = vadd.f32 %v3121, %v3219
    %v3221 = vpop.f32.mrf.mxu0
    %v3222 = vadd.f32 %v3121, %v3221
    %3223 = vdwg.mxu0
    %3224 = vmatpush.bf16.msra.mxu0 %v3188
    %3225 = vmatpush.bf16.msra.mxu0 %v3186
    %3226 = vmatpush.bf16.msra.mxu0 %v3184
    %3227 = vmatpush.bf16.msra.mxu0 %v3182
    %3228 = vmatpush.bf16.msra.mxu0 %v3180
    %3229 = vmatpush.bf16.msra.mxu0 %v3178
    %3230 = vmatpush.bf16.msra.mxu0 %v3176
    %3231 = vmatpush.bf16.msra.mxu0 %v3174
    %3232 = vmatmul.bf16.gmra.mxu0 %v1906
    %v3233 = vpop.f32.mrf.mxu0
    %v3234 = vadd.f32 %v3122, %v3233
    %v3235 = vpop.f32.mrf.mxu0
    %v3236 = vadd.f32 %v3122, %v3235
    %3237 = vmatmul.bf16.gmra.mxu0 %v1907
    %v3238 = vpop.f32.mrf.mxu0
    %v3239 = vadd.f32 %v3122, %v3238
    %v3240 = vpop.f32.mrf.mxu0
    %v3241 = vadd.f32 %v3122, %v3240
    %3242 = vdwg.mxu0
    %v3243 = vxor.u32 %v3215, 2147483648
    %v3244 = vxor.u32 %v3234, 2147483648
    %v3245 = vxor.u32 %v3217, 2147483648
    %v3246 = vxor.u32 %v3236, 2147483648
    %v3247 = vxor.u32 %v3220, 2147483648
    %v3248 = vxor.u32 %v3239, 2147483648
    %v3249 = vxor.u32 %v3222, 2147483648
    %v3250 = vxor.u32 %v3241, 2147483648
    %v3251 = vmul.f32 %v3243, 1.442695
    %v3252 = vpow.pop %v3251
    %v3253 = vmul.f32 %v3244, 1.442695
    %v3254 = vpow.pop %v3253
    %v3255 = vmul.f32 %v3245, 1.442695
    %v3256 = vpow.pop %v3255
    %v3257 = vmul.f32 %v3246, 1.442695
    %v3258 = vpow.pop %v3257
    %v3259 = vmul.f32 %v3247, 1.442695
    %v3260 = vpow.pop %v3259
    %v3261 = vmul.f32 %v3248, 1.442695
    %v3262 = vpow.pop %v3261
    %v3263 = vmul.f32 %v3249, 1.442695
    %v3264 = vpow.pop %v3263
    %v3265 = vmul.f32 %v3250, 1.442695
    %v3266 = vpow.pop %v3265
    %v3267 = vadd.f32 %v3252, 1.0
    %v3268 = vadd.f32 %v3254, 1.0
    %v3269 = vadd.f32 %v3256, 1.0
    %v3270 = vadd.f32 %v3258, 1.0
    %v3271 = vadd.f32 %v3260, 1.0
    %v3272 = vadd.f32 %v3262, 1.0
    %v3273 = vadd.f32 %v3264, 1.0
    %v3274 = vadd.f32 %v3266, 1.0
    %v3275 = vrcp.pop %v3267
    %v3276 = vmul.f32 %v3267, %v3275
    %v3277 = vsub.f32 1.0, %v3276
    %v3278 = vmul.f32 %v3275, %v3277
    %v3279 = vadd.f32 %v3275, %v3278
    %vm3280 = vweird.f32 %v3267
    %vm3281 = vweird.f32 %v3275
    %vm3282 = vmor %vm3280, %vm3281
    %v3283 = vsel %vm3282, %v3275, %v3279
    %v3284 = vand.u32 2147483647, %v3267
    %vm3285 = vcmp.eq.f32.partialorder %v3284, 8.507059e+37
    %v3286 = vand.u32 %v3267, 2147483648
    %v3287 = vor.u32 1.1754944e-38, %v3286
    %v3288 = vsel %vm3285, %v3287, %v3283
    %v3289 = vmul.f32 1.0, %v3288
    %v3290 = vrcp.pop %v3268
    %v3291 = vmul.f32 %v3268, %v3290
    %v3292 = vsub.f32 1.0, %v3291
    %v3293 = vmul.f32 %v3290, %v3292
    %v3294 = vadd.f32 %v3290, %v3293
    %vm3295 = vweird.f32 %v3268
    %vm3296 = vweird.f32 %v3290
    %vm3297 = vmor %vm3295, %vm3296
    %v3298 = vsel %vm3297, %v3290, %v3294
    %v3299 = vand.u32 2147483647, %v3268
    %vm3300 = vcmp.eq.f32.partialorder %v3299, 8.507059e+37
    %v3301 = vand.u32 %v3268, 2147483648
    %v3302 = vor.u32 1.1754944e-38, %v3301
    %v3303 = vsel %vm3300, %v3302, %v3298
    %v3304 = vmul.f32 1.0, %v3303
    %v3305 = vrcp.pop %v3269
    %v3306 = vmul.f32 %v3269, %v3305
    %v3307 = vsub.f32 1.0, %v3306
    %v3308 = vmul.f32 %v3305, %v3307
    %v3309 = vadd.f32 %v3305, %v3308
    %vm3310 = vweird.f32 %v3269
    %vm3311 = vweird.f32 %v3305
    %vm3312 = vmor %vm3310, %vm3311
    %v3313 = vsel %vm3312, %v3305, %v3309
    %v3314 = vand.u32 2147483647, %v3269
    %vm3315 = vcmp.eq.f32.partialorder %v3314, 8.507059e+37
    %v3316 = vand.u32 %v3269, 2147483648
    %v3317 = vor.u32 1.1754944e-38, %v3316
    %v3318 = vsel %vm3315, %v3317, %v3313
    %v3319 = vmul.f32 1.0, %v3318
    %v3320 = vrcp.pop %v3270
    %v3321 = vmul.f32 %v3270, %v3320
    %v3322 = vsub.f32 1.0, %v3321
    %v3323 = vmul.f32 %v3320, %v3322
    %v3324 = vadd.f32 %v3320, %v3323
    %vm3325 = vweird.f32 %v3270
    %vm3326 = vweird.f32 %v3320
    %vm3327 = vmor %vm3325, %vm3326
    %v3328 = vsel %vm3327, %v3320, %v3324
    %v3329 = vand.u32 2147483647, %v3270
    %vm3330 = vcmp.eq.f32.partialorder %v3329, 8.507059e+37
    %v3331 = vand.u32 %v3270, 2147483648
    %v3332 = vor.u32 1.1754944e-38, %v3331
    %v3333 = vsel %vm3330, %v3332, %v3328
    %v3334 = vmul.f32 1.0, %v3333
    %v3335 = vrcp.pop %v3271
    %v3336 = vmul.f32 %v3271, %v3335
    %v3337 = vsub.f32 1.0, %v3336
    %v3338 = vmul.f32 %v3335, %v3337
    %v3339 = vadd.f32 %v3335, %v3338
    %vm3340 = vweird.f32 %v3271
    %vm3341 = vweird.f32 %v3335
    %vm3342 = vmor %vm3340, %vm3341
    %v3343 = vsel %vm3342, %v3335, %v3339
    %v3344 = vand.u32 2147483647, %v3271
    %vm3345 = vcmp.eq.f32.partialorder %v3344, 8.507059e+37
    %v3346 = vand.u32 %v3271, 2147483648
    %v3347 = vor.u32 1.1754944e-38, %v3346
    %v3348 = vsel %vm3345, %v3347, %v3343
    %v3349 = vmul.f32 1.0, %v3348
    %v3350 = vrcp.pop %v3272
    %v3351 = vmul.f32 %v3272, %v3350
    %v3352 = vsub.f32 1.0, %v3351
    %v3353 = vmul.f32 %v3350, %v3352
    %v3354 = vadd.f32 %v3350, %v3353
    %vm3355 = vweird.f32 %v3272
    %vm3356 = vweird.f32 %v3350
    %vm3357 = vmor %vm3355, %vm3356
    %v3358 = vsel %vm3357, %v3350, %v3354
    %v3359 = vand.u32 2147483647, %v3272
    %vm3360 = vcmp.eq.f32.partialorder %v3359, 8.507059e+37
    %v3361 = vand.u32 %v3272, 2147483648
    %v3362 = vor.u32 1.1754944e-38, %v3361
    %v3363 = vsel %vm3360, %v3362, %v3358
    %v3364 = vmul.f32 1.0, %v3363
    %v3365 = vrcp.pop %v3273
    %v3366 = vmul.f32 %v3273, %v3365
    %v3367 = vsub.f32 1.0, %v3366
    %v3368 = vmul.f32 %v3365, %v3367
    %v3369 = vadd.f32 %v3365, %v3368
    %vm3370 = vweird.f32 %v3273
    %vm3371 = vweird.f32 %v3365
    %vm3372 = vmor %vm3370, %vm3371
    %v3373 = vsel %vm3372, %v3365, %v3369
    %v3374 = vand.u32 2147483647, %v3273
    %vm3375 = vcmp.eq.f32.partialorder %v3374, 8.507059e+37
    %v3376 = vand.u32 %v3273, 2147483648
    %v3377 = vor.u32 1.1754944e-38, %v3376
    %v3378 = vsel %vm3375, %v3377, %v3373
    %v3379 = vmul.f32 1.0, %v3378
    %v3380 = vrcp.pop %v3274
    %v3381 = vmul.f32 %v3274, %v3380
    %v3382 = vsub.f32 1.0, %v3381
    %v3383 = vmul.f32 %v3380, %v3382
    %v3384 = vadd.f32 %v3380, %v3383
    %vm3385 = vweird.f32 %v3274
    %vm3386 = vweird.f32 %v3380
    %vm3387 = vmor %vm3385, %vm3386
    %v3388 = vsel %vm3387, %v3380, %v3384
    %v3389 = vand.u32 2147483647, %v3274
    %vm3390 = vcmp.eq.f32.partialorder %v3389, 8.507059e+37
    %v3391 = vand.u32 %v3274, 2147483648
    %v3392 = vor.u32 1.1754944e-38, %v3391
    %v3393 = vsel %vm3390, %v3392, %v3388
    %v3394 = vmul.f32 1.0, %v3393
    %v3395 = vmul.f32 %v3215, %v3289
    %v3396 = vmul.f32 %v3234, %v3304
    %v3397 = vmul.f32 %v3217, %v3319
    %v3398 = vmul.f32 %v3236, %v3334
    %v3399 = vmul.f32 %v3220, %v3349
    %v3400 = vmul.f32 %v3239, %v3364
    %v3401 = vmul.f32 %v3222, %v3379
    %v3402 = vmul.f32 %v3241, %v3394
    %v3403 = vmul.f32 %v3215, %v3395
    %v3404 = vmul.f32 %v3234, %v3396
    %v3405 = vmul.f32 %v3217, %v3397
    %v3406 = vmul.f32 %v3236, %v3398
    %v3407 = vmul.f32 %v3220, %v3399
    %v3408 = vmul.f32 %v3239, %v3400
    %v3409 = vmul.f32 %v3222, %v3401
    %v3410 = vmul.f32 %v3241, %v3402
    %v3411 = vpack.c.bf16 %v3405, %v3403
    %v3412 = vpack.c.bf16 %v3406, %v3404
    %v3413 = vpack.c.bf16 %v3409, %v3407
    %v3414 = vpack.c.bf16 %v3410, %v3408
    %s3415 = scalar_lea.vmem %s8, 128
    %v3416 = vld [vmem:[%s3415] sm:$0xf]
    %v3417 = vld [vmem:[%s3415 + $0x4] sm:$0xf]
    %v3418 = vld [vmem:[%s3415 + $0x8] sm:$0xf]
    %v3419 = vld [vmem:[%s3415 + $0xc] sm:$0xf]
    %v3420 = vld [vmem:[%s3415 + $0x10] sm:$0xf]
    %v3421 = vld [vmem:[%s3415 + $0x14] sm:$0xf]
    %v3422 = vld [vmem:[%s3415 + $0x18] sm:$0xf]
    %v3423 = vld [vmem:[%s3415 + $0x1c] sm:$0xf]
    %v3424 = vld [vmem:[%s3415 + $0x20] sm:$0xf]
    %v3425 = vld [vmem:[%s3415 + $0x24] sm:$0xf]
    %v3426 = vld [vmem:[%s3415 + $0x28] sm:$0xf]
    %v3427 = vld [vmem:[%s3415 + $0x2c] sm:$0xf]
    %v3428 = vld [vmem:[%s3415 + $0x30] sm:$0xf]
    %v3429 = vld [vmem:[%s3415 + $0x34] sm:$0xf]
    %v3430 = vld [vmem:[%s3415 + $0x38] sm:$0xf]
    %v3431 = vld [vmem:[%s3415 + $0x3c] sm:$0xf]
    %v3432 = vld [vmem:[%s3415 + $0x40] sm:$0xf]
    %v3433 = vld [vmem:[%s3415 + $0x44] sm:$0xf]
    %v3434 = vld [vmem:[%s3415 + $0x48] sm:$0xf]
    %v3435 = vld [vmem:[%s3415 + $0x4c] sm:$0xf]
    %v3436 = vld [vmem:[%s3415 + $0x50] sm:$0xf]
    %v3437 = vld [vmem:[%s3415 + $0x54] sm:$0xf]
    %v3438 = vld [vmem:[%s3415 + $0x58] sm:$0xf]
    %v3439 = vld [vmem:[%s3415 + $0x5c] sm:$0xf]
    %v3440 = vld [vmem:[%s3415 + $0x60] sm:$0xf]
    %v3441 = vld [vmem:[%s3415 + $0x64] sm:$0xf]
    %v3442 = vld [vmem:[%s3415 + $0x68] sm:$0xf]
    %v3443 = vld [vmem:[%s3415 + $0x6c] sm:$0xf]
    %v3444 = vld [vmem:[%s3415 + $0x70] sm:$0xf]
    %v3445 = vld [vmem:[%s3415 + $0x74] sm:$0xf]
    %v3446 = vld [vmem:[%s3415 + $0x78] sm:$0xf]
    %v3447 = vld [vmem:[%s3415 + $0x7c] sm:$0xf]
    %v3480 = vunpack.c.l.b16 %v3416
    %v3481 = vunpack.c.l.b16 %v3417
    %v3482 = vunpack.c.l.b16 %v3418
    %v3483 = vunpack.c.l.b16 %v3419
    %v3484 = vunpack.c.l.b16 %v3420
    %v3485 = vunpack.c.l.b16 %v3421
    %v3486 = vunpack.c.l.b16 %v3422
    %v3487 = vunpack.c.l.b16 %v3423
    %v3488 = vunpack.c.l.b16 %v3424
    %v3489 = vunpack.c.l.b16 %v3425
    %v3490 = vunpack.c.l.b16 %v3426
    %v3491 = vunpack.c.l.b16 %v3427
    %v3492 = vunpack.c.l.b16 %v3428
    %v3493 = vunpack.c.l.b16 %v3429
    %v3494 = vunpack.c.l.b16 %v3430
    %v3495 = vunpack.c.l.b16 %v3431
    %v3496 = vunpack.c.l.b16 %v3432
    %v3497 = vunpack.c.l.b16 %v3433
    %v3498 = vunpack.c.l.b16 %v3434
    %v3499 = vunpack.c.l.b16 %v3435
    %v3500 = vunpack.c.l.b16 %v3436
    %v3501 = vunpack.c.l.b16 %v3437
    %v3502 = vunpack.c.l.b16 %v3438
    %v3503 = vunpack.c.l.b16 %v3439
    %v3504 = vunpack.c.l.b16 %v3440
    %v3505 = vunpack.c.l.b16 %v3441
    %v3506 = vunpack.c.l.b16 %v3442
    %v3507 = vunpack.c.l.b16 %v3443
    %v3508 = vunpack.c.l.b16 %v3444
    %v3509 = vunpack.c.l.b16 %v3445
    %v3510 = vunpack.c.l.b16 %v3446
    %v3511 = vunpack.c.l.b16 %v3447
    %v3512 = vpack.c.b16 %v3481, %v3480
    %v3513 = vpack.c.b16 %v3483, %v3482
    %v3514 = vpack.c.b16 %v3485, %v3484
    %v3515 = vpack.c.b16 %v3487, %v3486
    %v3516 = vpack.c.b16 %v3489, %v3488
    %v3517 = vpack.c.b16 %v3491, %v3490
    %v3518 = vpack.c.b16 %v3493, %v3492
    %v3519 = vpack.c.b16 %v3495, %v3494
    %v3520 = vpack.c.b16 %v3497, %v3496
    %v3521 = vpack.c.b16 %v3499, %v3498
    %v3522 = vpack.c.b16 %v3501, %v3500
    %v3523 = vpack.c.b16 %v3503, %v3502
    %v3524 = vpack.c.b16 %v3505, %v3504
    %v3525 = vpack.c.b16 %v3507, %v3506
    %v3526 = vpack.c.b16 %v3509, %v3508
    %v3527 = vpack.c.b16 %v3511, %v3510
    %3544 = vmatpush.bf16.msra.mxu0 %v3519
    %3545 = vmatpush.bf16.msra.mxu0 %v3518
    %3546 = vmatpush.bf16.msra.mxu0 %v3517
    %3547 = vmatpush.bf16.msra.mxu0 %v3516
    %3548 = vmatpush.bf16.msra.mxu0 %v3515
    %3549 = vmatpush.bf16.msra.mxu0 %v3514
    %3550 = vmatpush.bf16.msra.mxu0 %v3513
    %3551 = vmatpush.bf16.msra.mxu0 %v3512
    %3552 = vmatmul.bf16.gmra.mxu0 %v3411
    %v3553 = vpop.f32.mrf.mxu0
    %v3554 = vadd.f32 0.0, %v3553
    %v3555 = vpop.f32.mrf.mxu0
    %v3556 = vadd.f32 0.0, %v3555
    %3557 = vmatmul.bf16.gmra.mxu0 %v3413
    %v3558 = vpop.f32.mrf.mxu0
    %v3559 = vadd.f32 0.0, %v3558
    %v3560 = vpop.f32.mrf.mxu0
    %v3561 = vadd.f32 0.0, %v3560
    %3562 = vdwg.mxu0
    %3563 = vmatpush.bf16.msra.mxu0 %v3527
    %3564 = vmatpush.bf16.msra.mxu0 %v3526
    %3565 = vmatpush.bf16.msra.mxu0 %v3525
    %3566 = vmatpush.bf16.msra.mxu0 %v3524
    %3567 = vmatpush.bf16.msra.mxu0 %v3523
    %3568 = vmatpush.bf16.msra.mxu0 %v3522
    %3569 = vmatpush.bf16.msra.mxu0 %v3521
    %3570 = vmatpush.bf16.msra.mxu0 %v3520
    %3571 = vmatmul.bf16.gmra.mxu0 %v3412
    %v3572 = vpop.f32.mrf.mxu0
    %v3573 = vadd.f32 %v3554, %v3572
    %v3574 = vpop.f32.mrf.mxu0
    %v3575 = vadd.f32 %v3556, %v3574
    %3576 = vmatmul.bf16.gmra.mxu0 %v3414
    %v3577 = vpop.f32.mrf.mxu0
    %v3578 = vadd.f32 %v3559, %v3577
    %v3579 = vpop.f32.mrf.mxu0
    %v3580 = vadd.f32 %v3561, %v3579
    %3581 = vdwg.mxu0
    %v3582 = vadd.f32 %v3097, %v3573
    %v3583 = vadd.f32 %v3098, %v3575
    %v3584 = vadd.f32 %v3099, %v3578
    %v3585 = vadd.f32 %v3100, %v3580
    %s3586 = scalar_lea.vmem %s9, 1
    %v3587 = vld [vmem:[%s3586] sm:$0x1]
    %v3589 = vperm.slane %v3587, 0
    %v3591 = vadd.f32 %v3582, %v3589
    %v3592 = vadd.f32 %v3583, %v3589
    %v3593 = vadd.f32 %v3584, %v3589
    %v3594 = vadd.f32 %v3585, %v3589
    %v3595 = vld [vmem:[%s10] sm:$0x1]
    %v3596 = vmul.f32 %v3591, %v3591
    %v3597 = vmul.f32 %v3592, %v3592
    %v3598 = vmul.f32 %v3593, %v3593
    %v3599 = vmul.f32 %v3594, %v3594
    %3600 = vadd.xlane.f32.xlu0 %v3596
    %v3601 = vpop.xlane.xlu0 %3600
    %3602 = vadd.xlane.f32.xlu0 %v3597
    %v3603 = vpop.xlane.xlu0 %3602
    %3604 = vadd.xlane.f32.xlu0 %v3598
    %v3605 = vpop.xlane.xlu0 %3604
    %3606 = vadd.xlane.f32.xlu0 %v3599
    %v3607 = vpop.xlane.xlu0 %3606
    %v3608 = vmul.f32 %v3601, %v85
    %v3609 = vmul.f32 %v3603, %v85
    %v3610 = vmul.f32 %v3605, %v85
    %v3611 = vmul.f32 %v3607, %v85
    %v3612 = vadd.f32 %v3608, 1e-06
    %v3613 = vadd.f32 %v3609, 1e-06
    %v3614 = vadd.f32 %v3610, 1e-06
    %v3615 = vadd.f32 %v3611, 1e-06
    %v3616 = vrsqrt.pop %v3612
    %v3617 = vmul.f32 %v3616, %v3612
    %v3618 = vmul.f32 %v3617, %v3616
    %v3619 = vmul.f32 0.5, %v3618
    %v3620 = vsub.f32 1.5, %v3619
    %v3621 = vmul.f32 %v3616, %v3620
    %vm3622 = vweird.f32 %v3612
    %vm3623 = vweird.f32 %v3616
    %vm3624 = vmor %vm3622, %vm3623
    %v3625 = vsel %vm3624, %v3616, %v3621
    %v3626 = vrsqrt.pop %v3613
    %v3627 = vmul.f32 %v3626, %v3613
    %v3628 = vmul.f32 %v3627, %v3626
    %v3629 = vmul.f32 0.5, %v3628
    %v3630 = vsub.f32 1.5, %v3629
    %v3631 = vmul.f32 %v3626, %v3630
    %vm3632 = vweird.f32 %v3613
    %vm3633 = vweird.f32 %v3626
    %vm3634 = vmor %vm3632, %vm3633
    %v3635 = vsel %vm3634, %v3626, %v3631
    %v3636 = vrsqrt.pop %v3614
    %v3637 = vmul.f32 %v3636, %v3614
    %v3638 = vmul.f32 %v3637, %v3636
    %v3639 = vmul.f32 0.5, %v3638
    %v3640 = vsub.f32 1.5, %v3639
    %v3641 = vmul.f32 %v3636, %v3640
    %vm3642 = vweird.f32 %v3614
    %vm3643 = vweird.f32 %v3636
    %vm3644 = vmor %vm3642, %vm3643
    %v3645 = vsel %vm3644, %v3636, %v3641
    %v3646 = vrsqrt.pop %v3615
    %v3647 = vmul.f32 %v3646, %v3615
    %v3648 = vmul.f32 %v3647, %v3646
    %v3649 = vmul.f32 0.5, %v3648
    %v3650 = vsub.f32 1.5, %v3649
    %v3651 = vmul.f32 %v3646, %v3650
    %vm3652 = vweird.f32 %v3615
    %vm3653 = vweird.f32 %v3646
    %vm3654 = vmor %vm3652, %vm3653
    %v3655 = vsel %vm3654, %v3646, %v3651
    %v3656 = vmul.f32 %v3591, %v3625
    %v3657 = vmul.f32 %v3592, %v3635
    %v3658 = vmul.f32 %v3593, %v3645
    %v3659 = vmul.f32 %v3594, %v3655
    %v3661 = vperm.slane %v3595, 0
    %v3663 = vmul.f32 %v3656, %v3661
    %v3664 = vmul.f32 %v3657, %v3661
    %v3665 = vmul.f32 %v3658, %v3661
    %v3666 = vmul.f32 %v3659, %v3661
    %v3667 = vpack.c.bf16 %v3664, %v3663
    %v3668 = vpack.c.bf16 %v3666, %v3665
    %v3669 = vld [vmem:[%s11] sm:$0xff]
    %v3670 = vld [vmem:[%s11 + $0x8] sm:$0xff]
    %v3671 = vld [vmem:[%s11 + $0x10] sm:$0xff]
    %v3672 = vld [vmem:[%s11 + $0x18] sm:$0xff]
    %v3673 = vld [vmem:[%s11 + $0x20] sm:$0xff]
    %v3674 = vld [vmem:[%s11 + $0x28] sm:$0xff]
    %v3675 = vld [vmem:[%s11 + $0x30] sm:$0xff]
    %v3676 = vld [vmem:[%s11 + $0x38] sm:$0xff]
    %v3677 = vld [vmem:[%s11 + $0x40] sm:$0xff]
    %v3678 = vld [vmem:[%s11 + $0x48] sm:$0xff]
    %v3679 = vld [vmem:[%s11 + $0x50] sm:$0xff]
    %v3680 = vld [vmem:[%s11 + $0x58] sm:$0xff]
    %v3681 = vld [vmem:[%s11 + $0x60] sm:$0xff]
    %v3682 = vld [vmem:[%s11 + $0x68] sm:$0xff]
    %v3683 = vld [vmem:[%s11 + $0x70] sm:$0xff]
    %v3684 = vld [vmem:[%s11 + $0x78] sm:$0xff]
    %v3685 = vld [vmem:[%s11 + $0x80] sm:$0xff]
    %v3686 = vld [vmem:[%s11 + $0x88] sm:$0xff]
    %v3687 = vld [vmem:[%s11 + $0x90] sm:$0xff]
    %v3688 = vld [vmem:[%s11 + $0x98] sm:$0xff]
    %v3689 = vld [vmem:[%s11 + $0xa0] sm:$0xff]
    %v3690 = vld [vmem:[%s11 + $0xa8] sm:$0xff]
    %v3691 = vld [vmem:[%s11 + $0xb0] sm:$0xff]
    %v3692 = vld [vmem:[%s11 + $0xb8] sm:$0xff]
    %v3693 = vld [vmem:[%s11 + $0xc0] sm:$0xff]
    %v3694 = vld [vmem:[%s11 + $0xc8] sm:$0xff]
    %v3695 = vld [vmem:[%s11 + $0xd0] sm:$0xff]
    %v3696 = vld [vmem:[%s11 + $0xd8] sm:$0xff]
    %v3697 = vld [vmem:[%s11 + $0xe0] sm:$0xff]
    %v3698 = vld [vmem:[%s11 + $0xe8] sm:$0xff]
    %v3699 = vld [vmem:[%s11 + $0xf0] sm:$0xff]
    %v3700 = vld [vmem:[%s11 + $0xf8] sm:$0xff]
    %v3701 = vld [vmem:[%s12] sm:$0xf]
    %v3703 = vperm.slane %v3701, 0
    %v3704 = vperm.slane %v3701, 1
    %v3705 = vperm.slane %v3701, 2
    %v3706 = vperm.slane %v3701, 3
    %v3743 = vunpack.c.l.b16 %v3669
    %v3744 = vunpack.c.h.b16 %v3669
    %v3745 = vunpack.c.l.b16 %v3670
    %v3746 = vunpack.c.h.b16 %v3670
    %v3747 = vunpack.c.l.b16 %v3671
    %v3748 = vunpack.c.h.b16 %v3671
    %v3749 = vunpack.c.l.b16 %v3672
    %v3750 = vunpack.c.h.b16 %v3672
    %v3751 = vunpack.c.l.b16 %v3673
    %v3752 = vunpack.c.h.b16 %v3673
    %v3753 = vunpack.c.l.b16 %v3674
    %v3754 = vunpack.c.h.b16 %v3674
    %v3755 = vunpack.c.l.b16 %v3675
    %v3756 = vunpack.c.h.b16 %v3675
    %v3757 = vunpack.c.l.b16 %v3676
    %v3758 = vunpack.c.h.b16 %v3676
    %v3759 = vunpack.c.l.b16 %v3677
    %v3760 = vunpack.c.h.b16 %v3677
    %v3761 = vunpack.c.l.b16 %v3678
    %v3762 = vunpack.c.h.b16 %v3678
    %v3763 = vunpack.c.l.b16 %v3679
    %v3764 = vunpack.c.h.b16 %v3679
    %v3765 = vunpack.c.l.b16 %v3680
    %v3766 = vunpack.c.h.b16 %v3680
    %v3767 = vunpack.c.l.b16 %v3681
    %v3768 = vunpack.c.h.b16 %v3681
    %v3769 = vunpack.c.l.b16 %v3682
    %v3770 = vunpack.c.h.b16 %v3682
    %v3771 = vunpack.c.l.b16 %v3683
    %v3772 = vunpack.c.h.b16 %v3683
    %v3773 = vunpack.c.l.b16 %v3684
    %v3774 = vunpack.c.h.b16 %v3684
    %v3775 = vunpack.c.l.b16 %v3685
    %v3776 = vunpack.c.h.b16 %v3685
    %v3777 = vunpack.c.l.b16 %v3686
    %v3778 = vunpack.c.h.b16 %v3686
    %v3779 = vunpack.c.l.b16 %v3687
    %v3780 = vunpack.c.h.b16 %v3687
    %v3781 = vunpack.c.l.b16 %v3688
    %v3782 = vunpack.c.h.b16 %v3688
    %v3783 = vunpack.c.l.b16 %v3689
    %v3784 = vunpack.c.h.b16 %v3689
    %v3785 = vunpack.c.l.b16 %v3690
    %v3786 = vunpack.c.h.b16 %v3690
    %v3787 = vunpack.c.l.b16 %v3691
    %v3788 = vunpack.c.h.b16 %v3691
    %v3789 = vunpack.c.l.b16 %v3692
    %v3790 = vunpack.c.h.b16 %v3692
    %v3791 = vunpack.c.l.b16 %v3693
    %v3792 = vunpack.c.h.b16 %v3693
    %v3793 = vunpack.c.l.b16 %v3694
    %v3794 = vunpack.c.h.b16 %v3694
    %v3795 = vunpack.c.l.b16 %v3695
    %v3796 = vunpack.c.h.b16 %v3695
    %v3797 = vunpack.c.l.b16 %v3696
    %v3798 = vunpack.c.h.b16 %v3696
    %v3799 = vunpack.c.l.b16 %v3697
    %v3800 = vunpack.c.h.b16 %v3697
    %v3801 = vunpack.c.l.b16 %v3698
    %v3802 = vunpack.c.h.b16 %v3698
    %v3803 = vunpack.c.l.b16 %v3699
    %v3804 = vunpack.c.h.b16 %v3699
    %v3805 = vunpack.c.l.b16 %v3700
    %v3806 = vunpack.c.h.b16 %v3700
    %v3807 = vpack.c.b16 %v3747, %v3743
    %v3808 = vpack.c.b16 %v3748, %v3744
    %v3809 = vpack.c.b16 %v3749, %v3745
    %v3810 = vpack.c.b16 %v3750, %v3746
    %v3811 = vpack.c.b16 %v3755, %v3751
    %v3812 = vpack.c.b16 %v3756, %v3752
    %v3813 = vpack.c.b16 %v3757, %v3753
    %v3814 = vpack.c.b16 %v3758, %v3754
    %v3815 = vpack.c.b16 %v3763, %v3759
    %v3816 = vpack.c.b16 %v3764, %v3760
    %v3817 = vpack.c.b16 %v3765, %v3761
    %v3818 = vpack.c.b16 %v3766, %v3762
    %v3819 = vpack.c.b16 %v3771, %v3767
    %v3820 = vpack.c.b16 %v3772, %v3768
    %v3821 = vpack.c.b16 %v3773, %v3769
    %v3822 = vpack.c.b16 %v3774, %v3770
    %v3823 = vpack.c.b16 %v3779, %v3775
    %v3824 = vpack.c.b16 %v3780, %v3776
    %v3825 = vpack.c.b16 %v3781, %v3777
    %v3826 = vpack.c.b16 %v3782, %v3778
    %v3827 = vpack.c.b16 %v3787, %v3783
    %v3828 = vpack.c.b16 %v3788, %v3784
    %v3829 = vpack.c.b16 %v3789, %v3785
    %v3830 = vpack.c.b16 %v3790, %v3786
    %v3831 = vpack.c.b16 %v3795, %v3791
    %v3832 = vpack.c.b16 %v3796, %v3792
    %v3833 = vpack.c.b16 %v3797, %v3793
    %v3834 = vpack.c.b16 %v3798, %v3794
    %v3835 = vpack.c.b16 %v3803, %v3799
    %v3836 = vpack.c.b16 %v3804, %v3800
    %v3837 = vpack.c.b16 %v3805, %v3801
    %v3838 = vpack.c.b16 %v3806, %v3802
    %3871 = vmatpush.bf16.msra.mxu0 %v3835
    %3872 = vmatpush.bf16.msra.mxu0 %v3831
    %3873 = vmatpush.bf16.msra.mxu0 %v3827
    %3874 = vmatpush.bf16.msra.mxu0 %v3823
    %3875 = vmatpush.bf16.msra.mxu0 %v3819
    %3876 = vmatpush.bf16.msra.mxu0 %v3815
    %3877 = vmatpush.bf16.msra.mxu0 %v3811
    %3878 = vmatpush.bf16.msra.mxu0 %v3807
    %3879 = vmatmul.bf16.gmra.mxu0 %v3667
    %v3880 = vpop.f32.mrf.mxu0
    %v3881 = vadd.f32 %v3703, %v3880
    %v3882 = vpop.f32.mrf.mxu0
    %v3883 = vadd.f32 %v3703, %v3882
    %3884 = vmatmul.bf16.gmra.mxu0 %v3668
    %v3885 = vpop.f32.mrf.mxu0
    %v3886 = vadd.f32 %v3703, %v3885
    %v3887 = vpop.f32.mrf.mxu0
    %v3888 = vadd.f32 %v3703, %v3887
    %3889 = vdwg.mxu0
    %3890 = vmatpush.bf16.msra.mxu0 %v3836
    %3891 = vmatpush.bf16.msra.mxu0 %v3832
    %3892 = vmatpush.bf16.msra.mxu0 %v3828
    %3893 = vmatpush.bf16.msra.mxu0 %v3824
    %3894 = vmatpush.bf16.msra.mxu0 %v3820
    %3895 = vmatpush.bf16.msra.mxu0 %v3816
    %3896 = vmatpush.bf16.msra.mxu0 %v3812
    %3897 = vmatpush.bf16.msra.mxu0 %v3808
    %3898 = vmatmul.bf16.gmra.mxu0 %v3667
    %v3899 = vpop.f32.mrf.mxu0
    %v3900 = vadd.f32 %v3704, %v3899
    %v3901 = vpop.f32.mrf.mxu0
    %v3902 = vadd.f32 %v3704, %v3901
    %3903 = vmatmul.bf16.gmra.mxu0 %v3668
    %v3904 = vpop.f32.mrf.mxu0
    %v3905 = vadd.f32 %v3704, %v3904
    %v3906 = vpop.f32.mrf.mxu0
    %v3907 = vadd.f32 %v3704, %v3906
    %3908 = vdwg.mxu0
    %3909 = vmatpush.bf16.msra.mxu0 %v3837
    %3910 = vmatpush.bf16.msra.mxu0 %v3833
    %3911 = vmatpush.bf16.msra.mxu0 %v3829
    %3912 = vmatpush.bf16.msra.mxu0 %v3825
    %3913 = vmatpush.bf16.msra.mxu0 %v3821
    %3914 = vmatpush.bf16.msra.mxu0 %v3817
    %3915 = vmatpush.bf16.msra.mxu0 %v3813
    %3916 = vmatpush.bf16.msra.mxu0 %v3809
    %3917 = vmatmul.bf16.gmra.mxu0 %v3667
    %v3918 = vpop.f32.mrf.mxu0
    %v3919 = vadd.f32 %v3705, %v3918
    %v3920 = vpop.f32.mrf.mxu0
    %v3921 = vadd.f32 %v3705, %v3920
    %3922 = vmatmul.bf16.gmra.mxu0 %v3668
    %v3923 = vpop.f32.mrf.mxu0
    %v3924 = vadd.f32 %v3705, %v3923
    %v3925 = vpop.f32.mrf.mxu0
    %v3926 = vadd.f32 %v3705, %v3925
    %3927 = vdwg.mxu0
    %3928 = vmatpush.bf16.msra.mxu0 %v3838
    %3929 = vmatpush.bf16.msra.mxu0 %v3834
    %3930 = vmatpush.bf16.msra.mxu0 %v3830
    %3931 = vmatpush.bf16.msra.mxu0 %v3826
    %3932 = vmatpush.bf16.msra.mxu0 %v3822
    %3933 = vmatpush.bf16.msra.mxu0 %v3818
    %3934 = vmatpush.bf16.msra.mxu0 %v3814
    %3935 = vmatpush.bf16.msra.mxu0 %v3810
    %3936 = vmatmul.bf16.gmra.mxu0 %v3667
    %v3937 = vpop.f32.mrf.mxu0
    %v3938 = vadd.f32 %v3706, %v3937
    %v3939 = vpop.f32.mrf.mxu0
    %v3940 = vadd.f32 %v3706, %v3939
    %3941 = vmatmul.bf16.gmra.mxu0 %v3668
    %v3942 = vpop.f32.mrf.mxu0
    %v3943 = vadd.f32 %v3706, %v3942
    %v3944 = vpop.f32.mrf.mxu0
    %v3945 = vadd.f32 %v3706, %v3944
    %3946 = vdwg.mxu0
    %3947 = vst [vmem:[#allocation5] sm:$0xff] %v3881
    %3948 = vst [vmem:[#allocation5 + $0x8] sm:$0xff] %v3900
    %3949 = vst [vmem:[#allocation5 + $0x10] sm:$0xff] %v3919
    %3950 = vst [vmem:[#allocation5 + $0x18] sm:$0xff] %v3938
    %3951 = vst [vmem:[#allocation5 + $0x20] sm:$0xff] %v3883
    %3952 = vst [vmem:[#allocation5 + $0x28] sm:$0xff] %v3902
    %3953 = vst [vmem:[#allocation5 + $0x30] sm:$0xff] %v3921
    %3954 = vst [vmem:[#allocation5 + $0x38] sm:$0xff] %v3940
    %3955 = vst [vmem:[#allocation5 + $0x40] sm:$0xff] %v3886
    %3956 = vst [vmem:[#allocation5 + $0x48] sm:$0xff] %v3905
    %3957 = vst [vmem:[#allocation5 + $0x50] sm:$0xff] %v3924
    %3958 = vst [vmem:[#allocation5 + $0x58] sm:$0xff] %v3943
    %3959 = vst [vmem:[#allocation5 + $0x60] sm:$0xff] %v3888
    %3960 = vst [vmem:[#allocation5 + $0x68] sm:$0xff] %v3907
    %3961 = vst [vmem:[#allocation5 + $0x70] sm:$0xff] %v3926
    %3962 = vst [vmem:[#allocation5 + $0x78] sm:$0xff] %v3945
    // Predicated region
    $region58: #{llama_forward.1} parent=1 // pred_check
      _
    $region59: #{llama_forward.1} parent=1 // pred_check_branch
      %3964 = sbr.rel (0) target = $region61
    $region60: #{llama_forward.1} parent=1 // pred_region
      %3966 = vsyncadd [#allocation4], 0
      %s3967 = sshll.u32 [#allocation5], 4
      %s3968 = int_to_ptr.vmem [resolvable:$true] %s3967
      %s3969 = sshll.u32 %s13, 4
      %s3970 = int_to_ptr.hbm [resolvable:$true] %s3969
      %3975 = dma.vmem_to_hbm [thread:$0]  %s3968, 2048, %s3970, [#allocation4], 512, 512, 32
    $region61: #{llama_forward.1} parent=1 // pred_fallthru
      _
    // Predicated region
    $region62: #{llama_forward.1} parent=1 // pred_check
      _
    $region63: #{llama_forward.1} parent=1 // pred_check_branch
      %3977 = sbr.rel (0) target = $region65
    $region64: #{llama_forward.1} parent=1 // pred_region
      %3979 = dma.done [#allocation4], 2048
    $region65: #{llama_forward.1} parent=1 // pred_fallthru
      _
    %3980 = vsyncpa [#allocation3], 1
    %3981 = vsyncpa [#allocation4], 1

</llo_original>
